<compile_context>
chip_gen: v7x
topology: tpu7x:2x2x1
jax: 0.10.0
libtpu: 0.0.40
codegen_flags: <defaults>
</compile_context>

<pallas_src>
import functools

import jax
import jax.numpy as jnp
from jax import lax
from jax.experimental import pallas as pl
from jax.experimental.pallas import tpu as pltpu

EPS = 1e-5


# ----------------------------- in-kernel helpers ----------------------------
def _conv_core(xb, w, b, taps, L, K):
    """xb: (Cin, L+2K) flat buffer; w: (Cout, 27*Cin); b: (Cout, 1) -> (Cout, L)."""
    patches = jnp.concatenate([xb[:, K + o:K + o + L] for o in taps], axis=0)
    return jnp.dot(w, patches, preferred_element_type=jnp.float32) + b


def _masked_stats(y, mask):
    """y: (Cout, L); mask: (1, L) in {0,1} -> (Cout, 2) = [sum, sum_sq] over interior."""
    ym = y * mask
    s = jnp.sum(ym, axis=1, keepdims=True)
    sq = jnp.sum(ym * y, axis=1, keepdims=True)
    return jnp.concatenate([s, sq], axis=1)


# --------------------------------- kernels ----------------------------------
def _conv1_kernel(x_ref, w_ref, b_ref, mask_out_ref, o_ref, stats_ref,
                  *, L, K, taps):
    @pl.when(pl.program_id(0) == 0)
    def _():
        stats_ref[...] = jnp.zeros_like(stats_ref)

    out = _conv_core(x_ref[0], w_ref[...], b_ref[...], taps, L, K)
    o_ref[0] = out
    stats_ref[...] += _masked_stats(out, mask_out_ref[...])


def _conv2_kernel(x_ref, w_ref, b_ref, scale_ref, shift_ref, alpha_ref,
                  mask_in_ref, mask_out_ref, o_ref, stats_ref,
                  *, L, K, taps):
    @pl.when(pl.program_id(0) == 0)
    def _():
        stats_ref[...] = jnp.zeros_like(stats_ref)

    # fused BN1 affine + PReLU on the loaded tile; mask re-zeroes halo/margins
    y = x_ref[0] * scale_ref[...] + shift_ref[...]
    a = alpha_ref[0, 0]
    y = jnp.where(y >= 0, y, a * y)
    y = y * mask_in_ref[...]

    out = _conv_core(y, w_ref[...], b_ref[...], taps, L, K)
    o_ref[0] = out
    stats_ref[...] += _masked_stats(out, mask_out_ref[...])


def _bn_add_kernel(x_ref, r_ref, scale_ref, shift_ref, o_ref):
    o_ref[0] = x_ref[0] + r_ref[0] * scale_ref[...] + shift_ref[...]


# ----------------------------- pallas_call wrappers --------------------------
def conv1_call(xbuf, w, b, mask_out, *, L, K, taps):
    N, C, Lin = xbuf.shape
    Cout, Kdim = w.shape
    kern = functools.partial(_conv1_kernel, L=L, K=K, taps=taps)
    return pl.pallas_call(
        kern,
        out_shape=(jax.ShapeDtypeStruct((N, Cout, L), jnp.float32),
                   jax.ShapeDtypeStruct((Cout, 2), jnp.float32)),
        grid=(N,),
        in_specs=[
            pl.BlockSpec((1, C, Lin), lambda n: (n, 0, 0)),
            pl.BlockSpec((Cout, Kdim), lambda n: (0, 0)),
            pl.BlockSpec((Cout, 1), lambda n: (0, 0)),
            pl.BlockSpec((1, L), lambda n: (0, 0)),
        ],
        out_specs=(pl.BlockSpec((1, Cout, L), lambda n: (n, 0, 0)),
                   pl.BlockSpec((Cout, 2), lambda n: (0, 0))),
        compiler_params=pltpu.CompilerParams(
            dimension_semantics=("arbitrary",)),
    )(xbuf, w, b, mask_out)


def conv2_call(xbuf, w, b, scale, shift, alpha, mask_in, mask_out, *, L, K, taps):
    N, C, Lin = xbuf.shape
    Cout, Kdim = w.shape
    kern = functools.partial(_conv2_kernel, L=L, K=K, taps=taps)
    return pl.pallas_call(
        kern,
        out_shape=(jax.ShapeDtypeStruct((N, Cout, L), jnp.float32),
                   jax.ShapeDtypeStruct((Cout, 2), jnp.float32)),
        grid=(N,),
        in_specs=[
            pl.BlockSpec((1, C, Lin), lambda n: (n, 0, 0)),
            pl.BlockSpec((Cout, Kdim), lambda n: (0, 0)),
            pl.BlockSpec((Cout, 1), lambda n: (0, 0)),
            pl.BlockSpec((C, 1), lambda n: (0, 0)),
            pl.BlockSpec((C, 1), lambda n: (0, 0)),
            pl.BlockSpec((1, 1), lambda n: (0, 0)),
            pl.BlockSpec((1, Lin), lambda n: (0, 0)),
            pl.BlockSpec((1, L), lambda n: (0, 0)),
        ],
        out_specs=(pl.BlockSpec((1, Cout, L), lambda n: (n, 0, 0)),
                   pl.BlockSpec((Cout, 2), lambda n: (0, 0))),
        compiler_params=pltpu.CompilerParams(
            dimension_semantics=("arbitrary",)),
    )(xbuf, w, b, scale, shift, alpha, mask_in, mask_out)


def bn_add_call(xpf, r, scale, shift):
    N, C, P = xpf.shape
    return pl.pallas_call(
        _bn_add_kernel,
        out_shape=jax.ShapeDtypeStruct((N, C, P), jnp.float32),
        grid=(N,),
        in_specs=[
            pl.BlockSpec((1, C, P), lambda n: (n, 0, 0)),
            pl.BlockSpec((1, C, P), lambda n: (n, 0, 0)),
            pl.BlockSpec((C, 1), lambda n: (0, 0)),
            pl.BlockSpec((C, 1), lambda n: (0, 0)),
        ],
        out_specs=pl.BlockSpec((1, C, P), lambda n: (n, 0, 0)),
        compiler_params=pltpu.CompilerParams(
            dimension_semantics=("parallel",)),
    )(xpf, r, scale, shift)


# ------------------------------- glue / wrapper ------------------------------
def _w_to_mat(w):
    # torch (Cout, Cin, kd, kh, kw) -> (Cout, 27*Cin), tap-major then cin
    Cout, Cin = w.shape[0], w.shape[1]
    return jnp.transpose(w, (0, 2, 3, 4, 1)).reshape(Cout, 27 * Cin)


def _bn_affine(stats, count, gamma, beta):
    s, sq = stats[:, 0], stats[:, 1]
    mean = s / count
    var = sq / count - mean * mean        # biased variance (BN training mode)
    scale = gamma * lax.rsqrt(var + EPS)
    shift = beta - mean * scale
    return scale.reshape(-1, 1), shift.reshape(-1, 1)


def residual_block_forward(x, p):
    """x: (N, C, D, H, W) float32 (native PyTorch layout)."""
    N, C, D, H, W = x.shape
    Dp, Hp, Wp = D + 2, H + 2, W + 2
    P = Dp * Hp * Wp
    K = Hp * Wp + Wp + 1                   # max |flat tap offset|
    taps = tuple((kd - 1) * (Hp * Wp) + (kh - 1) * Wp + (kw - 1)
                 for kd in range(3) for kh in range(3) for kw in range(3))
    count = float(N * D * H * W)

    w1, w2 = _w_to_mat(p["w1"]), _w_to_mat(p["w2"])
    b1, b2 = p["b1"].reshape(-1, 1), p["b2"].reshape(-1, 1)
    alpha = p["alpha"].reshape(1, 1)

    # interior-voxel mask on the flat padded grid
    fp = jnp.arange(P)
    d_i = fp // (Hp * Wp)
    rem = fp % (Hp * Wp)
    h_i = rem // Wp
    w_i = rem % Wp
    interior = ((d_i >= 1) & (d_i <= D) &
                (h_i >= 1) & (h_i <= H) &
                (w_i >= 1) & (w_i <= W))
    maskP = interior.astype(jnp.float32).reshape(1, P)        # (1, P)
    maskB = jnp.pad(maskP, ((0, 0), (K, K)))                  # (1, P + 2K)

    # x on the zero-padded grid, flattened, with 2K-wide flat zero margins
    xpf = jnp.pad(x, ((0, 0), (0, 0), (1, 1), (1, 1), (1, 1))).reshape(N, C, P)
    xbuf = jnp.pad(xpf, ((0, 0), (0, 0), (2 * K, 2 * K)))     # (N, C, P + 4K)

    # conv1 (+ fused per-channel stats); output already in conv2's buffered form
    r1buf, s1 = conv1_call(xbuf, w1, b1, maskB, L=P + 2 * K, K=K, taps=taps)
    scale1, shift1 = _bn_affine(s1, count, p["g1"], p["be1"])

    # conv2 with fused BN1 + PReLU on its input (+ fused stats)
    r2, s2 = conv2_call(r1buf, w2, b2, scale1, shift1, alpha, maskB, maskP,
                        L=P, K=K, taps=taps)
    scale2, shift2 = _bn_affine(s2, count, p["g2"], p["be2"])

    # BN2 + residual add on the padded grid, then slice out the interior
    outp = bn_add_call(xpf, r2, scale2, shift2)               # (N, C, P)
    out = outp.reshape(N, C, Dp, Hp, Wp)[:, :, 1:D + 1, 1:H + 1, 1:W + 1]
    return out


# ------------------------------ pure-JAX reference ---------------------------
def reference_forward(x, p):
    def conv(v, w, b):
        y = lax.conv_general_dilated(
            v, w, (1, 1, 1), [(1, 1), (1, 1), (1, 1)],
            dimension_numbers=("NCDHW", "OIDHW", "NCDHW"))
        return y + b.reshape(1, -1, 1, 1, 1)

    def bn(y, gamma, beta):
        mean = y.mean(axis=(0, 2, 3, 4), keepdims=True)
        var = ((y - mean) ** 2).mean(axis=(0, 2, 3, 4), keepdims=True)
        return ((y - mean) * lax.rsqrt(var + EPS) * gamma.reshape(1, -1, 1, 1, 1)
                + beta.reshape(1, -1, 1, 1, 1))

    r = conv(x, p["w1"], p["b1"])
    r = bn(r, p["g1"], p["be1"])
    r = jnp.where(r >= 0, r, p["alpha"] * r)
    r = conv(r, p["w2"], p["b2"])
    r = bn(r, p["g2"], p["be2"])
    return x + r


if __name__ == "__main__":
    # ResidualBlock(None, 32): in_channels == out_channels == 32 (module default)
    N, C, D, H, W = 2, 32, 4, 8, 8

    key = jax.random.PRNGKey(0)
    ks = jax.random.split(key, 10)
    params = {
        "w1": 0.1 * jax.random.normal(ks[0], (C, C, 3, 3, 3), jnp.float32),
        "b1": 0.1 * jax.random.normal(ks[1], (C,), jnp.float32),
        "g1": 1.0 + 0.1 * jax.random.normal(ks[2], (C,), jnp.float32),
        "be1": 0.1 * jax.random.normal(ks[3], (C,), jnp.float32),
        "w2": 0.1 * jax.random.normal(ks[4], (C, C, 3, 3, 3), jnp.float32),
        "b2": 0.1 * jax.random.normal(ks[5], (C,), jnp.float32),
        "g2": 1.0 + 0.1 * jax.random.normal(ks[6], (C,), jnp.float32),
        "be2": 0.1 * jax.random.normal(ks[7], (C,), jnp.float32),
        "alpha": jnp.asarray(0.25, jnp.float32),   # PReLU default init
    }
    x = jax.random.normal(ks[8], (N, C, D, H, W), jnp.float32)

    out = jax.block_until_ready(residual_block_forward(x, params))
    ref = jax.block_until_ready(reference_forward(x, params))

    assert out.shape == (N, C, D, H, W)
    err = float(jnp.max(jnp.abs(out - ref)))
    assert jnp.allclose(out, ref, atol=2e-3, rtol=2e-3), f"max abs diff {err:e}"

    print("KERNEL_OK")
</pallas_src>

<mosaic_0001>
module attributes {stable_mosaic.version = 11 : i64} {
  func.func @_conv1_kernel(%arg0: i32, %arg1: memref<1x32x1044xf32, #tpu.memory_space<vmem>>, %arg2: memref<32x864xf32, #tpu.memory_space<vmem>>, %arg3: memref<32x1xf32, #tpu.memory_space<vmem>>, %arg4: memref<1x822xf32, #tpu.memory_space<vmem>>, %arg5: memref<1x32x822xf32, #tpu.memory_space<vmem>>, %arg6: memref<32x2xf32, #tpu.memory_space<vmem>>) attributes {dimension_semantics = [#tpu.dimension_semantics<arbitrary>], iteration_bounds = array<i64: 2>, scalar_prefetch = 0 : i64, scratch_operands = 0 : i64, tpu.core_type = #tpu.core_type<tc>, window_params = [{transform_indices = @transform_0, window_bounds = array<i64: 1, 32, 1044>}, {pipeline_mode = #tpu.pipeline_mode<synchronous>, transform_indices = @transform_1, window_bounds = array<i64: 32, 864>}, {pipeline_mode = #tpu.pipeline_mode<synchronous>, transform_indices = @transform_2, window_bounds = array<i64: 32, 1>}, {pipeline_mode = #tpu.pipeline_mode<synchronous>, transform_indices = @transform_3, window_bounds = array<i64: 1, 822>}, {transform_indices = @transform_4, window_bounds = array<i64: 1, 32, 822>}, {pipeline_mode = #tpu.pipeline_mode<synchronous>, transform_indices = @transform_5, window_bounds = array<i64: 32, 2>}]} {
    %c0_i32 = arith.constant 0 : i32
    %0 = arith.cmpi eq, %arg0, %c0_i32 : i32
    %1 = arith.extui %0 : i1 to i32
    %c0_i32_0 = arith.constant 0 : i32
    %2 = arith.cmpi ne, %1, %c0_i32_0 : i32
    scf.if %2 {
      %cst_18 = arith.constant 0.000000e+00 : f32
      %55 = vector.broadcast %cst_18 : f32 to vector<32x2xf32>
      %c0_19 = arith.constant 0 : index
      %c0_20 = arith.constant 0 : index
      %56 = vector.load %arg6[%c0_19, %c0_20] : memref<32x2xf32, #tpu.memory_space<vmem>>, vector<32x2xf32>
      tpu.vector_store %arg6[%c0_19, %c0_20], %55 {strides = array<i32>} : memref<32x2xf32, #tpu.memory_space<vmem>>, vector<32x2xf32>,
    } else {
    }
    %c0 = arith.constant 0 : index
    %c0_1 = arith.constant 0 : index
    %c0_2 = arith.constant 0 : index
    %3 = vector.load %arg1[%c0, %c0_1, %c0_2] : memref<1x32x1044xf32, #tpu.memory_space<vmem>>, vector<1x32x1044xf32>
    %4 = vector.shape_cast %3 : vector<1x32x1044xf32> to vector<32x1044xf32>
    %c0_3 = arith.constant 0 : index
    %c0_4 = arith.constant 0 : index
    %5 = vector.load %arg2[%c0_3, %c0_4] : memref<32x864xf32, #tpu.memory_space<vmem>>, vector<32x864xf32>
    %c0_5 = arith.constant 0 : index
    %c0_6 = arith.constant 0 : index
    %6 = vector.load %arg3[%c0_5, %c0_6] : memref<32x1xf32, #tpu.memory_space<vmem>>, vector<32x1xf32>
    %7 = vector.extract_strided_slice %4 {offsets = [0, 0], sizes = [32, 822], strides = [1, 1]} : vector<32x1044xf32> to vector<32x822xf32>
    %8 = vector.extract_strided_slice %4 {offsets = [0, 1], sizes = [32, 822], strides = [1, 1]} : vector<32x1044xf32> to vector<32x822xf32>
    %9 = vector.extract_strided_slice %4 {offsets = [0, 2], sizes = [32, 822], strides = [1, 1]} : vector<32x1044xf32> to vector<32x822xf32>
    %10 = vector.extract_strided_slice %4 {offsets = [0, 10], sizes = [32, 822], strides = [1, 1]} : vector<32x1044xf32> to vector<32x822xf32>
    %11 = vector.extract_strided_slice %4 {offsets = [0, 11], sizes = [32, 822], strides = [1, 1]} : vector<32x1044xf32> to vector<32x822xf32>
    %12 = vector.extract_strided_slice %4 {offsets = [0, 12], sizes = [32, 822], strides = [1, 1]} : vector<32x1044xf32> to vector<32x822xf32>
    %13 = vector.extract_strided_slice %4 {offsets = [0, 20], sizes = [32, 822], strides = [1, 1]} : vector<32x1044xf32> to vector<32x822xf32>
    %14 = vector.extract_strided_slice %4 {offsets = [0, 21], sizes = [32, 822], strides = [1, 1]} : vector<32x1044xf32> to vector<32x822xf32>
    %15 = vector.extract_strided_slice %4 {offsets = [0, 22], sizes = [32, 822], strides = [1, 1]} : vector<32x1044xf32> to vector<32x822xf32>
    %16 = vector.extract_strided_slice %4 {offsets = [0, 100], sizes = [32, 822], strides = [1, 1]} : vector<32x1044xf32> to vector<32x822xf32>
    %17 = vector.extract_strided_slice %4 {offsets = [0, 101], sizes = [32, 822], strides = [1, 1]} : vector<32x1044xf32> to vector<32x822xf32>
    %18 = vector.extract_strided_slice %4 {offsets = [0, 102], sizes = [32, 822], strides = [1, 1]} : vector<32x1044xf32> to vector<32x822xf32>
    %19 = vector.extract_strided_slice %4 {offsets = [0, 110], sizes = [32, 822], strides = [1, 1]} : vector<32x1044xf32> to vector<32x822xf32>
    %20 = vector.extract_strided_slice %4 {offsets = [0, 111], sizes = [32, 822], strides = [1, 1]} : vector<32x1044xf32> to vector<32x822xf32>
    %21 = vector.extract_strided_slice %4 {offsets = [0, 112], sizes = [32, 822], strides = [1, 1]} : vector<32x1044xf32> to vector<32x822xf32>
    %22 = vector.extract_strided_slice %4 {offsets = [0, 120], sizes = [32, 822], strides = [1, 1]} : vector<32x1044xf32> to vector<32x822xf32>
    %23 = vector.extract_strided_slice %4 {offsets = [0, 121], sizes = [32, 822], strides = [1, 1]} : vector<32x1044xf32> to vector<32x822xf32>
    %24 = vector.extract_strided_slice %4 {offsets = [0, 122], sizes = [32, 822], strides = [1, 1]} : vector<32x1044xf32> to vector<32x822xf32>
    %25 = vector.extract_strided_slice %4 {offsets = [0, 200], sizes = [32, 822], strides = [1, 1]} : vector<32x1044xf32> to vector<32x822xf32>
    %26 = vector.extract_strided_slice %4 {offsets = [0, 201], sizes = [32, 822], strides = [1, 1]} : vector<32x1044xf32> to vector<32x822xf32>
    %27 = vector.extract_strided_slice %4 {offsets = [0, 202], sizes = [32, 822], strides = [1, 1]} : vector<32x1044xf32> to vector<32x822xf32>
    %28 = vector.extract_strided_slice %4 {offsets = [0, 210], sizes = [32, 822], strides = [1, 1]} : vector<32x1044xf32> to vector<32x822xf32>
    %29 = vector.extract_strided_slice %4 {offsets = [0, 211], sizes = [32, 822], strides = [1, 1]} : vector<32x1044xf32> to vector<32x822xf32>
    %30 = vector.extract_strided_slice %4 {offsets = [0, 212], sizes = [32, 822], strides = [1, 1]} : vector<32x1044xf32> to vector<32x822xf32>
    %31 = vector.extract_strided_slice %4 {offsets = [0, 220], sizes = [32, 822], strides = [1, 1]} : vector<32x1044xf32> to vector<32x822xf32>
    %32 = vector.extract_strided_slice %4 {offsets = [0, 221], sizes = [32, 822], strides = [1, 1]} : vector<32x1044xf32> to vector<32x822xf32>
    %33 = vector.extract_strided_slice %4 {offsets = [0, 222], sizes = [32, 822], strides = [1, 1]} : vector<32x1044xf32> to vector<32x822xf32>
    %34 = tpu.concatenate %7, %8, %9, %10, %11, %12, %13, %14, %15, %16, %17, %18, %19, %20, %21, %22 in 0 : vector<32x822xf32>, vector<32x822xf32>, vector<32x822xf32>, vector<32x822xf32>, vector<32x822xf32>, vector<32x822xf32>, vector<32x822xf32>, vector<32x822xf32>, vector<32x822xf32>, vector<32x822xf32>, vector<32x822xf32>, vector<32x822xf32>, vector<32x822xf32>, vector<32x822xf32>, vector<32x822xf32>, vector<32x822xf32> -> vector<512x822xf32>
    %35 = tpu.concatenate %23, %24, %25, %26, %27, %28, %29, %30, %31, %32, %33 in 0 : vector<32x822xf32>, vector<32x822xf32>, vector<32x822xf32>, vector<32x822xf32>, vector<32x822xf32>, vector<32x822xf32>, vector<32x822xf32>, vector<32x822xf32>, vector<32x822xf32>, vector<32x822xf32>, vector<32x822xf32> -> vector<352x822xf32>
    %36 = tpu.concatenate %34, %35 in 0 : vector<512x822xf32>, vector<352x822xf32> -> vector<864x822xf32>
    %cst = arith.constant dense<0.000000e+00> : vector<32x822xf32>
    %37 = tpu.matmul %5, %36, %cst {dimension_numbers = #tpu.dot_dimension_numbers<[1], [0], [0], [1], [0, 0, 1, 1], [], []>} : vector<32x864xf32>, vector<864x822xf32>, vector<32x822xf32> -> vector<32x822xf32>
    %38 = vector.broadcast %6 : vector<32x1xf32> to vector<32x822xf32>
    %39 = arith.addf %37, %38 : vector<32x822xf32>
    %c0_7 = arith.constant 0 : index
    %c0_8 = arith.constant 0 : index
    %c0_9 = arith.constant 0 : index
    %40 = vector.load %arg5[%c0_7, %c0_8, %c0_9] : memref<1x32x822xf32, #tpu.memory_space<vmem>>, vector<1x32x822xf32>
    %41 = vector.shape_cast %40 : vector<1x32x822xf32> to vector<32x822xf32>
    %42 = vector.shape_cast %39 : vector<32x822xf32> to vector<1x32x822xf32>
    tpu.vector_store %arg5[%c0_7, %c0_8, %c0_9], %42 {strides = array<i32>} : memref<1x32x822xf32, #tpu.memory_space<vmem>>, vector<1x32x822xf32>,
    %c0_10 = arith.constant 0 : index
    %c0_11 = arith.constant 0 : index
    %43 = vector.load %arg6[%c0_10, %c0_11] : memref<32x2xf32, #tpu.memory_space<vmem>>, vector<32x2xf32>
    %c0_12 = arith.constant 0 : index
    %c0_13 = arith.constant 0 : index
    %44 = vector.load %arg4[%c0_12, %c0_13] : memref<1x822xf32, #tpu.memory_space<vmem>>, vector<1x822xf32>
    %45 = vector.broadcast %44 : vector<1x822xf32> to vector<32x822xf32>
    %46 = arith.mulf %39, %45 : vector<32x822xf32>
    %cst_14 = arith.constant dense<0.000000e+00> : vector<32xf32>
    %47 = vector.multi_reduction <add>, %46, %cst_14 [1] : vector<32x822xf32> to vector<32xf32>
    %48 = vector.shape_cast %47 : vector<32xf32> to vector<32x1xf32>
    %49 = arith.mulf %46, %39 : vector<32x822xf32>
    %cst_15 = arith.constant dense<0.000000e+00> : vector<32xf32>
    %50 = vector.multi_reduction <add>, %49, %cst_15 [1] : vector<32x822xf32> to vector<32xf32>
    %51 = vector.shape_cast %50 : vector<32xf32> to vector<32x1xf32>
    %52 = tpu.concatenate %48, %51 in 1 : vector<32x1xf32>, vector<32x1xf32> -> vector<32x2xf32>
    %53 = arith.addf %43, %52 : vector<32x2xf32>
    %c0_16 = arith.constant 0 : index
    %c0_17 = arith.constant 0 : index
    %54 = vector.load %arg6[%c0_16, %c0_17] : memref<32x2xf32, #tpu.memory_space<vmem>>, vector<32x2xf32>
    tpu.vector_store %arg6[%c0_16, %c0_17], %53 {strides = array<i32>} : memref<32x2xf32, #tpu.memory_space<vmem>>, vector<32x2xf32>,
    return
  }
  func.func @transform_0(%arg0: i32) -> (i32, i32, i32) {
    %c0_i32 = arith.constant 0 : i32
    %c0_i32_0 = arith.constant 0 : i32
    %c0_i32_1 = arith.constant 0 : i32
    return %arg0, %c0_i32, %c0_i32_0 : i32, i32, i32
  }
  func.func @transform_1(%arg0: i32) -> (i32, i32) {
    %c0_i32 = arith.constant 0 : i32
    %c0_i32_0 = arith.constant 0 : i32
    %c0_i32_1 = arith.constant 0 : i32
    return %c0_i32, %c0_i32_0 : i32, i32
  }
  func.func @transform_2(%arg0: i32) -> (i32, i32) {
    %c0_i32 = arith.constant 0 : i32
    %c0_i32_0 = arith.constant 0 : i32
    %c0_i32_1 = arith.constant 0 : i32
    return %c0_i32, %c0_i32_0 : i32, i32
  }
  func.func @transform_3(%arg0: i32) -> (i32, i32) {
    %c0_i32 = arith.constant 0 : i32
    %c0_i32_0 = arith.constant 0 : i32
    %c0_i32_1 = arith.constant 0 : i32
    return %c0_i32, %c0_i32_0 : i32, i32
  }
  func.func @transform_4(%arg0: i32) -> (i32, i32, i32) {
    %c0_i32 = arith.constant 0 : i32
    %c0_i32_0 = arith.constant 0 : i32
    %c0_i32_1 = arith.constant 0 : i32
    return %arg0, %c0_i32, %c0_i32_0 : i32, i32, i32
  }
  func.func @transform_5(%arg0: i32) -> (i32, i32) {
    %c0_i32 = arith.constant 0 : i32
    %c0_i32_0 = arith.constant 0 : i32
    %c0_i32_1 = arith.constant 0 : i32
    return %c0_i32, %c0_i32_0 : i32, i32
  }
}

</mosaic_0001>

<llo_original>
// kernel: tpu_custom_call.1
$region0: #{tpu_custom_call.1}
  #allocation0 [shape = 'u32[]', space=smem, size = 0x4, offset = 0x4, fixed_abs, tag = 'smem constant byte address 0x4 - core index']
  #allocation1 [shape = 'u32[144,128]{1,0:T(1,128)}', space=vmem, size = 0x12000, scoped, tag = 'internal scratch']
  %s0 = inlined_call_operand.hbm [shape: f32[2,32,1044], index: 0, kind: input, shape index: {}]
  %s1 = inlined_call_operand.hbm [shape: f32[32,864], index: 1, kind: input, shape index: {}]
  %s2 = inlined_call_operand.vmem [shape: f32[32,1], index: 2, kind: input, shape index: {}]
  %s3 = inlined_call_operand.vmem [shape: f32[1,822], index: 3, kind: input, shape index: {}]
  %s4 = inlined_call_operand.hbm [shape: f32[2,32,822], index: 4, kind: output, shape index: {0}]
  %s5 = inlined_call_operand.vmem [shape: f32[32,2], index: 5, kind: output, shape index: {1}]
  %6 = xla_tuple %s4, %s5
  %s7 = sld [smem:[#allocation0]]
  $region69: #{tpu_custom_call.1} parent=0
    _
  %s9 = ssub.s32 1, %s7
  %s10 = scalar_select 0, %s9, %s7
  $region1: #{tpu_custom_call.1} parent=0
    #allocation2 [shape = 'u8[294912]{0}', space=vmem, size = 0x48000, scoped, tag = 'input window, operand 0']
    #allocation3 [shape = 's32[2]{0}', space=sflag, size = 0x8, scoped, tag = 'scoped memory for tpu_custom_call.1']
    #allocation4 [shape = 's32[2]{0}', space=sflag, size = 0x8, scoped, tag = 'scoped memory for tpu_custom_call.1']
    #allocation5 [shape = 'u8[114688]{0}', space=vmem, size = 0x1c000, scoped, tag = 'input window, operand 1, single buffered']
    #allocation6 [shape = 's32[1]{0}', space=sflag, size = 0x4, scoped, tag = 'scoped memory for tpu_custom_call.1']
    #allocation7 [shape = 'u8[229376]{0}', space=vmem, size = 0x38000, scoped, tag = 'output window, operand 0']
    %11 = vsyncpa [#allocation3], 0
    %s12 = scalar_lea.sflag [#allocation3], 1
    %13 = vsyncpa %s12, 0
    %14 = vsyncpa [#allocation6], 0
    %15 = vsyncpa [#allocation4], 0
    %s16 = scalar_lea.sflag [#allocation4], 1
    %17 = vsyncpa %s16, 0
    loop: start=0, step=1, limit=4
    $region2: #{tpu_custom_call.1} parent=1 // loop_pre_header
      _
    $region3: #{tpu_custom_call.1} parent=1 // loop_header
      %s19 = sphi 0, %s23
      %p20 = scmp.ge.s32.totalorder %s19, 4
      %s29 = sphi 0, %s31
      %s32 = sphi 0, %s29
      %s33 = sphi 0, %s32
      %s49 = sphi 0, %s33
      %s53 = sphi 0, %s53
      %s55 = sphi 0, %s53
      %s56 = sphi 0, %s55
      %s70 = sphi 0, %s56
      %s74 = sphi 0, %s74
      %s76 = sphi 0, %s74
      %s77 = sphi 0, %s76
      %s91 = sphi 0, %s77
      %s95 = sphi 0, %s95
      %s97 = sphi 0, %s95
      %s98 = sphi 0, %s97
      %s112 = sphi 0, %s98
      %s118 = sphi 0, %s120
      %s121 = sphi 0, %s118
      %s122 = sphi 0, %s121
      %s138 = sphi 0, %s122
      %s142 = sphi 0, %s142
      %s144 = sphi 0, %s142
      %s145 = sphi 0, %s144
      %s159 = sphi 0, %s145
    $region4: #{tpu_custom_call.1} parent=1 // loop_header_branch
      %22 = sbr.rel (%p20) target = $region8
    $region5: #{tpu_custom_call.1} parent=1 // loop_body
      %s24 = ssub.s32 %s19, 1
      %s25 = ssub.s32 %s19, 2
      %s26 = sadd.s32 %s19, 1
      %s27 = ssub.s32 %s19, %s26
      %p28 = scmp.eq.s32.totalorder %s27, 0
      %s30 = sadd.s32 %s29, 1
      %s31 = scalar_select %p28, %s29, %s30
      %p34 = pneg %p28
      %p35 = scmp.eq.s32.totalorder %s19, 1
      %p36 = por %p34, %p35
      %p37 = scmp.ne.s32.totalorder %s29, %s32
      %p38 = scmp.eq.s32.totalorder %s19, 0
      %p39 = por %p37, %p38
      %p40 = scmp.ne.s32.totalorder %s29, %s32
      %p41 = scmp.eq.s32.totalorder %s24, 1
      %p42 = por %p40, %p41
      %p43 = scmp.ne.s32.totalorder %s32, %s33
      %p44 = scmp.eq.s32.totalorder %s24, 0
      %p45 = por %p43, %p44
      %p46 = scmp.ne.s32.totalorder %s32, %s33
      %p47 = scmp.eq.s32.totalorder %s25, 1
      %p48 = por %p46, %p47
      %p50 = scmp.ne.s32.totalorder %s33, %s49
      %p51 = scmp.eq.s32.totalorder %s25, 0
      %p52 = por %p50, %p51
      %s54 = sadd.s32 %s53, 1
      %p57 = scmp.eq.s32.totalorder %s19, 1
      %p58 = scmp.ne.s32.totalorder %s53, %s55
      %p59 = scmp.eq.s32.totalorder %s19, 0
      %p60 = por %p58, %p59
      %p61 = scmp.ne.s32.totalorder %s53, %s55
      %p62 = scmp.eq.s32.totalorder %s24, 1
      %p63 = por %p61, %p62
      %p64 = scmp.ne.s32.totalorder %s55, %s56
      %p65 = scmp.eq.s32.totalorder %s24, 0
      %p66 = por %p64, %p65
      %p67 = scmp.ne.s32.totalorder %s55, %s56
      %p68 = scmp.eq.s32.totalorder %s25, 1
      %p69 = por %p67, %p68
      %p71 = scmp.ne.s32.totalorder %s56, %s70
      %p72 = scmp.eq.s32.totalorder %s25, 0
      %p73 = por %p71, %p72
      %s75 = sadd.s32 %s74, 1
      %p78 = scmp.eq.s32.totalorder %s19, 1
      %p79 = scmp.ne.s32.totalorder %s74, %s76
      %p80 = scmp.eq.s32.totalorder %s19, 0
      %p81 = por %p79, %p80
      %p82 = scmp.ne.s32.totalorder %s74, %s76
      %p83 = scmp.eq.s32.totalorder %s24, 1
      %p84 = por %p82, %p83
      %p85 = scmp.ne.s32.totalorder %s76, %s77
      %p86 = scmp.eq.s32.totalorder %s24, 0
      %p87 = por %p85, %p86
      %p88 = scmp.ne.s32.totalorder %s76, %s77
      %p89 = scmp.eq.s32.totalorder %s25, 1
      %p90 = por %p88, %p89
      %p92 = scmp.ne.s32.totalorder %s77, %s91
      %p93 = scmp.eq.s32.totalorder %s25, 0
      %p94 = por %p92, %p93
      %s96 = sadd.s32 %s95, 1
      %p99 = scmp.eq.s32.totalorder %s19, 1
      %p100 = scmp.ne.s32.totalorder %s95, %s97
      %p101 = scmp.eq.s32.totalorder %s19, 0
      %p102 = por %p100, %p101
      %p103 = scmp.ne.s32.totalorder %s95, %s97
      %p104 = scmp.eq.s32.totalorder %s24, 1
      %p105 = por %p103, %p104
      %p106 = scmp.ne.s32.totalorder %s97, %s98
      %p107 = scmp.eq.s32.totalorder %s24, 0
      %p108 = por %p106, %p107
      %p109 = scmp.ne.s32.totalorder %s97, %s98
      %p110 = scmp.eq.s32.totalorder %s25, 1
      %p111 = por %p109, %p110
      %p113 = scmp.ne.s32.totalorder %s98, %s112
      %p114 = scmp.eq.s32.totalorder %s25, 0
      %p115 = por %p113, %p114
      %s116 = ssub.s32 %s19, %s26
      %p117 = scmp.eq.s32.totalorder %s116, 0
      %s119 = sadd.s32 %s118, 1
      %s120 = scalar_select %p117, %s118, %s119
      %p123 = pneg %p117
      %p124 = scmp.eq.s32.totalorder %s19, 1
      %p125 = por %p123, %p124
      %p126 = scmp.ne.s32.totalorder %s118, %s121
      %p127 = scmp.eq.s32.totalorder %s19, 0
      %p128 = por %p126, %p127
      %p129 = scmp.ne.s32.totalorder %s118, %s121
      %p130 = scmp.eq.s32.totalorder %s24, 1
      %p131 = por %p129, %p130
      %p132 = scmp.ne.s32.totalorder %s121, %s122
      %p133 = scmp.eq.s32.totalorder %s24, 0
      %p134 = por %p132, %p133
      %p135 = scmp.ne.s32.totalorder %s121, %s122
      %p136 = scmp.eq.s32.totalorder %s25, 1
      %p137 = por %p135, %p136
      %p139 = scmp.ne.s32.totalorder %s122, %s138
      %p140 = scmp.eq.s32.totalorder %s25, 0
      %p141 = por %p139, %p140
      %s143 = sadd.s32 %s142, 1
      %p146 = scmp.eq.s32.totalorder %s19, 1
      %p147 = scmp.ne.s32.totalorder %s142, %s144
      %p148 = scmp.eq.s32.totalorder %s19, 0
      %p149 = por %p147, %p148
      %p150 = scmp.ne.s32.totalorder %s142, %s144
      %p151 = scmp.eq.s32.totalorder %s24, 1
      %p152 = por %p150, %p151
      %p153 = scmp.ne.s32.totalorder %s144, %s145
      %p154 = scmp.eq.s32.totalorder %s24, 0
      %p155 = por %p153, %p154
      %p156 = scmp.ne.s32.totalorder %s144, %s145
      %p157 = scmp.eq.s32.totalorder %s25, 1
      %p158 = por %p156, %p157
      %p160 = scmp.ne.s32.totalorder %s145, %s159
      %p161 = scmp.eq.s32.totalorder %s25, 0
      %p162 = por %p160, %p161
      %p163 = scmp.le.s32.totalorder 1, %s19
      %p164 = scmp.lt.s32.totalorder %s19, 3
      %p165 = pnand %p163, %p164
      %p166 = pneg %p165
      // Predicated region
      $region9: #{tpu_custom_call.1} parent=5 // pred_check
        _
      $region10: #{tpu_custom_call.1} parent=5 // pred_check_branch
        %168 = sbr.rel (%p165) target = $region12
      $region11: #{tpu_custom_call.1} parent=5 // pred_region
        %s169 = ssub.s32 %s19, 1
        // Predicated region
        $region13: #{tpu_custom_call.1} parent=11 // pred_check
          %p170 = pneg %p66
        $region14: #{tpu_custom_call.1} parent=11 // pred_check_branch
          %172 = sbr.rel (%p170) target = $region16
        $region15: #{tpu_custom_call.1} parent=11 // pred_region
          %s174 = ssub.s32 3584, 3584
          %175 = vsyncadd [#allocation6], %s174
          %s176 = sshll.u32 [#allocation5], 4
          %s177 = int_to_ptr.vmem [resolvable:$true] %s176
          %182 = dma.hbm_to_vmem [thread:$0]  %s1, 3584, %s177, [#allocation6], 896, 896, 56
        $region16: #{tpu_custom_call.1} parent=11 // pred_fallthru
          _
        // Predicated region
        $region17: #{tpu_custom_call.1} parent=11 // pred_check
          %p183 = pneg %p87
        $region18: #{tpu_custom_call.1} parent=11 // pred_check_branch
          %185 = sbr.rel (%p183) target = $region20
        $region19: #{tpu_custom_call.1} parent=11 // pred_region
          _
        $region20: #{tpu_custom_call.1} parent=11 // pred_fallthru
          _
        // Predicated region
        $region21: #{tpu_custom_call.1} parent=11 // pred_check
          %p186 = pneg %p108
        $region22: #{tpu_custom_call.1} parent=11 // pred_check_branch
          %188 = sbr.rel (%p186) target = $region24
        $region23: #{tpu_custom_call.1} parent=11 // pred_region
          _
        $region24: #{tpu_custom_call.1} parent=11 // pred_fallthru
          _
      $region12: #{tpu_custom_call.1} parent=5 // pred_fallthru
        _
      %p189 = scmp.lt.s32.totalorder %s19, 2
      // Predicated region
      $region25: #{tpu_custom_call.1} parent=5 // pred_check
        %p190 = pneg %p189
      $region26: #{tpu_custom_call.1} parent=5 // pred_check_branch
        %192 = sbr.rel (%p190) target = $region28
      $region27: #{tpu_custom_call.1} parent=5 // pred_region
        // Predicated region
        $region29: #{tpu_custom_call.1} parent=27 // pred_check
          %p193 = pneg %p39
        $region30: #{tpu_custom_call.1} parent=27 // pred_check_branch
          %195 = sbr.rel (%p193) target = $region32
        $region31: #{tpu_custom_call.1} parent=27 // pred_region
          %s196 = sand.u32 %s29, 1
          %s197 = scalar_lea.sflag [#allocation3], %s196
          %s198 = sand.u32 %s29, 1
          %s199 = smul.addr %s198, 288
          %s200 = scalar_lea.vmem [#allocation2], %s199
          %s202 = ssub.s32 4608, 4608
          %203 = vsyncadd %s197, %s202
          %s204 = smul.addr %s19, 36
          %s205 = smul.addr %s204, 128
          %s206 = scalar_lea.hbm %s0, %s205
          %s207 = sshll.u32 %s200, 4
          %s208 = int_to_ptr.vmem [resolvable:$true] %s207
          %213 = dma.hbm_to_vmem [thread:$0]  %s206, 4608, %s208, %s197, 1152, 1152, 72
        $region32: #{tpu_custom_call.1} parent=27 // pred_fallthru
          _
      $region28: #{tpu_custom_call.1} parent=5 // pred_fallthru
        _
      %p214 = scmp.le.s32.totalorder 1, %s19
      %p215 = scmp.lt.s32.totalorder %s19, 3
      %p216 = pnand %p214, %p215
      %p217 = pneg %p216
      // Predicated region
      $region33: #{tpu_custom_call.1} parent=5 // pred_check
        _
      $region34: #{tpu_custom_call.1} parent=5 // pred_check_branch
        %219 = sbr.rel (%p216) target = $region36
      $region35: #{tpu_custom_call.1} parent=5 // pred_region
        %s220 = ssub.s32 %s19, 1
        %s221 = sand.u32 %s32, 1
        %s222 = scalar_lea.sflag [#allocation3], %s221
        %s223 = sand.u32 %s32, 1
        %s224 = smul.addr %s223, 288
        %s225 = scalar_lea.vmem [#allocation2], %s224
        // Predicated region
        $region37: #{tpu_custom_call.1} parent=35 // pred_check
          %p226 = pneg %p45
        $region38: #{tpu_custom_call.1} parent=35 // pred_check_branch
          %228 = sbr.rel (%p226) target = $region40
        $region39: #{tpu_custom_call.1} parent=35 // pred_region
          %229 = dma.done %s222, 4608
        $region40: #{tpu_custom_call.1} parent=35 // pred_fallthru
          _
        // Predicated region
        $region41: #{tpu_custom_call.1} parent=35 // pred_check
          %p230 = pneg %p66
        $region42: #{tpu_custom_call.1} parent=35 // pred_check_branch
          %232 = sbr.rel (%p230) target = $region44
        $region43: #{tpu_custom_call.1} parent=35 // pred_region
          %233 = dma.done [#allocation6], 3584
        $region44: #{tpu_custom_call.1} parent=35 // pred_fallthru
          _
        %s234 = sand.u32 %s32, 1
        %s235 = scalar_lea.sflag [#allocation3], %s234
        %s236 = sand.u32 %s32, 1
        %s237 = smul.addr %s236, 288
        %s238 = scalar_lea.vmem [#allocation2], %s237
        %p239 = pneg %p45
        %p240 = pneg %p42
        %p241 = pneg %p66
        %p242 = pneg %p63
        %p243 = pneg %p87
        %p244 = pneg %p84
        %p245 = pneg %p108
        %p246 = pneg %p105
        %p247 = pneg %p134
        %p248 = pneg %p131
        %s249 = sand.u32 %s121, 1
        %s250 = scalar_lea.sflag [#allocation4], %s249
        %s251 = sand.u32 %s121, 1
        %s252 = smul.addr %s251, 224
        %s253 = scalar_lea.vmem [#allocation7], %s252
        %p254 = pneg %p155
        %p255 = pneg %p152
        %p256 = scmp.eq.s32.totalorder %s24, 0
        // Predicated region
        $region45: #{tpu_custom_call.1} parent=35 // pred_check
          %p257 = pneg %p256
        $region46: #{tpu_custom_call.1} parent=35 // pred_check_branch
          %259 = sbr.rel (%p257) target = $region48
        $region47: #{tpu_custom_call.1} parent=35 // pred_region
          %vm260 = vcmask 15360
          %261 = vst.msk [vmem:[%s5] sm:$0xff] %vm260, 0.0
          %262 = vst.msk [vmem:[%s5 + $0x8] sm:$0xff] %vm260, 0.0
          %263 = vst.msk [vmem:[%s5 + $0x10] sm:$0xff] %vm260, 0.0
          %264 = vst.msk [vmem:[%s5 + $0x18] sm:$0xff] %vm260, 0.0
        $region48: #{tpu_custom_call.1} parent=35 // pred_fallthru
          _
        %v265 = vld [vmem:[%s225] sm:$0xff]
        %v266 = vld [vmem:[%s225 + $0x8] sm:$0xff]
        %v267 = vld [vmem:[%s225 + $0x10] sm:$0xff]
        %v268 = vld [vmem:[%s225 + $0x18] sm:$0xff]
        %v269 = vld [vmem:[%s225 + $0x20] sm:$0xff]
        %v270 = vld [vmem:[%s225 + $0x28] sm:$0xff]
        %v271 = vld [vmem:[%s225 + $0x30] sm:$0xff]
        %v272 = vld [vmem:[%s225 + $0x38] sm:$0xff]
        %v273 = vld [vmem:[%s225 + $0x40] sm:$0xff]
        %v274 = vld [vmem:[%s225 + $0x48] sm:$0xff]
        %v275 = vld [vmem:[%s225 + $0x50] sm:$0xff]
        %v276 = vld [vmem:[%s225 + $0x58] sm:$0xff]
        %v277 = vld [vmem:[%s225 + $0x60] sm:$0xff]
        %v278 = vld [vmem:[%s225 + $0x68] sm:$0xff]
        %v279 = vld [vmem:[%s225 + $0x70] sm:$0xff]
        %v280 = vld [vmem:[%s225 + $0x78] sm:$0xff]
        %v281 = vld [vmem:[%s225 + $0x80] sm:$0xff]
        %v282 = vld [vmem:[%s225 + $0x88] sm:$0xff]
        %v283 = vld [vmem:[%s225 + $0x90] sm:$0xff]
        %v284 = vld [vmem:[%s225 + $0x98] sm:$0xff]
        %v285 = vld [vmem:[%s225 + $0xa0] sm:$0xff]
        %v286 = vld [vmem:[%s225 + $0xa8] sm:$0xff]
        %v287 = vld [vmem:[%s225 + $0xb0] sm:$0xff]
        %v288 = vld [vmem:[%s225 + $0xb8] sm:$0xff]
        %v289 = vld [vmem:[%s225 + $0xc0] sm:$0xff]
        %v290 = vld [vmem:[%s225 + $0xc8] sm:$0xff]
        %v291 = vld [vmem:[%s225 + $0xd0] sm:$0xff]
        %v292 = vld [vmem:[%s225 + $0xd8] sm:$0xff]
        %v293 = vld [vmem:[%s225 + $0xe0] sm:$0xff]
        %v294 = vld [vmem:[%s225 + $0xe8] sm:$0xff]
        %v295 = vld [vmem:[%s225 + $0xf0] sm:$0xff]
        %v296 = vld [vmem:[%s225 + $0xf8] sm:$0xff]
        %v297 = vld [vmem:[%s225 + $0x100] sm:$0xff]
        %v298 = vld [vmem:[%s225 + $0x108] sm:$0xff]
        %v299 = vld [vmem:[%s225 + $0x110] sm:$0xff]
        %v300 = vld [vmem:[%s225 + $0x118] sm:$0xff]
        %v301 = vld [vmem:[#allocation5] sm:$0xff]
        %v302 = vld [vmem:[#allocation5 + $0x8] sm:$0xff]
        %v303 = vld [vmem:[#allocation5 + $0x10] sm:$0xff]
        %v304 = vld [vmem:[#allocation5 + $0x18] sm:$0xff]
        %v305 = vld [vmem:[#allocation5 + $0x20] sm:$0xff]
        %v306 = vld [vmem:[#allocation5 + $0x28] sm:$0xff]
        %v307 = vld [vmem:[#allocation5 + $0x30] sm:$0xff]
        %v308 = vld [vmem:[#allocation5 + $0x38] sm:$0xff]
        %v309 = vld [vmem:[#allocation5 + $0x40] sm:$0xff]
        %v310 = vld [vmem:[#allocation5 + $0x48] sm:$0xff]
        %v311 = vld [vmem:[#allocation5 + $0x50] sm:$0xff]
        %v312 = vld [vmem:[#allocation5 + $0x58] sm:$0xff]
        %v313 = vld [vmem:[#allocation5 + $0x60] sm:$0xff]
        %v314 = vld [vmem:[#allocation5 + $0x68] sm:$0xff]
        %v315 = vld [vmem:[#allocation5 + $0x70] sm:$0xff]
        %v316 = vld [vmem:[#allocation5 + $0x78] sm:$0xff]
        %v317 = vld [vmem:[#allocation5 + $0x80] sm:$0xff]
        %v318 = vld [vmem:[#allocation5 + $0x88] sm:$0xff]
        %v319 = vld [vmem:[#allocation5 + $0x90] sm:$0xff]
        %v320 = vld [vmem:[#allocation5 + $0x98] sm:$0xff]
        %v321 = vld [vmem:[#allocation5 + $0xa0] sm:$0xff]
        %v322 = vld [vmem:[#allocation5 + $0xa8] sm:$0xff]
        %v323 = vld [vmem:[#allocation5 + $0xb0] sm:$0xff]
        %v324 = vld [vmem:[#allocation5 + $0xb8] sm:$0xff]
        %v325 = vld [vmem:[#allocation5 + $0xc0] sm:$0xff]
        %v326 = vld [vmem:[#allocation5 + $0xc8] sm:$0xff]
        %v327 = vld [vmem:[#allocation5 + $0xd0] sm:$0xff]
        %v328 = vld [vmem:[#allocation5 + $0xd8] sm:$0xff]
        %v329 = vld [vmem:[%s2] sm:$0xff]
        %v330 = vld [vmem:[%s2 + $0x8] sm:$0xff]
        %v331 = vld [vmem:[%s2 + $0x10] sm:$0xff]
        %v332 = vld [vmem:[%s2 + $0x18] sm:$0xff]
        %361 = vrot.lane.b32.xlu0 %v265, 127
        %v362 = vpop.permute.xlu0 %361
        %363 = vrot.lane.b32.xlu0 %v266, 127
        %v364 = vpop.permute.xlu0 %363
        %365 = vrot.lane.b32.xlu0 %v267, 127
        %v366 = vpop.permute.xlu0 %365
        %367 = vrot.lane.b32.xlu0 %v268, 127
        %v368 = vpop.permute.xlu0 %367
        %369 = vrot.lane.b32.xlu0 %v269, 127
        %v370 = vpop.permute.xlu0 %369
        %371 = vrot.lane.b32.xlu0 %v270, 127
        %v372 = vpop.permute.xlu0 %371
        %373 = vrot.lane.b32.xlu0 %v271, 127
        %v374 = vpop.permute.xlu0 %373
        %375 = vrot.lane.b32.xlu0 %v274, 127
        %v376 = vpop.permute.xlu0 %375
        %377 = vrot.lane.b32.xlu0 %v275, 127
        %v378 = vpop.permute.xlu0 %377
        %379 = vrot.lane.b32.xlu0 %v276, 127
        %v380 = vpop.permute.xlu0 %379
        %381 = vrot.lane.b32.xlu0 %v277, 127
        %v382 = vpop.permute.xlu0 %381
        %383 = vrot.lane.b32.xlu0 %v278, 127
        %v384 = vpop.permute.xlu0 %383
        %385 = vrot.lane.b32.xlu0 %v279, 127
        %v386 = vpop.permute.xlu0 %385
        %387 = vrot.lane.b32.xlu0 %v280, 127
        %v388 = vpop.permute.xlu0 %387
        %389 = vrot.lane.b32.xlu0 %v283, 127
        %v390 = vpop.permute.xlu0 %389
        %391 = vrot.lane.b32.xlu0 %v284, 127
        %v392 = vpop.permute.xlu0 %391
        %393 = vrot.lane.b32.xlu0 %v285, 127
        %v394 = vpop.permute.xlu0 %393
        %395 = vrot.lane.b32.xlu0 %v286, 127
        %v396 = vpop.permute.xlu0 %395
        %397 = vrot.lane.b32.xlu0 %v287, 127
        %v398 = vpop.permute.xlu0 %397
        %399 = vrot.lane.b32.xlu0 %v288, 127
        %v400 = vpop.permute.xlu0 %399
        %401 = vrot.lane.b32.xlu0 %v289, 127
        %v402 = vpop.permute.xlu0 %401
        %403 = vrot.lane.b32.xlu0 %v292, 127
        %v404 = vpop.permute.xlu0 %403
        %405 = vrot.lane.b32.xlu0 %v293, 127
        %v406 = vpop.permute.xlu0 %405
        %407 = vrot.lane.b32.xlu0 %v294, 127
        %v408 = vpop.permute.xlu0 %407
        %409 = vrot.lane.b32.xlu0 %v295, 127
        %v410 = vpop.permute.xlu0 %409
        %411 = vrot.lane.b32.xlu0 %v296, 127
        %v412 = vpop.permute.xlu0 %411
        %413 = vrot.lane.b32.xlu0 %v297, 127
        %v414 = vpop.permute.xlu0 %413
        %415 = vrot.lane.b32.xlu0 %v298, 127
        %v416 = vpop.permute.xlu0 %415
        %vm417 = vcmask 1039360
        %v418 = vsel %vm417, %v362, %v364
        %v419 = vsel %vm417, %v364, %v366
        %v420 = vsel %vm417, %v366, %v368
        %v421 = vsel %vm417, %v368, %v370
        %v422 = vsel %vm417, %v370, %v372
        %v423 = vsel %vm417, %v372, %v374
        %v424 = vsel %vm417, %v376, %v378
        %v425 = vsel %vm417, %v378, %v380
        %v426 = vsel %vm417, %v380, %v382
        %v427 = vsel %vm417, %v382, %v384
        %v428 = vsel %vm417, %v384, %v386
        %v429 = vsel %vm417, %v386, %v388
        %v430 = vsel %vm417, %v390, %v392
        %v431 = vsel %vm417, %v392, %v394
        %v432 = vsel %vm417, %v394, %v396
        %v433 = vsel %vm417, %v396, %v398
        %v434 = vsel %vm417, %v398, %v400
        %v435 = vsel %vm417, %v400, %v402
        %v436 = vsel %vm417, %v404, %v406
        %v437 = vsel %vm417, %v406, %v408
        %v438 = vsel %vm417, %v408, %v410
        %v439 = vsel %vm417, %v410, %v412
        %v440 = vsel %vm417, %v412, %v414
        %v441 = vsel %vm417, %v414, %v416
        %470 = vrot.lane.b32.xlu0 %v265, 126
        %v471 = vpop.permute.xlu0 %470
        %472 = vrot.lane.b32.xlu0 %v266, 126
        %v473 = vpop.permute.xlu0 %472
        %474 = vrot.lane.b32.xlu0 %v267, 126
        %v475 = vpop.permute.xlu0 %474
        %476 = vrot.lane.b32.xlu0 %v268, 126
        %v477 = vpop.permute.xlu0 %476
        %478 = vrot.lane.b32.xlu0 %v269, 126
        %v479 = vpop.permute.xlu0 %478
        %480 = vrot.lane.b32.xlu0 %v270, 126
        %v481 = vpop.permute.xlu0 %480
        %482 = vrot.lane.b32.xlu0 %v271, 126
        %v483 = vpop.permute.xlu0 %482
        %484 = vrot.lane.b32.xlu0 %v274, 126
        %v485 = vpop.permute.xlu0 %484
        %486 = vrot.lane.b32.xlu0 %v275, 126
        %v487 = vpop.permute.xlu0 %486
        %488 = vrot.lane.b32.xlu0 %v276, 126
        %v489 = vpop.permute.xlu0 %488
        %490 = vrot.lane.b32.xlu0 %v277, 126
        %v491 = vpop.permute.xlu0 %490
        %492 = vrot.lane.b32.xlu0 %v278, 126
        %v493 = vpop.permute.xlu0 %492
        %494 = vrot.lane.b32.xlu0 %v279, 126
        %v495 = vpop.permute.xlu0 %494
        %496 = vrot.lane.b32.xlu0 %v280, 126
        %v497 = vpop.permute.xlu0 %496
        %498 = vrot.lane.b32.xlu0 %v283, 126
        %v499 = vpop.permute.xlu0 %498
        %500 = vrot.lane.b32.xlu0 %v284, 126
        %v501 = vpop.permute.xlu0 %500
        %502 = vrot.lane.b32.xlu0 %v285, 126
        %v503 = vpop.permute.xlu0 %502
        %504 = vrot.lane.b32.xlu0 %v286, 126
        %v505 = vpop.permute.xlu0 %504
        %506 = vrot.lane.b32.xlu0 %v287, 126
        %v507 = vpop.permute.xlu0 %506
        %508 = vrot.lane.b32.xlu0 %v288, 126
        %v509 = vpop.permute.xlu0 %508
        %510 = vrot.lane.b32.xlu0 %v289, 126
        %v511 = vpop.permute.xlu0 %510
        %512 = vrot.lane.b32.xlu0 %v292, 126
        %v513 = vpop.permute.xlu0 %512
        %514 = vrot.lane.b32.xlu0 %v293, 126
        %v515 = vpop.permute.xlu0 %514
        %516 = vrot.lane.b32.xlu0 %v294, 126
        %v517 = vpop.permute.xlu0 %516
        %518 = vrot.lane.b32.xlu0 %v295, 126
        %v519 = vpop.permute.xlu0 %518
        %520 = vrot.lane.b32.xlu0 %v296, 126
        %v521 = vpop.permute.xlu0 %520
        %522 = vrot.lane.b32.xlu0 %v297, 126
        %v523 = vpop.permute.xlu0 %522
        %524 = vrot.lane.b32.xlu0 %v298, 126
        %v525 = vpop.permute.xlu0 %524
        %vm526 = vcmask 1031168
        %v527 = vsel %vm526, %v471, %v473
        %v528 = vsel %vm526, %v473, %v475
        %v529 = vsel %vm526, %v475, %v477
        %v530 = vsel %vm526, %v477, %v479
        %v531 = vsel %vm526, %v479, %v481
        %v532 = vsel %vm526, %v481, %v483
        %v533 = vsel %vm526, %v485, %v487
        %v534 = vsel %vm526, %v487, %v489
        %v535 = vsel %vm526, %v489, %v491
        %v536 = vsel %vm526, %v491, %v493
        %v537 = vsel %vm526, %v493, %v495
        %v538 = vsel %vm526, %v495, %v497
        %v539 = vsel %vm526, %v499, %v501
        %v540 = vsel %vm526, %v501, %v503
        %v541 = vsel %vm526, %v503, %v505
        %v542 = vsel %vm526, %v505, %v507
        %v543 = vsel %vm526, %v507, %v509
        %v544 = vsel %vm526, %v509, %v511
        %v545 = vsel %vm526, %v513, %v515
        %v546 = vsel %vm526, %v515, %v517
        %v547 = vsel %vm526, %v517, %v519
        %v548 = vsel %vm526, %v519, %v521
        %v549 = vsel %vm526, %v521, %v523
        %v550 = vsel %vm526, %v523, %v525
        %579 = vrot.lane.b32.xlu0 %v265, 118
        %v580 = vpop.permute.xlu0 %579
        %581 = vrot.lane.b32.xlu0 %v266, 118
        %v582 = vpop.permute.xlu0 %581
        %583 = vrot.lane.b32.xlu0 %v267, 118
        %v584 = vpop.permute.xlu0 %583
        %585 = vrot.lane.b32.xlu0 %v268, 118
        %v586 = vpop.permute.xlu0 %585
        %587 = vrot.lane.b32.xlu0 %v269, 118
        %v588 = vpop.permute.xlu0 %587
        %589 = vrot.lane.b32.xlu0 %v270, 118
        %v590 = vpop.permute.xlu0 %589
        %591 = vrot.lane.b32.xlu0 %v271, 118
        %v592 = vpop.permute.xlu0 %591
        %593 = vrot.lane.b32.xlu0 %v274, 118
        %v594 = vpop.permute.xlu0 %593
        %595 = vrot.lane.b32.xlu0 %v275, 118
        %v596 = vpop.permute.xlu0 %595
        %597 = vrot.lane.b32.xlu0 %v276, 118
        %v598 = vpop.permute.xlu0 %597
        %599 = vrot.lane.b32.xlu0 %v277, 118
        %v600 = vpop.permute.xlu0 %599
        %601 = vrot.lane.b32.xlu0 %v278, 118
        %v602 = vpop.permute.xlu0 %601
        %603 = vrot.lane.b32.xlu0 %v279, 118
        %v604 = vpop.permute.xlu0 %603
        %605 = vrot.lane.b32.xlu0 %v280, 118
        %v606 = vpop.permute.xlu0 %605
        %607 = vrot.lane.b32.xlu0 %v283, 118
        %v608 = vpop.permute.xlu0 %607
        %609 = vrot.lane.b32.xlu0 %v284, 118
        %v610 = vpop.permute.xlu0 %609
        %611 = vrot.lane.b32.xlu0 %v285, 118
        %v612 = vpop.permute.xlu0 %611
        %613 = vrot.lane.b32.xlu0 %v286, 118
        %v614 = vpop.permute.xlu0 %613
        %615 = vrot.lane.b32.xlu0 %v287, 118
        %v616 = vpop.permute.xlu0 %615
        %617 = vrot.lane.b32.xlu0 %v288, 118
        %v618 = vpop.permute.xlu0 %617
        %619 = vrot.lane.b32.xlu0 %v289, 118
        %v620 = vpop.permute.xlu0 %619
        %621 = vrot.lane.b32.xlu0 %v292, 118
        %v622 = vpop.permute.xlu0 %621
        %623 = vrot.lane.b32.xlu0 %v293, 118
        %v624 = vpop.permute.xlu0 %623
        %625 = vrot.lane.b32.xlu0 %v294, 118
        %v626 = vpop.permute.xlu0 %625
        %627 = vrot.lane.b32.xlu0 %v295, 118
        %v628 = vpop.permute.xlu0 %627
        %629 = vrot.lane.b32.xlu0 %v296, 118
        %v630 = vpop.permute.xlu0 %629
        %631 = vrot.lane.b32.xlu0 %v297, 118
        %v632 = vpop.permute.xlu0 %631
        %633 = vrot.lane.b32.xlu0 %v298, 118
        %v634 = vpop.permute.xlu0 %633
        %vm635 = vcmask 965632
        %v636 = vsel %vm635, %v580, %v582
        %v637 = vsel %vm635, %v582, %v584
        %v638 = vsel %vm635, %v584, %v586
        %v639 = vsel %vm635, %v586, %v588
        %v640 = vsel %vm635, %v588, %v590
        %v641 = vsel %vm635, %v590, %v592
        %v642 = vsel %vm635, %v594, %v596
        %v643 = vsel %vm635, %v596, %v598
        %v644 = vsel %vm635, %v598, %v600
        %v645 = vsel %vm635, %v600, %v602
        %v646 = vsel %vm635, %v602, %v604
        %v647 = vsel %vm635, %v604, %v606
        %v648 = vsel %vm635, %v608, %v610
        %v649 = vsel %vm635, %v610, %v612
        %v650 = vsel %vm635, %v612, %v614
        %v651 = vsel %vm635, %v614, %v616
        %v652 = vsel %vm635, %v616, %v618
        %v653 = vsel %vm635, %v618, %v620
        %v654 = vsel %vm635, %v622, %v624
        %v655 = vsel %vm635, %v624, %v626
        %v656 = vsel %vm635, %v626, %v628
        %v657 = vsel %vm635, %v628, %v630
        %v658 = vsel %vm635, %v630, %v632
        %v659 = vsel %vm635, %v632, %v634
        %688 = vrot.lane.b32.xlu0 %v265, 117
        %v689 = vpop.permute.xlu0 %688
        %690 = vrot.lane.b32.xlu0 %v266, 117
        %v691 = vpop.permute.xlu0 %690
        %692 = vrot.lane.b32.xlu0 %v267, 117
        %v693 = vpop.permute.xlu0 %692
        %694 = vrot.lane.b32.xlu0 %v268, 117
        %v695 = vpop.permute.xlu0 %694
        %696 = vrot.lane.b32.xlu0 %v269, 117
        %v697 = vpop.permute.xlu0 %696
        %698 = vrot.lane.b32.xlu0 %v270, 117
        %v699 = vpop.permute.xlu0 %698
        %700 = vrot.lane.b32.xlu0 %v271, 117
        %v701 = vpop.permute.xlu0 %700
        %702 = vrot.lane.b32.xlu0 %v274, 117
        %v703 = vpop.permute.xlu0 %702
        %704 = vrot.lane.b32.xlu0 %v275, 117
        %v705 = vpop.permute.xlu0 %704
        %706 = vrot.lane.b32.xlu0 %v276, 117
        %v707 = vpop.permute.xlu0 %706
        %708 = vrot.lane.b32.xlu0 %v277, 117
        %v709 = vpop.permute.xlu0 %708
        %710 = vrot.lane.b32.xlu0 %v278, 117
        %v711 = vpop.permute.xlu0 %710
        %712 = vrot.lane.b32.xlu0 %v279, 117
        %v713 = vpop.permute.xlu0 %712
        %714 = vrot.lane.b32.xlu0 %v280, 117
        %v715 = vpop.permute.xlu0 %714
        %716 = vrot.lane.b32.xlu0 %v283, 117
        %v717 = vpop.permute.xlu0 %716
        %718 = vrot.lane.b32.xlu0 %v284, 117
        %v719 = vpop.permute.xlu0 %718
        %720 = vrot.lane.b32.xlu0 %v285, 117
        %v721 = vpop.permute.xlu0 %720
        %722 = vrot.lane.b32.xlu0 %v286, 117
        %v723 = vpop.permute.xlu0 %722
        %724 = vrot.lane.b32.xlu0 %v287, 117
        %v725 = vpop.permute.xlu0 %724
        %726 = vrot.lane.b32.xlu0 %v288, 117
        %v727 = vpop.permute.xlu0 %726
        %728 = vrot.lane.b32.xlu0 %v289, 117
        %v729 = vpop.permute.xlu0 %728
        %730 = vrot.lane.b32.xlu0 %v292, 117
        %v731 = vpop.permute.xlu0 %730
        %732 = vrot.lane.b32.xlu0 %v293, 117
        %v733 = vpop.permute.xlu0 %732
        %734 = vrot.lane.b32.xlu0 %v294, 117
        %v735 = vpop.permute.xlu0 %734
        %736 = vrot.lane.b32.xlu0 %v295, 117
        %v737 = vpop.permute.xlu0 %736
        %738 = vrot.lane.b32.xlu0 %v296, 117
        %v739 = vpop.permute.xlu0 %738
        %740 = vrot.lane.b32.xlu0 %v297, 117
        %v741 = vpop.permute.xlu0 %740
        %742 = vrot.lane.b32.xlu0 %v298, 117
        %v743 = vpop.permute.xlu0 %742
        %vm744 = vcmask 957440
        %v745 = vsel %vm744, %v689, %v691
        %v746 = vsel %vm744, %v691, %v693
        %v747 = vsel %vm744, %v693, %v695
        %v748 = vsel %vm744, %v695, %v697
        %v749 = vsel %vm744, %v697, %v699
        %v750 = vsel %vm744, %v699, %v701
        %v751 = vsel %vm744, %v703, %v705
        %v752 = vsel %vm744, %v705, %v707
        %v753 = vsel %vm744, %v707, %v709
        %v754 = vsel %vm744, %v709, %v711
        %v755 = vsel %vm744, %v711, %v713
        %v756 = vsel %vm744, %v713, %v715
        %v757 = vsel %vm744, %v717, %v719
        %v758 = vsel %vm744, %v719, %v721
        %v759 = vsel %vm744, %v721, %v723
        %v760 = vsel %vm744, %v723, %v725
        %v761 = vsel %vm744, %v725, %v727
        %v762 = vsel %vm744, %v727, %v729
        %v763 = vsel %vm744, %v731, %v733
        %v764 = vsel %vm744, %v733, %v735
        %v765 = vsel %vm744, %v735, %v737
        %v766 = vsel %vm744, %v737, %v739
        %v767 = vsel %vm744, %v739, %v741
        %v768 = vsel %vm744, %v741, %v743
        %797 = vrot.lane.b32.xlu0 %v265, 116
        %v798 = vpop.permute.xlu0 %797
        %799 = vrot.lane.b32.xlu0 %v266, 116
        %v800 = vpop.permute.xlu0 %799
        %801 = vrot.lane.b32.xlu0 %v267, 116
        %v802 = vpop.permute.xlu0 %801
        %803 = vrot.lane.b32.xlu0 %v268, 116
        %v804 = vpop.permute.xlu0 %803
        %805 = vrot.lane.b32.xlu0 %v269, 116
        %v806 = vpop.permute.xlu0 %805
        %807 = vrot.lane.b32.xlu0 %v270, 116
        %v808 = vpop.permute.xlu0 %807
        %809 = vrot.lane.b32.xlu0 %v271, 116
        %v810 = vpop.permute.xlu0 %809
        %811 = vrot.lane.b32.xlu0 %v274, 116
        %v812 = vpop.permute.xlu0 %811
        %813 = vrot.lane.b32.xlu0 %v275, 116
        %v814 = vpop.permute.xlu0 %813
        %815 = vrot.lane.b32.xlu0 %v276, 116
        %v816 = vpop.permute.xlu0 %815
        %817 = vrot.lane.b32.xlu0 %v277, 116
        %v818 = vpop.permute.xlu0 %817
        %819 = vrot.lane.b32.xlu0 %v278, 116
        %v820 = vpop.permute.xlu0 %819
        %821 = vrot.lane.b32.xlu0 %v279, 116
        %v822 = vpop.permute.xlu0 %821
        %823 = vrot.lane.b32.xlu0 %v280, 116
        %v824 = vpop.permute.xlu0 %823
        %825 = vrot.lane.b32.xlu0 %v283, 116
        %v826 = vpop.permute.xlu0 %825
        %827 = vrot.lane.b32.xlu0 %v284, 116
        %v828 = vpop.permute.xlu0 %827
        %829 = vrot.lane.b32.xlu0 %v285, 116
        %v830 = vpop.permute.xlu0 %829
        %831 = vrot.lane.b32.xlu0 %v286, 116
        %v832 = vpop.permute.xlu0 %831
        %833 = vrot.lane.b32.xlu0 %v287, 116
        %v834 = vpop.permute.xlu0 %833
        %835 = vrot.lane.b32.xlu0 %v288, 116
        %v836 = vpop.permute.xlu0 %835
        %837 = vrot.lane.b32.xlu0 %v289, 116
        %v838 = vpop.permute.xlu0 %837
        %839 = vrot.lane.b32.xlu0 %v292, 116
        %v840 = vpop.permute.xlu0 %839
        %841 = vrot.lane.b32.xlu0 %v293, 116
        %v842 = vpop.permute.xlu0 %841
        %843 = vrot.lane.b32.xlu0 %v294, 116
        %v844 = vpop.permute.xlu0 %843
        %845 = vrot.lane.b32.xlu0 %v295, 116
        %v846 = vpop.permute.xlu0 %845
        %847 = vrot.lane.b32.xlu0 %v296, 116
        %v848 = vpop.permute.xlu0 %847
        %849 = vrot.lane.b32.xlu0 %v297, 116
        %v850 = vpop.permute.xlu0 %849
        %851 = vrot.lane.b32.xlu0 %v298, 116
        %v852 = vpop.permute.xlu0 %851
        %vm853 = vcmask 949248
        %v854 = vsel %vm853, %v798, %v800
        %v855 = vsel %vm853, %v800, %v802
        %v856 = vsel %vm853, %v802, %v804
        %v857 = vsel %vm853, %v804, %v806
        %v858 = vsel %vm853, %v806, %v808
        %v859 = vsel %vm853, %v808, %v810
        %v860 = vsel %vm853, %v812, %v814
        %v861 = vsel %vm853, %v814, %v816
        %v862 = vsel %vm853, %v816, %v818
        %v863 = vsel %vm853, %v818, %v820
        %v864 = vsel %vm853, %v820, %v822
        %v865 = vsel %vm853, %v822, %v824
        %v866 = vsel %vm853, %v826, %v828
        %v867 = vsel %vm853, %v828, %v830
        %v868 = vsel %vm853, %v830, %v832
        %v869 = vsel %vm853, %v832, %v834
        %v870 = vsel %vm853, %v834, %v836
        %v871 = vsel %vm853, %v836, %v838
        %v872 = vsel %vm853, %v840, %v842
        %v873 = vsel %vm853, %v842, %v844
        %v874 = vsel %vm853, %v844, %v846
        %v875 = vsel %vm853, %v846, %v848
        %v876 = vsel %vm853, %v848, %v850
        %v877 = vsel %vm853, %v850, %v852
        %906 = vrot.lane.b32.xlu0 %v265, 108
        %v907 = vpop.permute.xlu0 %906
        %908 = vrot.lane.b32.xlu0 %v266, 108
        %v909 = vpop.permute.xlu0 %908
        %910 = vrot.lane.b32.xlu0 %v267, 108
        %v911 = vpop.permute.xlu0 %910
        %912 = vrot.lane.b32.xlu0 %v268, 108
        %v913 = vpop.permute.xlu0 %912
        %914 = vrot.lane.b32.xlu0 %v269, 108
        %v915 = vpop.permute.xlu0 %914
        %916 = vrot.lane.b32.xlu0 %v270, 108
        %v917 = vpop.permute.xlu0 %916
        %918 = vrot.lane.b32.xlu0 %v271, 108
        %v919 = vpop.permute.xlu0 %918
        %920 = vrot.lane.b32.xlu0 %v274, 108
        %v921 = vpop.permute.xlu0 %920
        %922 = vrot.lane.b32.xlu0 %v275, 108
        %v923 = vpop.permute.xlu0 %922
        %924 = vrot.lane.b32.xlu0 %v276, 108
        %v925 = vpop.permute.xlu0 %924
        %926 = vrot.lane.b32.xlu0 %v277, 108
        %v927 = vpop.permute.xlu0 %926
        %928 = vrot.lane.b32.xlu0 %v278, 108
        %v929 = vpop.permute.xlu0 %928
        %930 = vrot.lane.b32.xlu0 %v279, 108
        %v931 = vpop.permute.xlu0 %930
        %932 = vrot.lane.b32.xlu0 %v280, 108
        %v933 = vpop.permute.xlu0 %932
        %934 = vrot.lane.b32.xlu0 %v283, 108
        %v935 = vpop.permute.xlu0 %934
        %936 = vrot.lane.b32.xlu0 %v284, 108
        %v937 = vpop.permute.xlu0 %936
        %938 = vrot.lane.b32.xlu0 %v285, 108
        %v939 = vpop.permute.xlu0 %938
        %940 = vrot.lane.b32.xlu0 %v286, 108
        %v941 = vpop.permute.xlu0 %940
        %942 = vrot.lane.b32.xlu0 %v287, 108
        %v943 = vpop.permute.xlu0 %942
        %944 = vrot.lane.b32.xlu0 %v288, 108
        %v945 = vpop.permute.xlu0 %944
        %946 = vrot.lane.b32.xlu0 %v289, 108
        %v947 = vpop.permute.xlu0 %946
        %948 = vrot.lane.b32.xlu0 %v292, 108
        %v949 = vpop.permute.xlu0 %948
        %950 = vrot.lane.b32.xlu0 %v293, 108
        %v951 = vpop.permute.xlu0 %950
        %952 = vrot.lane.b32.xlu0 %v294, 108
        %v953 = vpop.permute.xlu0 %952
        %954 = vrot.lane.b32.xlu0 %v295, 108
        %v955 = vpop.permute.xlu0 %954
        %956 = vrot.lane.b32.xlu0 %v296, 108
        %v957 = vpop.permute.xlu0 %956
        %958 = vrot.lane.b32.xlu0 %v297, 108
        %v959 = vpop.permute.xlu0 %958
        %960 = vrot.lane.b32.xlu0 %v298, 108
        %v961 = vpop.permute.xlu0 %960
        %vm962 = vcmask 883712
        %v963 = vsel %vm962, %v907, %v909
        %v964 = vsel %vm962, %v909, %v911
        %v965 = vsel %vm962, %v911, %v913
        %v966 = vsel %vm962, %v913, %v915
        %v967 = vsel %vm962, %v915, %v917
        %v968 = vsel %vm962, %v917, %v919
        %v969 = vsel %vm962, %v921, %v923
        %v970 = vsel %vm962, %v923, %v925
        %v971 = vsel %vm962, %v925, %v927
        %v972 = vsel %vm962, %v927, %v929
        %v973 = vsel %vm962, %v929, %v931
        %v974 = vsel %vm962, %v931, %v933
        %v975 = vsel %vm962, %v935, %v937
        %v976 = vsel %vm962, %v937, %v939
        %v977 = vsel %vm962, %v939, %v941
        %v978 = vsel %vm962, %v941, %v943
        %v979 = vsel %vm962, %v943, %v945
        %v980 = vsel %vm962, %v945, %v947
        %v981 = vsel %vm962, %v949, %v951
        %v982 = vsel %vm962, %v951, %v953
        %v983 = vsel %vm962, %v953, %v955
        %v984 = vsel %vm962, %v955, %v957
        %v985 = vsel %vm962, %v957, %v959
        %v986 = vsel %vm962, %v959, %v961
        %1015 = vrot.lane.b32.xlu0 %v265, 107
        %v1016 = vpop.permute.xlu0 %1015
        %1017 = vrot.lane.b32.xlu0 %v266, 107
        %v1018 = vpop.permute.xlu0 %1017
        %1019 = vrot.lane.b32.xlu0 %v267, 107
        %v1020 = vpop.permute.xlu0 %1019
        %1021 = vrot.lane.b32.xlu0 %v268, 107
        %v1022 = vpop.permute.xlu0 %1021
        %1023 = vrot.lane.b32.xlu0 %v269, 107
        %v1024 = vpop.permute.xlu0 %1023
        %1025 = vrot.lane.b32.xlu0 %v270, 107
        %v1026 = vpop.permute.xlu0 %1025
        %1027 = vrot.lane.b32.xlu0 %v271, 107
        %v1028 = vpop.permute.xlu0 %1027
        %1029 = vrot.lane.b32.xlu0 %v274, 107
        %v1030 = vpop.permute.xlu0 %1029
        %1031 = vrot.lane.b32.xlu0 %v275, 107
        %v1032 = vpop.permute.xlu0 %1031
        %1033 = vrot.lane.b32.xlu0 %v276, 107
        %v1034 = vpop.permute.xlu0 %1033
        %1035 = vrot.lane.b32.xlu0 %v277, 107
        %v1036 = vpop.permute.xlu0 %1035
        %1037 = vrot.lane.b32.xlu0 %v278, 107
        %v1038 = vpop.permute.xlu0 %1037
        %1039 = vrot.lane.b32.xlu0 %v279, 107
        %v1040 = vpop.permute.xlu0 %1039
        %1041 = vrot.lane.b32.xlu0 %v280, 107
        %v1042 = vpop.permute.xlu0 %1041
        %1043 = vrot.lane.b32.xlu0 %v283, 107
        %v1044 = vpop.permute.xlu0 %1043
        %1045 = vrot.lane.b32.xlu0 %v284, 107
        %v1046 = vpop.permute.xlu0 %1045
        %1047 = vrot.lane.b32.xlu0 %v285, 107
        %v1048 = vpop.permute.xlu0 %1047
        %1049 = vrot.lane.b32.xlu0 %v286, 107
        %v1050 = vpop.permute.xlu0 %1049
        %1051 = vrot.lane.b32.xlu0 %v287, 107
        %v1052 = vpop.permute.xlu0 %1051
        %1053 = vrot.lane.b32.xlu0 %v288, 107
        %v1054 = vpop.permute.xlu0 %1053
        %1055 = vrot.lane.b32.xlu0 %v289, 107
        %v1056 = vpop.permute.xlu0 %1055
        %1057 = vrot.lane.b32.xlu0 %v292, 107
        %v1058 = vpop.permute.xlu0 %1057
        %1059 = vrot.lane.b32.xlu0 %v293, 107
        %v1060 = vpop.permute.xlu0 %1059
        %1061 = vrot.lane.b32.xlu0 %v294, 107
        %v1062 = vpop.permute.xlu0 %1061
        %1063 = vrot.lane.b32.xlu0 %v295, 107
        %v1064 = vpop.permute.xlu0 %1063
        %1065 = vrot.lane.b32.xlu0 %v296, 107
        %v1066 = vpop.permute.xlu0 %1065
        %1067 = vrot.lane.b32.xlu0 %v297, 107
        %v1068 = vpop.permute.xlu0 %1067
        %1069 = vrot.lane.b32.xlu0 %v298, 107
        %v1070 = vpop.permute.xlu0 %1069
        %vm1071 = vcmask 875520
        %v1072 = vsel %vm1071, %v1016, %v1018
        %v1073 = vsel %vm1071, %v1018, %v1020
        %v1074 = vsel %vm1071, %v1020, %v1022
        %v1075 = vsel %vm1071, %v1022, %v1024
        %v1076 = vsel %vm1071, %v1024, %v1026
        %v1077 = vsel %vm1071, %v1026, %v1028
        %v1078 = vsel %vm1071, %v1030, %v1032
        %v1079 = vsel %vm1071, %v1032, %v1034
        %v1080 = vsel %vm1071, %v1034, %v1036
        %v1081 = vsel %vm1071, %v1036, %v1038
        %v1082 = vsel %vm1071, %v1038, %v1040
        %v1083 = vsel %vm1071, %v1040, %v1042
        %v1084 = vsel %vm1071, %v1044, %v1046
        %v1085 = vsel %vm1071, %v1046, %v1048
        %v1086 = vsel %vm1071, %v1048, %v1050
        %v1087 = vsel %vm1071, %v1050, %v1052
        %v1088 = vsel %vm1071, %v1052, %v1054
        %v1089 = vsel %vm1071, %v1054, %v1056
        %v1090 = vsel %vm1071, %v1058, %v1060
        %v1091 = vsel %vm1071, %v1060, %v1062
        %v1092 = vsel %vm1071, %v1062, %v1064
        %v1093 = vsel %vm1071, %v1064, %v1066
        %v1094 = vsel %vm1071, %v1066, %v1068
        %v1095 = vsel %vm1071, %v1068, %v1070
        %1124 = vrot.lane.b32.xlu0 %v265, 106
        %v1125 = vpop.permute.xlu0 %1124
        %1126 = vrot.lane.b32.xlu0 %v266, 106
        %v1127 = vpop.permute.xlu0 %1126
        %1128 = vrot.lane.b32.xlu0 %v267, 106
        %v1129 = vpop.permute.xlu0 %1128
        %1130 = vrot.lane.b32.xlu0 %v268, 106
        %v1131 = vpop.permute.xlu0 %1130
        %1132 = vrot.lane.b32.xlu0 %v269, 106
        %v1133 = vpop.permute.xlu0 %1132
        %1134 = vrot.lane.b32.xlu0 %v270, 106
        %v1135 = vpop.permute.xlu0 %1134
        %1136 = vrot.lane.b32.xlu0 %v271, 106
        %v1137 = vpop.permute.xlu0 %1136
        %1138 = vrot.lane.b32.xlu0 %v274, 106
        %v1139 = vpop.permute.xlu0 %1138
        %1140 = vrot.lane.b32.xlu0 %v275, 106
        %v1141 = vpop.permute.xlu0 %1140
        %1142 = vrot.lane.b32.xlu0 %v276, 106
        %v1143 = vpop.permute.xlu0 %1142
        %1144 = vrot.lane.b32.xlu0 %v277, 106
        %v1145 = vpop.permute.xlu0 %1144
        %1146 = vrot.lane.b32.xlu0 %v278, 106
        %v1147 = vpop.permute.xlu0 %1146
        %1148 = vrot.lane.b32.xlu0 %v279, 106
        %v1149 = vpop.permute.xlu0 %1148
        %1150 = vrot.lane.b32.xlu0 %v280, 106
        %v1151 = vpop.permute.xlu0 %1150
        %1152 = vrot.lane.b32.xlu0 %v283, 106
        %v1153 = vpop.permute.xlu0 %1152
        %1154 = vrot.lane.b32.xlu0 %v284, 106
        %v1155 = vpop.permute.xlu0 %1154
        %1156 = vrot.lane.b32.xlu0 %v285, 106
        %v1157 = vpop.permute.xlu0 %1156
        %1158 = vrot.lane.b32.xlu0 %v286, 106
        %v1159 = vpop.permute.xlu0 %1158
        %1160 = vrot.lane.b32.xlu0 %v287, 106
        %v1161 = vpop.permute.xlu0 %1160
        %1162 = vrot.lane.b32.xlu0 %v288, 106
        %v1163 = vpop.permute.xlu0 %1162
        %1164 = vrot.lane.b32.xlu0 %v289, 106
        %v1165 = vpop.permute.xlu0 %1164
        %1166 = vrot.lane.b32.xlu0 %v292, 106
        %v1167 = vpop.permute.xlu0 %1166
        %1168 = vrot.lane.b32.xlu0 %v293, 106
        %v1169 = vpop.permute.xlu0 %1168
        %1170 = vrot.lane.b32.xlu0 %v294, 106
        %v1171 = vpop.permute.xlu0 %1170
        %1172 = vrot.lane.b32.xlu0 %v295, 106
        %v1173 = vpop.permute.xlu0 %1172
        %1174 = vrot.lane.b32.xlu0 %v296, 106
        %v1175 = vpop.permute.xlu0 %1174
        %1176 = vrot.lane.b32.xlu0 %v297, 106
        %v1177 = vpop.permute.xlu0 %1176
        %1178 = vrot.lane.b32.xlu0 %v298, 106
        %v1179 = vpop.permute.xlu0 %1178
        %vm1180 = vcmask 867328
        %v1181 = vsel %vm1180, %v1125, %v1127
        %v1182 = vsel %vm1180, %v1127, %v1129
        %v1183 = vsel %vm1180, %v1129, %v1131
        %v1184 = vsel %vm1180, %v1131, %v1133
        %v1185 = vsel %vm1180, %v1133, %v1135
        %v1186 = vsel %vm1180, %v1135, %v1137
        %v1187 = vsel %vm1180, %v1139, %v1141
        %v1188 = vsel %vm1180, %v1141, %v1143
        %v1189 = vsel %vm1180, %v1143, %v1145
        %v1190 = vsel %vm1180, %v1145, %v1147
        %v1191 = vsel %vm1180, %v1147, %v1149
        %v1192 = vsel %vm1180, %v1149, %v1151
        %v1193 = vsel %vm1180, %v1153, %v1155
        %v1194 = vsel %vm1180, %v1155, %v1157
        %v1195 = vsel %vm1180, %v1157, %v1159
        %v1196 = vsel %vm1180, %v1159, %v1161
        %v1197 = vsel %vm1180, %v1161, %v1163
        %v1198 = vsel %vm1180, %v1163, %v1165
        %v1199 = vsel %vm1180, %v1167, %v1169
        %v1200 = vsel %vm1180, %v1169, %v1171
        %v1201 = vsel %vm1180, %v1171, %v1173
        %v1202 = vsel %vm1180, %v1173, %v1175
        %v1203 = vsel %vm1180, %v1175, %v1177
        %v1204 = vsel %vm1180, %v1177, %v1179
        %1237 = vrot.lane.b32.xlu0 %v265, 28
        %v1238 = vpop.permute.xlu0 %1237
        %1239 = vrot.lane.b32.xlu0 %v266, 28
        %v1240 = vpop.permute.xlu0 %1239
        %1241 = vrot.lane.b32.xlu0 %v267, 28
        %v1242 = vpop.permute.xlu0 %1241
        %1243 = vrot.lane.b32.xlu0 %v268, 28
        %v1244 = vpop.permute.xlu0 %1243
        %1245 = vrot.lane.b32.xlu0 %v269, 28
        %v1246 = vpop.permute.xlu0 %1245
        %1247 = vrot.lane.b32.xlu0 %v270, 28
        %v1248 = vpop.permute.xlu0 %1247
        %1249 = vrot.lane.b32.xlu0 %v271, 28
        %v1250 = vpop.permute.xlu0 %1249
        %1251 = vrot.lane.b32.xlu0 %v272, 28
        %v1252 = vpop.permute.xlu0 %1251
        %1253 = vrot.lane.b32.xlu0 %v274, 28
        %v1254 = vpop.permute.xlu0 %1253
        %1255 = vrot.lane.b32.xlu0 %v275, 28
        %v1256 = vpop.permute.xlu0 %1255
        %1257 = vrot.lane.b32.xlu0 %v276, 28
        %v1258 = vpop.permute.xlu0 %1257
        %1259 = vrot.lane.b32.xlu0 %v277, 28
        %v1260 = vpop.permute.xlu0 %1259
        %1261 = vrot.lane.b32.xlu0 %v278, 28
        %v1262 = vpop.permute.xlu0 %1261
        %1263 = vrot.lane.b32.xlu0 %v279, 28
        %v1264 = vpop.permute.xlu0 %1263
        %1265 = vrot.lane.b32.xlu0 %v280, 28
        %v1266 = vpop.permute.xlu0 %1265
        %1267 = vrot.lane.b32.xlu0 %v281, 28
        %v1268 = vpop.permute.xlu0 %1267
        %1269 = vrot.lane.b32.xlu0 %v283, 28
        %v1270 = vpop.permute.xlu0 %1269
        %1271 = vrot.lane.b32.xlu0 %v284, 28
        %v1272 = vpop.permute.xlu0 %1271
        %1273 = vrot.lane.b32.xlu0 %v285, 28
        %v1274 = vpop.permute.xlu0 %1273
        %1275 = vrot.lane.b32.xlu0 %v286, 28
        %v1276 = vpop.permute.xlu0 %1275
        %1277 = vrot.lane.b32.xlu0 %v287, 28
        %v1278 = vpop.permute.xlu0 %1277
        %1279 = vrot.lane.b32.xlu0 %v288, 28
        %v1280 = vpop.permute.xlu0 %1279
        %1281 = vrot.lane.b32.xlu0 %v289, 28
        %v1282 = vpop.permute.xlu0 %1281
        %1283 = vrot.lane.b32.xlu0 %v290, 28
        %v1284 = vpop.permute.xlu0 %1283
        %1285 = vrot.lane.b32.xlu0 %v292, 28
        %v1286 = vpop.permute.xlu0 %1285
        %1287 = vrot.lane.b32.xlu0 %v293, 28
        %v1288 = vpop.permute.xlu0 %1287
        %1289 = vrot.lane.b32.xlu0 %v294, 28
        %v1290 = vpop.permute.xlu0 %1289
        %1291 = vrot.lane.b32.xlu0 %v295, 28
        %v1292 = vpop.permute.xlu0 %1291
        %1293 = vrot.lane.b32.xlu0 %v296, 28
        %v1294 = vpop.permute.xlu0 %1293
        %1295 = vrot.lane.b32.xlu0 %v297, 28
        %v1296 = vpop.permute.xlu0 %1295
        %1297 = vrot.lane.b32.xlu0 %v298, 28
        %v1298 = vpop.permute.xlu0 %1297
        %1299 = vrot.lane.b32.xlu0 %v299, 28
        %v1300 = vpop.permute.xlu0 %1299
        %vm1301 = vcmask 228352
        %v1302 = vsel %vm1301, %v1238, %v1240
        %v1303 = vsel %vm1301, %v1240, %v1242
        %v1304 = vsel %vm1301, %v1242, %v1244
        %v1305 = vsel %vm1301, %v1244, %v1246
        %v1306 = vsel %vm1301, %v1246, %v1248
        %v1307 = vsel %vm1301, %v1248, %v1250
        %v1308 = vsel %vm1301, %v1250, %v1252
        %v1309 = vsel %vm1301, %v1254, %v1256
        %v1310 = vsel %vm1301, %v1256, %v1258
        %v1311 = vsel %vm1301, %v1258, %v1260
        %v1312 = vsel %vm1301, %v1260, %v1262
        %v1313 = vsel %vm1301, %v1262, %v1264
        %v1314 = vsel %vm1301, %v1264, %v1266
        %v1315 = vsel %vm1301, %v1266, %v1268
        %v1316 = vsel %vm1301, %v1270, %v1272
        %v1317 = vsel %vm1301, %v1272, %v1274
        %v1318 = vsel %vm1301, %v1274, %v1276
        %v1319 = vsel %vm1301, %v1276, %v1278
        %v1320 = vsel %vm1301, %v1278, %v1280
        %v1321 = vsel %vm1301, %v1280, %v1282
        %v1322 = vsel %vm1301, %v1282, %v1284
        %v1323 = vsel %vm1301, %v1286, %v1288
        %v1324 = vsel %vm1301, %v1288, %v1290
        %v1325 = vsel %vm1301, %v1290, %v1292
        %v1326 = vsel %vm1301, %v1292, %v1294
        %v1327 = vsel %vm1301, %v1294, %v1296
        %v1328 = vsel %vm1301, %v1296, %v1298
        %v1329 = vsel %vm1301, %v1298, %v1300
        %1358 = vrot.lane.b32.xlu0 %v265, 27
        %v1359 = vpop.permute.xlu0 %1358
        %1360 = vrot.lane.b32.xlu0 %v266, 27
        %v1361 = vpop.permute.xlu0 %1360
        %1362 = vrot.lane.b32.xlu0 %v267, 27
        %v1363 = vpop.permute.xlu0 %1362
        %1364 = vrot.lane.b32.xlu0 %v268, 27
        %v1365 = vpop.permute.xlu0 %1364
        %1366 = vrot.lane.b32.xlu0 %v269, 27
        %v1367 = vpop.permute.xlu0 %1366
        %1368 = vrot.lane.b32.xlu0 %v270, 27
        %v1369 = vpop.permute.xlu0 %1368
        %1370 = vrot.lane.b32.xlu0 %v271, 27
        %v1371 = vpop.permute.xlu0 %1370
        %1372 = vrot.lane.b32.xlu0 %v272, 27
        %v1373 = vpop.permute.xlu0 %1372
        %1374 = vrot.lane.b32.xlu0 %v274, 27
        %v1375 = vpop.permute.xlu0 %1374
        %1376 = vrot.lane.b32.xlu0 %v275, 27
        %v1377 = vpop.permute.xlu0 %1376
        %1378 = vrot.lane.b32.xlu0 %v276, 27
        %v1379 = vpop.permute.xlu0 %1378
        %1380 = vrot.lane.b32.xlu0 %v277, 27
        %v1381 = vpop.permute.xlu0 %1380
        %1382 = vrot.lane.b32.xlu0 %v278, 27
        %v1383 = vpop.permute.xlu0 %1382
        %1384 = vrot.lane.b32.xlu0 %v279, 27
        %v1385 = vpop.permute.xlu0 %1384
        %1386 = vrot.lane.b32.xlu0 %v280, 27
        %v1387 = vpop.permute.xlu0 %1386
        %1388 = vrot.lane.b32.xlu0 %v281, 27
        %v1389 = vpop.permute.xlu0 %1388
        %1390 = vrot.lane.b32.xlu0 %v283, 27
        %v1391 = vpop.permute.xlu0 %1390
        %1392 = vrot.lane.b32.xlu0 %v284, 27
        %v1393 = vpop.permute.xlu0 %1392
        %1394 = vrot.lane.b32.xlu0 %v285, 27
        %v1395 = vpop.permute.xlu0 %1394
        %1396 = vrot.lane.b32.xlu0 %v286, 27
        %v1397 = vpop.permute.xlu0 %1396
        %1398 = vrot.lane.b32.xlu0 %v287, 27
        %v1399 = vpop.permute.xlu0 %1398
        %1400 = vrot.lane.b32.xlu0 %v288, 27
        %v1401 = vpop.permute.xlu0 %1400
        %1402 = vrot.lane.b32.xlu0 %v289, 27
        %v1403 = vpop.permute.xlu0 %1402
        %1404 = vrot.lane.b32.xlu0 %v290, 27
        %v1405 = vpop.permute.xlu0 %1404
        %1406 = vrot.lane.b32.xlu0 %v292, 27
        %v1407 = vpop.permute.xlu0 %1406
        %1408 = vrot.lane.b32.xlu0 %v293, 27
        %v1409 = vpop.permute.xlu0 %1408
        %1410 = vrot.lane.b32.xlu0 %v294, 27
        %v1411 = vpop.permute.xlu0 %1410
        %1412 = vrot.lane.b32.xlu0 %v295, 27
        %v1413 = vpop.permute.xlu0 %1412
        %1414 = vrot.lane.b32.xlu0 %v296, 27
        %v1415 = vpop.permute.xlu0 %1414
        %1416 = vrot.lane.b32.xlu0 %v297, 27
        %v1417 = vpop.permute.xlu0 %1416
        %1418 = vrot.lane.b32.xlu0 %v298, 27
        %v1419 = vpop.permute.xlu0 %1418
        %1420 = vrot.lane.b32.xlu0 %v299, 27
        %v1421 = vpop.permute.xlu0 %1420
        %vm1422 = vcmask 220160
        %v1423 = vsel %vm1422, %v1359, %v1361
        %v1424 = vsel %vm1422, %v1361, %v1363
        %v1425 = vsel %vm1422, %v1363, %v1365
        %v1426 = vsel %vm1422, %v1365, %v1367
        %v1427 = vsel %vm1422, %v1367, %v1369
        %v1428 = vsel %vm1422, %v1369, %v1371
        %v1429 = vsel %vm1422, %v1371, %v1373
        %v1430 = vsel %vm1422, %v1375, %v1377
        %v1431 = vsel %vm1422, %v1377, %v1379
        %v1432 = vsel %vm1422, %v1379, %v1381
        %v1433 = vsel %vm1422, %v1381, %v1383
        %v1434 = vsel %vm1422, %v1383, %v1385
        %v1435 = vsel %vm1422, %v1385, %v1387
        %v1436 = vsel %vm1422, %v1387, %v1389
        %v1437 = vsel %vm1422, %v1391, %v1393
        %v1438 = vsel %vm1422, %v1393, %v1395
        %v1439 = vsel %vm1422, %v1395, %v1397
        %v1440 = vsel %vm1422, %v1397, %v1399
        %v1441 = vsel %vm1422, %v1399, %v1401
        %v1442 = vsel %vm1422, %v1401, %v1403
        %v1443 = vsel %vm1422, %v1403, %v1405
        %v1444 = vsel %vm1422, %v1407, %v1409
        %v1445 = vsel %vm1422, %v1409, %v1411
        %v1446 = vsel %vm1422, %v1411, %v1413
        %v1447 = vsel %vm1422, %v1413, %v1415
        %v1448 = vsel %vm1422, %v1415, %v1417
        %v1449 = vsel %vm1422, %v1417, %v1419
        %v1450 = vsel %vm1422, %v1419, %v1421
        %1479 = vrot.lane.b32.xlu0 %v265, 26
        %v1480 = vpop.permute.xlu0 %1479
        %1481 = vrot.lane.b32.xlu0 %v266, 26
        %v1482 = vpop.permute.xlu0 %1481
        %1483 = vrot.lane.b32.xlu0 %v267, 26
        %v1484 = vpop.permute.xlu0 %1483
        %1485 = vrot.lane.b32.xlu0 %v268, 26
        %v1486 = vpop.permute.xlu0 %1485
        %1487 = vrot.lane.b32.xlu0 %v269, 26
        %v1488 = vpop.permute.xlu0 %1487
        %1489 = vrot.lane.b32.xlu0 %v270, 26
        %v1490 = vpop.permute.xlu0 %1489
        %1491 = vrot.lane.b32.xlu0 %v271, 26
        %v1492 = vpop.permute.xlu0 %1491
        %1493 = vrot.lane.b32.xlu0 %v272, 26
        %v1494 = vpop.permute.xlu0 %1493
        %1495 = vrot.lane.b32.xlu0 %v274, 26
        %v1496 = vpop.permute.xlu0 %1495
        %1497 = vrot.lane.b32.xlu0 %v275, 26
        %v1498 = vpop.permute.xlu0 %1497
        %1499 = vrot.lane.b32.xlu0 %v276, 26
        %v1500 = vpop.permute.xlu0 %1499
        %1501 = vrot.lane.b32.xlu0 %v277, 26
        %v1502 = vpop.permute.xlu0 %1501
        %1503 = vrot.lane.b32.xlu0 %v278, 26
        %v1504 = vpop.permute.xlu0 %1503
        %1505 = vrot.lane.b32.xlu0 %v279, 26
        %v1506 = vpop.permute.xlu0 %1505
        %1507 = vrot.lane.b32.xlu0 %v280, 26
        %v1508 = vpop.permute.xlu0 %1507
        %1509 = vrot.lane.b32.xlu0 %v281, 26
        %v1510 = vpop.permute.xlu0 %1509
        %1511 = vrot.lane.b32.xlu0 %v283, 26
        %v1512 = vpop.permute.xlu0 %1511
        %1513 = vrot.lane.b32.xlu0 %v284, 26
        %v1514 = vpop.permute.xlu0 %1513
        %1515 = vrot.lane.b32.xlu0 %v285, 26
        %v1516 = vpop.permute.xlu0 %1515
        %1517 = vrot.lane.b32.xlu0 %v286, 26
        %v1518 = vpop.permute.xlu0 %1517
        %1519 = vrot.lane.b32.xlu0 %v287, 26
        %v1520 = vpop.permute.xlu0 %1519
        %1521 = vrot.lane.b32.xlu0 %v288, 26
        %v1522 = vpop.permute.xlu0 %1521
        %1523 = vrot.lane.b32.xlu0 %v289, 26
        %v1524 = vpop.permute.xlu0 %1523
        %1525 = vrot.lane.b32.xlu0 %v290, 26
        %v1526 = vpop.permute.xlu0 %1525
        %1527 = vrot.lane.b32.xlu0 %v292, 26
        %v1528 = vpop.permute.xlu0 %1527
        %1529 = vrot.lane.b32.xlu0 %v293, 26
        %v1530 = vpop.permute.xlu0 %1529
        %1531 = vrot.lane.b32.xlu0 %v294, 26
        %v1532 = vpop.permute.xlu0 %1531
        %1533 = vrot.lane.b32.xlu0 %v295, 26
        %v1534 = vpop.permute.xlu0 %1533
        %1535 = vrot.lane.b32.xlu0 %v296, 26
        %v1536 = vpop.permute.xlu0 %1535
        %1537 = vrot.lane.b32.xlu0 %v297, 26
        %v1538 = vpop.permute.xlu0 %1537
        %1539 = vrot.lane.b32.xlu0 %v298, 26
        %v1540 = vpop.permute.xlu0 %1539
        %1541 = vrot.lane.b32.xlu0 %v299, 26
        %v1542 = vpop.permute.xlu0 %1541
        %vm1543 = vcmask 211968
        %v1544 = vsel %vm1543, %v1480, %v1482
        %v1545 = vsel %vm1543, %v1482, %v1484
        %v1546 = vsel %vm1543, %v1484, %v1486
        %v1547 = vsel %vm1543, %v1486, %v1488
        %v1548 = vsel %vm1543, %v1488, %v1490
        %v1549 = vsel %vm1543, %v1490, %v1492
        %v1550 = vsel %vm1543, %v1492, %v1494
        %v1551 = vsel %vm1543, %v1496, %v1498
        %v1552 = vsel %vm1543, %v1498, %v1500
        %v1553 = vsel %vm1543, %v1500, %v1502
        %v1554 = vsel %vm1543, %v1502, %v1504
        %v1555 = vsel %vm1543, %v1504, %v1506
        %v1556 = vsel %vm1543, %v1506, %v1508
        %v1557 = vsel %vm1543, %v1508, %v1510
        %v1558 = vsel %vm1543, %v1512, %v1514
        %v1559 = vsel %vm1543, %v1514, %v1516
        %v1560 = vsel %vm1543, %v1516, %v1518
        %v1561 = vsel %vm1543, %v1518, %v1520
        %v1562 = vsel %vm1543, %v1520, %v1522
        %v1563 = vsel %vm1543, %v1522, %v1524
        %v1564 = vsel %vm1543, %v1524, %v1526
        %v1565 = vsel %vm1543, %v1528, %v1530
        %v1566 = vsel %vm1543, %v1530, %v1532
        %v1567 = vsel %vm1543, %v1532, %v1534
        %v1568 = vsel %vm1543, %v1534, %v1536
        %v1569 = vsel %vm1543, %v1536, %v1538
        %v1570 = vsel %vm1543, %v1538, %v1540
        %v1571 = vsel %vm1543, %v1540, %v1542
        %1600 = vrot.lane.b32.xlu0 %v265, 18
        %v1601 = vpop.permute.xlu0 %1600
        %1602 = vrot.lane.b32.xlu0 %v266, 18
        %v1603 = vpop.permute.xlu0 %1602
        %1604 = vrot.lane.b32.xlu0 %v267, 18
        %v1605 = vpop.permute.xlu0 %1604
        %1606 = vrot.lane.b32.xlu0 %v268, 18
        %v1607 = vpop.permute.xlu0 %1606
        %1608 = vrot.lane.b32.xlu0 %v269, 18
        %v1609 = vpop.permute.xlu0 %1608
        %1610 = vrot.lane.b32.xlu0 %v270, 18
        %v1611 = vpop.permute.xlu0 %1610
        %1612 = vrot.lane.b32.xlu0 %v271, 18
        %v1613 = vpop.permute.xlu0 %1612
        %1614 = vrot.lane.b32.xlu0 %v272, 18
        %v1615 = vpop.permute.xlu0 %1614
        %1616 = vrot.lane.b32.xlu0 %v274, 18
        %v1617 = vpop.permute.xlu0 %1616
        %1618 = vrot.lane.b32.xlu0 %v275, 18
        %v1619 = vpop.permute.xlu0 %1618
        %1620 = vrot.lane.b32.xlu0 %v276, 18
        %v1621 = vpop.permute.xlu0 %1620
        %1622 = vrot.lane.b32.xlu0 %v277, 18
        %v1623 = vpop.permute.xlu0 %1622
        %1624 = vrot.lane.b32.xlu0 %v278, 18
        %v1625 = vpop.permute.xlu0 %1624
        %1626 = vrot.lane.b32.xlu0 %v279, 18
        %v1627 = vpop.permute.xlu0 %1626
        %1628 = vrot.lane.b32.xlu0 %v280, 18
        %v1629 = vpop.permute.xlu0 %1628
        %1630 = vrot.lane.b32.xlu0 %v281, 18
        %v1631 = vpop.permute.xlu0 %1630
        %1632 = vrot.lane.b32.xlu0 %v283, 18
        %v1633 = vpop.permute.xlu0 %1632
        %1634 = vrot.lane.b32.xlu0 %v284, 18
        %v1635 = vpop.permute.xlu0 %1634
        %1636 = vrot.lane.b32.xlu0 %v285, 18
        %v1637 = vpop.permute.xlu0 %1636
        %1638 = vrot.lane.b32.xlu0 %v286, 18
        %v1639 = vpop.permute.xlu0 %1638
        %1640 = vrot.lane.b32.xlu0 %v287, 18
        %v1641 = vpop.permute.xlu0 %1640
        %1642 = vrot.lane.b32.xlu0 %v288, 18
        %v1643 = vpop.permute.xlu0 %1642
        %1644 = vrot.lane.b32.xlu0 %v289, 18
        %v1645 = vpop.permute.xlu0 %1644
        %1646 = vrot.lane.b32.xlu0 %v290, 18
        %v1647 = vpop.permute.xlu0 %1646
        %1648 = vrot.lane.b32.xlu0 %v292, 18
        %v1649 = vpop.permute.xlu0 %1648
        %1650 = vrot.lane.b32.xlu0 %v293, 18
        %v1651 = vpop.permute.xlu0 %1650
        %1652 = vrot.lane.b32.xlu0 %v294, 18
        %v1653 = vpop.permute.xlu0 %1652
        %1654 = vrot.lane.b32.xlu0 %v295, 18
        %v1655 = vpop.permute.xlu0 %1654
        %1656 = vrot.lane.b32.xlu0 %v296, 18
        %v1657 = vpop.permute.xlu0 %1656
        %1658 = vrot.lane.b32.xlu0 %v297, 18
        %v1659 = vpop.permute.xlu0 %1658
        %1660 = vrot.lane.b32.xlu0 %v298, 18
        %v1661 = vpop.permute.xlu0 %1660
        %1662 = vrot.lane.b32.xlu0 %v299, 18
        %v1663 = vpop.permute.xlu0 %1662
        %vm1664 = vcmask 146432
        %v1665 = vsel %vm1664, %v1601, %v1603
        %v1666 = vsel %vm1664, %v1603, %v1605
        %v1667 = vsel %vm1664, %v1605, %v1607
        %v1668 = vsel %vm1664, %v1607, %v1609
        %v1669 = vsel %vm1664, %v1609, %v1611
        %v1670 = vsel %vm1664, %v1611, %v1613
        %v1671 = vsel %vm1664, %v1613, %v1615
        %v1672 = vsel %vm1664, %v1617, %v1619
        %v1673 = vsel %vm1664, %v1619, %v1621
        %v1674 = vsel %vm1664, %v1621, %v1623
        %v1675 = vsel %vm1664, %v1623, %v1625
        %v1676 = vsel %vm1664, %v1625, %v1627
        %v1677 = vsel %vm1664, %v1627, %v1629
        %v1678 = vsel %vm1664, %v1629, %v1631
        %v1679 = vsel %vm1664, %v1633, %v1635
        %v1680 = vsel %vm1664, %v1635, %v1637
        %v1681 = vsel %vm1664, %v1637, %v1639
        %v1682 = vsel %vm1664, %v1639, %v1641
        %v1683 = vsel %vm1664, %v1641, %v1643
        %v1684 = vsel %vm1664, %v1643, %v1645
        %v1685 = vsel %vm1664, %v1645, %v1647
        %v1686 = vsel %vm1664, %v1649, %v1651
        %v1687 = vsel %vm1664, %v1651, %v1653
        %v1688 = vsel %vm1664, %v1653, %v1655
        %v1689 = vsel %vm1664, %v1655, %v1657
        %v1690 = vsel %vm1664, %v1657, %v1659
        %v1691 = vsel %vm1664, %v1659, %v1661
        %v1692 = vsel %vm1664, %v1661, %v1663
        %1721 = vrot.lane.b32.xlu0 %v265, 17
        %v1722 = vpop.permute.xlu0 %1721
        %1723 = vrot.lane.b32.xlu0 %v266, 17
        %v1724 = vpop.permute.xlu0 %1723
        %1725 = vrot.lane.b32.xlu0 %v267, 17
        %v1726 = vpop.permute.xlu0 %1725
        %1727 = vrot.lane.b32.xlu0 %v268, 17
        %v1728 = vpop.permute.xlu0 %1727
        %1729 = vrot.lane.b32.xlu0 %v269, 17
        %v1730 = vpop.permute.xlu0 %1729
        %1731 = vrot.lane.b32.xlu0 %v270, 17
        %v1732 = vpop.permute.xlu0 %1731
        %1733 = vrot.lane.b32.xlu0 %v271, 17
        %v1734 = vpop.permute.xlu0 %1733
        %1735 = vrot.lane.b32.xlu0 %v272, 17
        %v1736 = vpop.permute.xlu0 %1735
        %1737 = vrot.lane.b32.xlu0 %v274, 17
        %v1738 = vpop.permute.xlu0 %1737
        %1739 = vrot.lane.b32.xlu0 %v275, 17
        %v1740 = vpop.permute.xlu0 %1739
        %1741 = vrot.lane.b32.xlu0 %v276, 17
        %v1742 = vpop.permute.xlu0 %1741
        %1743 = vrot.lane.b32.xlu0 %v277, 17
        %v1744 = vpop.permute.xlu0 %1743
        %1745 = vrot.lane.b32.xlu0 %v278, 17
        %v1746 = vpop.permute.xlu0 %1745
        %1747 = vrot.lane.b32.xlu0 %v279, 17
        %v1748 = vpop.permute.xlu0 %1747
        %1749 = vrot.lane.b32.xlu0 %v280, 17
        %v1750 = vpop.permute.xlu0 %1749
        %1751 = vrot.lane.b32.xlu0 %v281, 17
        %v1752 = vpop.permute.xlu0 %1751
        %1753 = vrot.lane.b32.xlu0 %v283, 17
        %v1754 = vpop.permute.xlu0 %1753
        %1755 = vrot.lane.b32.xlu0 %v284, 17
        %v1756 = vpop.permute.xlu0 %1755
        %1757 = vrot.lane.b32.xlu0 %v285, 17
        %v1758 = vpop.permute.xlu0 %1757
        %1759 = vrot.lane.b32.xlu0 %v286, 17
        %v1760 = vpop.permute.xlu0 %1759
        %1761 = vrot.lane.b32.xlu0 %v287, 17
        %v1762 = vpop.permute.xlu0 %1761
        %1763 = vrot.lane.b32.xlu0 %v288, 17
        %v1764 = vpop.permute.xlu0 %1763
        %1765 = vrot.lane.b32.xlu0 %v289, 17
        %v1766 = vpop.permute.xlu0 %1765
        %1767 = vrot.lane.b32.xlu0 %v290, 17
        %v1768 = vpop.permute.xlu0 %1767
        %1769 = vrot.lane.b32.xlu0 %v292, 17
        %v1770 = vpop.permute.xlu0 %1769
        %1771 = vrot.lane.b32.xlu0 %v293, 17
        %v1772 = vpop.permute.xlu0 %1771
        %1773 = vrot.lane.b32.xlu0 %v294, 17
        %v1774 = vpop.permute.xlu0 %1773
        %1775 = vrot.lane.b32.xlu0 %v295, 17
        %v1776 = vpop.permute.xlu0 %1775
        %1777 = vrot.lane.b32.xlu0 %v296, 17
        %v1778 = vpop.permute.xlu0 %1777
        %1779 = vrot.lane.b32.xlu0 %v297, 17
        %v1780 = vpop.permute.xlu0 %1779
        %1781 = vrot.lane.b32.xlu0 %v298, 17
        %v1782 = vpop.permute.xlu0 %1781
        %1783 = vrot.lane.b32.xlu0 %v299, 17
        %v1784 = vpop.permute.xlu0 %1783
        %vm1785 = vcmask 138240
        %v1786 = vsel %vm1785, %v1722, %v1724
        %v1787 = vsel %vm1785, %v1724, %v1726
        %v1788 = vsel %vm1785, %v1726, %v1728
        %v1789 = vsel %vm1785, %v1728, %v1730
        %v1790 = vsel %vm1785, %v1730, %v1732
        %v1791 = vsel %vm1785, %v1732, %v1734
        %v1792 = vsel %vm1785, %v1734, %v1736
        %v1793 = vsel %vm1785, %v1738, %v1740
        %v1794 = vsel %vm1785, %v1740, %v1742
        %v1795 = vsel %vm1785, %v1742, %v1744
        %v1796 = vsel %vm1785, %v1744, %v1746
        %v1797 = vsel %vm1785, %v1746, %v1748
        %v1798 = vsel %vm1785, %v1748, %v1750
        %v1799 = vsel %vm1785, %v1750, %v1752
        %v1800 = vsel %vm1785, %v1754, %v1756
        %v1801 = vsel %vm1785, %v1756, %v1758
        %v1802 = vsel %vm1785, %v1758, %v1760
        %v1803 = vsel %vm1785, %v1760, %v1762
        %v1804 = vsel %vm1785, %v1762, %v1764
        %v1805 = vsel %vm1785, %v1764, %v1766
        %v1806 = vsel %vm1785, %v1766, %v1768
        %v1807 = vsel %vm1785, %v1770, %v1772
        %v1808 = vsel %vm1785, %v1772, %v1774
        %v1809 = vsel %vm1785, %v1774, %v1776
        %v1810 = vsel %vm1785, %v1776, %v1778
        %v1811 = vsel %vm1785, %v1778, %v1780
        %v1812 = vsel %vm1785, %v1780, %v1782
        %v1813 = vsel %vm1785, %v1782, %v1784
        %1842 = vrot.lane.b32.xlu0 %v265, 16
        %v1843 = vpop.permute.xlu0 %1842
        %1844 = vrot.lane.b32.xlu0 %v266, 16
        %v1845 = vpop.permute.xlu0 %1844
        %1846 = vrot.lane.b32.xlu0 %v267, 16
        %v1847 = vpop.permute.xlu0 %1846
        %1848 = vrot.lane.b32.xlu0 %v268, 16
        %v1849 = vpop.permute.xlu0 %1848
        %1850 = vrot.lane.b32.xlu0 %v269, 16
        %v1851 = vpop.permute.xlu0 %1850
        %1852 = vrot.lane.b32.xlu0 %v270, 16
        %v1853 = vpop.permute.xlu0 %1852
        %1854 = vrot.lane.b32.xlu0 %v271, 16
        %v1855 = vpop.permute.xlu0 %1854
        %1856 = vrot.lane.b32.xlu0 %v272, 16
        %v1857 = vpop.permute.xlu0 %1856
        %1858 = vrot.lane.b32.xlu0 %v274, 16
        %v1859 = vpop.permute.xlu0 %1858
        %1860 = vrot.lane.b32.xlu0 %v275, 16
        %v1861 = vpop.permute.xlu0 %1860
        %1862 = vrot.lane.b32.xlu0 %v276, 16
        %v1863 = vpop.permute.xlu0 %1862
        %1864 = vrot.lane.b32.xlu0 %v277, 16
        %v1865 = vpop.permute.xlu0 %1864
        %1866 = vrot.lane.b32.xlu0 %v278, 16
        %v1867 = vpop.permute.xlu0 %1866
        %1868 = vrot.lane.b32.xlu0 %v279, 16
        %v1869 = vpop.permute.xlu0 %1868
        %1870 = vrot.lane.b32.xlu0 %v280, 16
        %v1871 = vpop.permute.xlu0 %1870
        %1872 = vrot.lane.b32.xlu0 %v281, 16
        %v1873 = vpop.permute.xlu0 %1872
        %1874 = vrot.lane.b32.xlu0 %v283, 16
        %v1875 = vpop.permute.xlu0 %1874
        %1876 = vrot.lane.b32.xlu0 %v284, 16
        %v1877 = vpop.permute.xlu0 %1876
        %1878 = vrot.lane.b32.xlu0 %v285, 16
        %v1879 = vpop.permute.xlu0 %1878
        %1880 = vrot.lane.b32.xlu0 %v286, 16
        %v1881 = vpop.permute.xlu0 %1880
        %1882 = vrot.lane.b32.xlu0 %v287, 16
        %v1883 = vpop.permute.xlu0 %1882
        %1884 = vrot.lane.b32.xlu0 %v288, 16
        %v1885 = vpop.permute.xlu0 %1884
        %1886 = vrot.lane.b32.xlu0 %v289, 16
        %v1887 = vpop.permute.xlu0 %1886
        %1888 = vrot.lane.b32.xlu0 %v290, 16
        %v1889 = vpop.permute.xlu0 %1888
        %1890 = vrot.lane.b32.xlu0 %v292, 16
        %v1891 = vpop.permute.xlu0 %1890
        %1892 = vrot.lane.b32.xlu0 %v293, 16
        %v1893 = vpop.permute.xlu0 %1892
        %1894 = vrot.lane.b32.xlu0 %v294, 16
        %v1895 = vpop.permute.xlu0 %1894
        %1896 = vrot.lane.b32.xlu0 %v295, 16
        %v1897 = vpop.permute.xlu0 %1896
        %1898 = vrot.lane.b32.xlu0 %v296, 16
        %v1899 = vpop.permute.xlu0 %1898
        %1900 = vrot.lane.b32.xlu0 %v297, 16
        %v1901 = vpop.permute.xlu0 %1900
        %1902 = vrot.lane.b32.xlu0 %v298, 16
        %v1903 = vpop.permute.xlu0 %1902
        %1904 = vrot.lane.b32.xlu0 %v299, 16
        %v1905 = vpop.permute.xlu0 %1904
        %vm1906 = vcmask 130048
        %v1907 = vsel %vm1906, %v1843, %v1845
        %v1908 = vsel %vm1906, %v1845, %v1847
        %v1909 = vsel %vm1906, %v1847, %v1849
        %v1910 = vsel %vm1906, %v1849, %v1851
        %v1911 = vsel %vm1906, %v1851, %v1853
        %v1912 = vsel %vm1906, %v1853, %v1855
        %v1913 = vsel %vm1906, %v1855, %v1857
        %v1914 = vsel %vm1906, %v1859, %v1861
        %v1915 = vsel %vm1906, %v1861, %v1863
        %v1916 = vsel %vm1906, %v1863, %v1865
        %v1917 = vsel %vm1906, %v1865, %v1867
        %v1918 = vsel %vm1906, %v1867, %v1869
        %v1919 = vsel %vm1906, %v1869, %v1871
        %v1920 = vsel %vm1906, %v1871, %v1873
        %v1921 = vsel %vm1906, %v1875, %v1877
        %v1922 = vsel %vm1906, %v1877, %v1879
        %v1923 = vsel %vm1906, %v1879, %v1881
        %v1924 = vsel %vm1906, %v1881, %v1883
        %v1925 = vsel %vm1906, %v1883, %v1885
        %v1926 = vsel %vm1906, %v1885, %v1887
        %v1927 = vsel %vm1906, %v1887, %v1889
        %v1928 = vsel %vm1906, %v1891, %v1893
        %v1929 = vsel %vm1906, %v1893, %v1895
        %v1930 = vsel %vm1906, %v1895, %v1897
        %v1931 = vsel %vm1906, %v1897, %v1899
        %v1932 = vsel %vm1906, %v1899, %v1901
        %v1933 = vsel %vm1906, %v1901, %v1903
        %v1934 = vsel %vm1906, %v1903, %v1905
        %1963 = vrot.lane.b32.xlu0 %v265, 8
        %v1964 = vpop.permute.xlu0 %1963
        %1965 = vrot.lane.b32.xlu0 %v266, 8
        %v1966 = vpop.permute.xlu0 %1965
        %1967 = vrot.lane.b32.xlu0 %v267, 8
        %v1968 = vpop.permute.xlu0 %1967
        %1969 = vrot.lane.b32.xlu0 %v268, 8
        %v1970 = vpop.permute.xlu0 %1969
        %1971 = vrot.lane.b32.xlu0 %v269, 8
        %v1972 = vpop.permute.xlu0 %1971
        %1973 = vrot.lane.b32.xlu0 %v270, 8
        %v1974 = vpop.permute.xlu0 %1973
        %1975 = vrot.lane.b32.xlu0 %v271, 8
        %v1976 = vpop.permute.xlu0 %1975
        %1977 = vrot.lane.b32.xlu0 %v272, 8
        %v1978 = vpop.permute.xlu0 %1977
        %1979 = vrot.lane.b32.xlu0 %v274, 8
        %v1980 = vpop.permute.xlu0 %1979
        %1981 = vrot.lane.b32.xlu0 %v275, 8
        %v1982 = vpop.permute.xlu0 %1981
        %1983 = vrot.lane.b32.xlu0 %v276, 8
        %v1984 = vpop.permute.xlu0 %1983
        %1985 = vrot.lane.b32.xlu0 %v277, 8
        %v1986 = vpop.permute.xlu0 %1985
        %1987 = vrot.lane.b32.xlu0 %v278, 8
        %v1988 = vpop.permute.xlu0 %1987
        %1989 = vrot.lane.b32.xlu0 %v279, 8
        %v1990 = vpop.permute.xlu0 %1989
        %1991 = vrot.lane.b32.xlu0 %v280, 8
        %v1992 = vpop.permute.xlu0 %1991
        %1993 = vrot.lane.b32.xlu0 %v281, 8
        %v1994 = vpop.permute.xlu0 %1993
        %1995 = vrot.lane.b32.xlu0 %v283, 8
        %v1996 = vpop.permute.xlu0 %1995
        %1997 = vrot.lane.b32.xlu0 %v284, 8
        %v1998 = vpop.permute.xlu0 %1997
        %1999 = vrot.lane.b32.xlu0 %v285, 8
        %v2000 = vpop.permute.xlu0 %1999
        %2001 = vrot.lane.b32.xlu0 %v286, 8
        %v2002 = vpop.permute.xlu0 %2001
        %2003 = vrot.lane.b32.xlu0 %v287, 8
        %v2004 = vpop.permute.xlu0 %2003
        %2005 = vrot.lane.b32.xlu0 %v288, 8
        %v2006 = vpop.permute.xlu0 %2005
        %2007 = vrot.lane.b32.xlu0 %v289, 8
        %v2008 = vpop.permute.xlu0 %2007
        %2009 = vrot.lane.b32.xlu0 %v290, 8
        %v2010 = vpop.permute.xlu0 %2009
        %2011 = vrot.lane.b32.xlu0 %v292, 8
        %v2012 = vpop.permute.xlu0 %2011
        %2013 = vrot.lane.b32.xlu0 %v293, 8
        %v2014 = vpop.permute.xlu0 %2013
        %2015 = vrot.lane.b32.xlu0 %v294, 8
        %v2016 = vpop.permute.xlu0 %2015
        %2017 = vrot.lane.b32.xlu0 %v295, 8
        %v2018 = vpop.permute.xlu0 %2017
        %2019 = vrot.lane.b32.xlu0 %v296, 8
        %v2020 = vpop.permute.xlu0 %2019
        %2021 = vrot.lane.b32.xlu0 %v297, 8
        %v2022 = vpop.permute.xlu0 %2021
        %2023 = vrot.lane.b32.xlu0 %v298, 8
        %v2024 = vpop.permute.xlu0 %2023
        %2025 = vrot.lane.b32.xlu0 %v299, 8
        %v2026 = vpop.permute.xlu0 %2025
        %vm2027 = vcmask 64512
        %v2028 = vsel %vm2027, %v1964, %v1966
        %v2029 = vsel %vm2027, %v1966, %v1968
        %v2030 = vsel %vm2027, %v1968, %v1970
        %v2031 = vsel %vm2027, %v1970, %v1972
        %v2032 = vsel %vm2027, %v1972, %v1974
        %v2033 = vsel %vm2027, %v1974, %v1976
        %v2034 = vsel %vm2027, %v1976, %v1978
        %v2035 = vsel %vm2027, %v1980, %v1982
        %v2036 = vsel %vm2027, %v1982, %v1984
        %v2037 = vsel %vm2027, %v1984, %v1986
        %v2038 = vsel %vm2027, %v1986, %v1988
        %v2039 = vsel %vm2027, %v1988, %v1990
        %v2040 = vsel %vm2027, %v1990, %v1992
        %v2041 = vsel %vm2027, %v1992, %v1994
        %v2042 = vsel %vm2027, %v1996, %v1998
        %v2043 = vsel %vm2027, %v1998, %v2000
        %v2044 = vsel %vm2027, %v2000, %v2002
        %v2045 = vsel %vm2027, %v2002, %v2004
        %v2046 = vsel %vm2027, %v2004, %v2006
        %v2047 = vsel %vm2027, %v2006, %v2008
        %v2048 = vsel %vm2027, %v2008, %v2010
        %v2049 = vsel %vm2027, %v2012, %v2014
        %v2050 = vsel %vm2027, %v2014, %v2016
        %v2051 = vsel %vm2027, %v2016, %v2018
        %v2052 = vsel %vm2027, %v2018, %v2020
        %v2053 = vsel %vm2027, %v2020, %v2022
        %v2054 = vsel %vm2027, %v2022, %v2024
        %v2055 = vsel %vm2027, %v2024, %v2026
        %2084 = vrot.lane.b32.xlu0 %v272, 127
        %v2085 = vpop.permute.xlu0 %2084
        %2086 = vrot.lane.b32.xlu0 %v281, 127
        %v2087 = vpop.permute.xlu0 %2086
        %2088 = vrot.lane.b32.xlu0 %v290, 127
        %v2089 = vpop.permute.xlu0 %2088
        %2090 = vrot.lane.b32.xlu0 %v299, 127
        %v2091 = vpop.permute.xlu0 %2090
        %v2092 = vsel %vm417, %v374, %v2085
        %v2093 = vsel %vm417, %v388, %v2087
        %v2094 = vsel %vm417, %v402, %v2089
        %v2095 = vsel %vm417, %v416, %v2091
        %2096 = vrot.lane.b32.xlu0 %v266, 49
        %v2097 = vpop.permute.xlu0 %2096
        %2098 = vrot.lane.b32.xlu0 %v267, 49
        %v2099 = vpop.permute.xlu0 %2098
        %2100 = vrot.lane.b32.xlu0 %v268, 49
        %v2101 = vpop.permute.xlu0 %2100
        %2102 = vrot.lane.b32.xlu0 %v269, 49
        %v2103 = vpop.permute.xlu0 %2102
        %2104 = vrot.lane.b32.xlu0 %v270, 49
        %v2105 = vpop.permute.xlu0 %2104
        %2106 = vrot.lane.b32.xlu0 %v271, 49
        %v2107 = vpop.permute.xlu0 %2106
        %2108 = vrot.lane.b32.xlu0 %v272, 49
        %v2109 = vpop.permute.xlu0 %2108
        %2110 = vrot.lane.b32.xlu0 %v275, 49
        %v2111 = vpop.permute.xlu0 %2110
        %2112 = vrot.lane.b32.xlu0 %v276, 49
        %v2113 = vpop.permute.xlu0 %2112
        %2114 = vrot.lane.b32.xlu0 %v277, 49
        %v2115 = vpop.permute.xlu0 %2114
        %2116 = vrot.lane.b32.xlu0 %v278, 49
        %v2117 = vpop.permute.xlu0 %2116
        %2118 = vrot.lane.b32.xlu0 %v279, 49
        %v2119 = vpop.permute.xlu0 %2118
        %2120 = vrot.lane.b32.xlu0 %v280, 49
        %v2121 = vpop.permute.xlu0 %2120
        %2122 = vrot.lane.b32.xlu0 %v281, 49
        %v2123 = vpop.permute.xlu0 %2122
        %2124 = vrot.lane.b32.xlu0 %v284, 49
        %v2125 = vpop.permute.xlu0 %2124
        %2126 = vrot.lane.b32.xlu0 %v285, 49
        %v2127 = vpop.permute.xlu0 %2126
        %2128 = vrot.lane.b32.xlu0 %v286, 49
        %v2129 = vpop.permute.xlu0 %2128
        %2130 = vrot.lane.b32.xlu0 %v287, 49
        %v2131 = vpop.permute.xlu0 %2130
        %2132 = vrot.lane.b32.xlu0 %v288, 49
        %v2133 = vpop.permute.xlu0 %2132
        %2134 = vrot.lane.b32.xlu0 %v289, 49
        %v2135 = vpop.permute.xlu0 %2134
        %2136 = vrot.lane.b32.xlu0 %v290, 49
        %v2137 = vpop.permute.xlu0 %2136
        %2138 = vrot.lane.b32.xlu0 %v293, 49
        %v2139 = vpop.permute.xlu0 %2138
        %2140 = vrot.lane.b32.xlu0 %v294, 49
        %v2141 = vpop.permute.xlu0 %2140
        %2142 = vrot.lane.b32.xlu0 %v295, 49
        %v2143 = vpop.permute.xlu0 %2142
        %2144 = vrot.lane.b32.xlu0 %v296, 49
        %v2145 = vpop.permute.xlu0 %2144
        %2146 = vrot.lane.b32.xlu0 %v297, 49
        %v2147 = vpop.permute.xlu0 %2146
        %2148 = vrot.lane.b32.xlu0 %v298, 49
        %v2149 = vpop.permute.xlu0 %2148
        %2150 = vrot.lane.b32.xlu0 %v299, 49
        %v2151 = vpop.permute.xlu0 %2150
        %vm2152 = vcmask 400384
        %v2153 = vsel %vm2152, %v2097, %v2099
        %v2154 = vsel %vm2152, %v2099, %v2101
        %v2155 = vsel %vm2152, %v2101, %v2103
        %v2156 = vsel %vm2152, %v2103, %v2105
        %v2157 = vsel %vm2152, %v2105, %v2107
        %v2158 = vsel %vm2152, %v2107, %v2109
        %v2159 = vsel %vm2152, %v2111, %v2113
        %v2160 = vsel %vm2152, %v2113, %v2115
        %v2161 = vsel %vm2152, %v2115, %v2117
        %v2162 = vsel %vm2152, %v2117, %v2119
        %v2163 = vsel %vm2152, %v2119, %v2121
        %v2164 = vsel %vm2152, %v2121, %v2123
        %v2165 = vsel %vm2152, %v2125, %v2127
        %v2166 = vsel %vm2152, %v2127, %v2129
        %v2167 = vsel %vm2152, %v2129, %v2131
        %v2168 = vsel %vm2152, %v2131, %v2133
        %v2169 = vsel %vm2152, %v2133, %v2135
        %v2170 = vsel %vm2152, %v2135, %v2137
        %v2171 = vsel %vm2152, %v2139, %v2141
        %v2172 = vsel %vm2152, %v2141, %v2143
        %v2173 = vsel %vm2152, %v2143, %v2145
        %v2174 = vsel %vm2152, %v2145, %v2147
        %v2175 = vsel %vm2152, %v2147, %v2149
        %v2176 = vsel %vm2152, %v2149, %v2151
        %2177 = vrot.lane.b32.xlu0 %v266, 48
        %v2178 = vpop.permute.xlu0 %2177
        %2179 = vrot.lane.b32.xlu0 %v267, 48
        %v2180 = vpop.permute.xlu0 %2179
        %2181 = vrot.lane.b32.xlu0 %v268, 48
        %v2182 = vpop.permute.xlu0 %2181
        %2183 = vrot.lane.b32.xlu0 %v269, 48
        %v2184 = vpop.permute.xlu0 %2183
        %2185 = vrot.lane.b32.xlu0 %v270, 48
        %v2186 = vpop.permute.xlu0 %2185
        %2187 = vrot.lane.b32.xlu0 %v271, 48
        %v2188 = vpop.permute.xlu0 %2187
        %2189 = vrot.lane.b32.xlu0 %v272, 48
        %v2190 = vpop.permute.xlu0 %2189
        %2191 = vrot.lane.b32.xlu0 %v275, 48
        %v2192 = vpop.permute.xlu0 %2191
        %2193 = vrot.lane.b32.xlu0 %v276, 48
        %v2194 = vpop.permute.xlu0 %2193
        %2195 = vrot.lane.b32.xlu0 %v277, 48
        %v2196 = vpop.permute.xlu0 %2195
        %2197 = vrot.lane.b32.xlu0 %v278, 48
        %v2198 = vpop.permute.xlu0 %2197
        %2199 = vrot.lane.b32.xlu0 %v279, 48
        %v2200 = vpop.permute.xlu0 %2199
        %2201 = vrot.lane.b32.xlu0 %v280, 48
        %v2202 = vpop.permute.xlu0 %2201
        %2203 = vrot.lane.b32.xlu0 %v281, 48
        %v2204 = vpop.permute.xlu0 %2203
        %2205 = vrot.lane.b32.xlu0 %v284, 48
        %v2206 = vpop.permute.xlu0 %2205
        %2207 = vrot.lane.b32.xlu0 %v285, 48
        %v2208 = vpop.permute.xlu0 %2207
        %2209 = vrot.lane.b32.xlu0 %v286, 48
        %v2210 = vpop.permute.xlu0 %2209
        %2211 = vrot.lane.b32.xlu0 %v287, 48
        %v2212 = vpop.permute.xlu0 %2211
        %2213 = vrot.lane.b32.xlu0 %v288, 48
        %v2214 = vpop.permute.xlu0 %2213
        %2215 = vrot.lane.b32.xlu0 %v289, 48
        %v2216 = vpop.permute.xlu0 %2215
        %2217 = vrot.lane.b32.xlu0 %v290, 48
        %v2218 = vpop.permute.xlu0 %2217
        %2219 = vrot.lane.b32.xlu0 %v293, 48
        %v2220 = vpop.permute.xlu0 %2219
        %2221 = vrot.lane.b32.xlu0 %v294, 48
        %v2222 = vpop.permute.xlu0 %2221
        %2223 = vrot.lane.b32.xlu0 %v295, 48
        %v2224 = vpop.permute.xlu0 %2223
        %2225 = vrot.lane.b32.xlu0 %v296, 48
        %v2226 = vpop.permute.xlu0 %2225
        %2227 = vrot.lane.b32.xlu0 %v297, 48
        %v2228 = vpop.permute.xlu0 %2227
        %2229 = vrot.lane.b32.xlu0 %v298, 48
        %v2230 = vpop.permute.xlu0 %2229
        %2231 = vrot.lane.b32.xlu0 %v299, 48
        %v2232 = vpop.permute.xlu0 %2231
        %vm2233 = vcmask 392192
        %v2234 = vsel %vm2233, %v2178, %v2180
        %v2235 = vsel %vm2233, %v2180, %v2182
        %v2236 = vsel %vm2233, %v2182, %v2184
        %v2237 = vsel %vm2233, %v2184, %v2186
        %v2238 = vsel %vm2233, %v2186, %v2188
        %v2239 = vsel %vm2233, %v2188, %v2190
        %v2240 = vsel %vm2233, %v2192, %v2194
        %v2241 = vsel %vm2233, %v2194, %v2196
        %v2242 = vsel %vm2233, %v2196, %v2198
        %v2243 = vsel %vm2233, %v2198, %v2200
        %v2244 = vsel %vm2233, %v2200, %v2202
        %v2245 = vsel %vm2233, %v2202, %v2204
        %v2246 = vsel %vm2233, %v2206, %v2208
        %v2247 = vsel %vm2233, %v2208, %v2210
        %v2248 = vsel %vm2233, %v2210, %v2212
        %v2249 = vsel %vm2233, %v2212, %v2214
        %v2250 = vsel %vm2233, %v2214, %v2216
        %v2251 = vsel %vm2233, %v2216, %v2218
        %v2252 = vsel %vm2233, %v2220, %v2222
        %v2253 = vsel %vm2233, %v2222, %v2224
        %v2254 = vsel %vm2233, %v2224, %v2226
        %v2255 = vsel %vm2233, %v2226, %v2228
        %v2256 = vsel %vm2233, %v2228, %v2230
        %v2257 = vsel %vm2233, %v2230, %v2232
        %2258 = vrot.lane.b32.xlu0 %v266, 47
        %v2259 = vpop.permute.xlu0 %2258
        %2260 = vrot.lane.b32.xlu0 %v267, 47
        %v2261 = vpop.permute.xlu0 %2260
        %2262 = vrot.lane.b32.xlu0 %v268, 47
        %v2263 = vpop.permute.xlu0 %2262
        %2264 = vrot.lane.b32.xlu0 %v269, 47
        %v2265 = vpop.permute.xlu0 %2264
        %2266 = vrot.lane.b32.xlu0 %v270, 47
        %v2267 = vpop.permute.xlu0 %2266
        %2268 = vrot.lane.b32.xlu0 %v271, 47
        %v2269 = vpop.permute.xlu0 %2268
        %2270 = vrot.lane.b32.xlu0 %v272, 47
        %v2271 = vpop.permute.xlu0 %2270
        %2272 = vrot.lane.b32.xlu0 %v275, 47
        %v2273 = vpop.permute.xlu0 %2272
        %2274 = vrot.lane.b32.xlu0 %v276, 47
        %v2275 = vpop.permute.xlu0 %2274
        %2276 = vrot.lane.b32.xlu0 %v277, 47
        %v2277 = vpop.permute.xlu0 %2276
        %2278 = vrot.lane.b32.xlu0 %v278, 47
        %v2279 = vpop.permute.xlu0 %2278
        %2280 = vrot.lane.b32.xlu0 %v279, 47
        %v2281 = vpop.permute.xlu0 %2280
        %2282 = vrot.lane.b32.xlu0 %v280, 47
        %v2283 = vpop.permute.xlu0 %2282
        %2284 = vrot.lane.b32.xlu0 %v281, 47
        %v2285 = vpop.permute.xlu0 %2284
        %2286 = vrot.lane.b32.xlu0 %v284, 47
        %v2287 = vpop.permute.xlu0 %2286
        %2288 = vrot.lane.b32.xlu0 %v285, 47
        %v2289 = vpop.permute.xlu0 %2288
        %2290 = vrot.lane.b32.xlu0 %v286, 47
        %v2291 = vpop.permute.xlu0 %2290
        %2292 = vrot.lane.b32.xlu0 %v287, 47
        %v2293 = vpop.permute.xlu0 %2292
        %2294 = vrot.lane.b32.xlu0 %v288, 47
        %v2295 = vpop.permute.xlu0 %2294
        %2296 = vrot.lane.b32.xlu0 %v289, 47
        %v2297 = vpop.permute.xlu0 %2296
        %2298 = vrot.lane.b32.xlu0 %v290, 47
        %v2299 = vpop.permute.xlu0 %2298
        %2300 = vrot.lane.b32.xlu0 %v293, 47
        %v2301 = vpop.permute.xlu0 %2300
        %2302 = vrot.lane.b32.xlu0 %v294, 47
        %v2303 = vpop.permute.xlu0 %2302
        %2304 = vrot.lane.b32.xlu0 %v295, 47
        %v2305 = vpop.permute.xlu0 %2304
        %2306 = vrot.lane.b32.xlu0 %v296, 47
        %v2307 = vpop.permute.xlu0 %2306
        %2308 = vrot.lane.b32.xlu0 %v297, 47
        %v2309 = vpop.permute.xlu0 %2308
        %2310 = vrot.lane.b32.xlu0 %v298, 47
        %v2311 = vpop.permute.xlu0 %2310
        %2312 = vrot.lane.b32.xlu0 %v299, 47
        %v2313 = vpop.permute.xlu0 %2312
        %vm2314 = vcmask 384000
        %v2315 = vsel %vm2314, %v2259, %v2261
        %v2316 = vsel %vm2314, %v2261, %v2263
        %v2317 = vsel %vm2314, %v2263, %v2265
        %v2318 = vsel %vm2314, %v2265, %v2267
        %v2319 = vsel %vm2314, %v2267, %v2269
        %v2320 = vsel %vm2314, %v2269, %v2271
        %v2321 = vsel %vm2314, %v2273, %v2275
        %v2322 = vsel %vm2314, %v2275, %v2277
        %v2323 = vsel %vm2314, %v2277, %v2279
        %v2324 = vsel %vm2314, %v2279, %v2281
        %v2325 = vsel %vm2314, %v2281, %v2283
        %v2326 = vsel %vm2314, %v2283, %v2285
        %v2327 = vsel %vm2314, %v2287, %v2289
        %v2328 = vsel %vm2314, %v2289, %v2291
        %v2329 = vsel %vm2314, %v2291, %v2293
        %v2330 = vsel %vm2314, %v2293, %v2295
        %v2331 = vsel %vm2314, %v2295, %v2297
        %v2332 = vsel %vm2314, %v2297, %v2299
        %v2333 = vsel %vm2314, %v2301, %v2303
        %v2334 = vsel %vm2314, %v2303, %v2305
        %v2335 = vsel %vm2314, %v2305, %v2307
        %v2336 = vsel %vm2314, %v2307, %v2309
        %v2337 = vsel %vm2314, %v2309, %v2311
        %v2338 = vsel %vm2314, %v2311, %v2313
        %2343 = vrot.lane.b32.xlu0 %v266, 39
        %v2344 = vpop.permute.xlu0 %2343
        %2345 = vrot.lane.b32.xlu0 %v267, 39
        %v2346 = vpop.permute.xlu0 %2345
        %2347 = vrot.lane.b32.xlu0 %v268, 39
        %v2348 = vpop.permute.xlu0 %2347
        %2349 = vrot.lane.b32.xlu0 %v269, 39
        %v2350 = vpop.permute.xlu0 %2349
        %2351 = vrot.lane.b32.xlu0 %v270, 39
        %v2352 = vpop.permute.xlu0 %2351
        %2353 = vrot.lane.b32.xlu0 %v271, 39
        %v2354 = vpop.permute.xlu0 %2353
        %2355 = vrot.lane.b32.xlu0 %v272, 39
        %v2356 = vpop.permute.xlu0 %2355
        %2357 = vrot.lane.b32.xlu0 %v273, 39
        %v2358 = vpop.permute.xlu0 %2357
        %2359 = vrot.lane.b32.xlu0 %v275, 39
        %v2360 = vpop.permute.xlu0 %2359
        %2361 = vrot.lane.b32.xlu0 %v276, 39
        %v2362 = vpop.permute.xlu0 %2361
        %2363 = vrot.lane.b32.xlu0 %v277, 39
        %v2364 = vpop.permute.xlu0 %2363
        %2365 = vrot.lane.b32.xlu0 %v278, 39
        %v2366 = vpop.permute.xlu0 %2365
        %2367 = vrot.lane.b32.xlu0 %v279, 39
        %v2368 = vpop.permute.xlu0 %2367
        %2369 = vrot.lane.b32.xlu0 %v280, 39
        %v2370 = vpop.permute.xlu0 %2369
        %2371 = vrot.lane.b32.xlu0 %v281, 39
        %v2372 = vpop.permute.xlu0 %2371
        %2373 = vrot.lane.b32.xlu0 %v282, 39
        %v2374 = vpop.permute.xlu0 %2373
        %2375 = vrot.lane.b32.xlu0 %v284, 39
        %v2376 = vpop.permute.xlu0 %2375
        %2377 = vrot.lane.b32.xlu0 %v285, 39
        %v2378 = vpop.permute.xlu0 %2377
        %2379 = vrot.lane.b32.xlu0 %v286, 39
        %v2380 = vpop.permute.xlu0 %2379
        %2381 = vrot.lane.b32.xlu0 %v287, 39
        %v2382 = vpop.permute.xlu0 %2381
        %2383 = vrot.lane.b32.xlu0 %v288, 39
        %v2384 = vpop.permute.xlu0 %2383
        %2385 = vrot.lane.b32.xlu0 %v289, 39
        %v2386 = vpop.permute.xlu0 %2385
        %2387 = vrot.lane.b32.xlu0 %v290, 39
        %v2388 = vpop.permute.xlu0 %2387
        %2389 = vrot.lane.b32.xlu0 %v291, 39
        %v2390 = vpop.permute.xlu0 %2389
        %2391 = vrot.lane.b32.xlu0 %v293, 39
        %v2392 = vpop.permute.xlu0 %2391
        %2393 = vrot.lane.b32.xlu0 %v294, 39
        %v2394 = vpop.permute.xlu0 %2393
        %2395 = vrot.lane.b32.xlu0 %v295, 39
        %v2396 = vpop.permute.xlu0 %2395
        %2397 = vrot.lane.b32.xlu0 %v296, 39
        %v2398 = vpop.permute.xlu0 %2397
        %2399 = vrot.lane.b32.xlu0 %v297, 39
        %v2400 = vpop.permute.xlu0 %2399
        %2401 = vrot.lane.b32.xlu0 %v298, 39
        %v2402 = vpop.permute.xlu0 %2401
        %2403 = vrot.lane.b32.xlu0 %v299, 39
        %v2404 = vpop.permute.xlu0 %2403
        %2405 = vrot.lane.b32.xlu0 %v300, 39
        %v2406 = vpop.permute.xlu0 %2405
        %vm2407 = vcmask 318464
        %v2408 = vsel %vm2407, %v2344, %v2346
        %v2409 = vsel %vm2407, %v2346, %v2348
        %v2410 = vsel %vm2407, %v2348, %v2350
        %v2411 = vsel %vm2407, %v2350, %v2352
        %v2412 = vsel %vm2407, %v2352, %v2354
        %v2413 = vsel %vm2407, %v2354, %v2356
        %v2414 = vsel %vm2407, %v2356, %v2358
        %v2415 = vsel %vm2407, %v2360, %v2362
        %v2416 = vsel %vm2407, %v2362, %v2364
        %v2417 = vsel %vm2407, %v2364, %v2366
        %v2418 = vsel %vm2407, %v2366, %v2368
        %v2419 = vsel %vm2407, %v2368, %v2370
        %v2420 = vsel %vm2407, %v2370, %v2372
        %v2421 = vsel %vm2407, %v2372, %v2374
        %v2422 = vsel %vm2407, %v2376, %v2378
        %v2423 = vsel %vm2407, %v2378, %v2380
        %v2424 = vsel %vm2407, %v2380, %v2382
        %v2425 = vsel %vm2407, %v2382, %v2384
        %v2426 = vsel %vm2407, %v2384, %v2386
        %v2427 = vsel %vm2407, %v2386, %v2388
        %v2428 = vsel %vm2407, %v2388, %v2390
        %v2429 = vsel %vm2407, %v2392, %v2394
        %v2430 = vsel %vm2407, %v2394, %v2396
        %v2431 = vsel %vm2407, %v2396, %v2398
        %v2432 = vsel %vm2407, %v2398, %v2400
        %v2433 = vsel %vm2407, %v2400, %v2402
        %v2434 = vsel %vm2407, %v2402, %v2404
        %v2435 = vsel %vm2407, %v2404, %v2406
        %2436 = vrot.lane.b32.xlu0 %v266, 38
        %v2437 = vpop.permute.xlu0 %2436
        %2438 = vrot.lane.b32.xlu0 %v267, 38
        %v2439 = vpop.permute.xlu0 %2438
        %2440 = vrot.lane.b32.xlu0 %v268, 38
        %v2441 = vpop.permute.xlu0 %2440
        %2442 = vrot.lane.b32.xlu0 %v269, 38
        %v2443 = vpop.permute.xlu0 %2442
        %2444 = vrot.lane.b32.xlu0 %v270, 38
        %v2445 = vpop.permute.xlu0 %2444
        %2446 = vrot.lane.b32.xlu0 %v271, 38
        %v2447 = vpop.permute.xlu0 %2446
        %2448 = vrot.lane.b32.xlu0 %v272, 38
        %v2449 = vpop.permute.xlu0 %2448
        %2450 = vrot.lane.b32.xlu0 %v273, 38
        %v2451 = vpop.permute.xlu0 %2450
        %2452 = vrot.lane.b32.xlu0 %v275, 38
        %v2453 = vpop.permute.xlu0 %2452
        %2454 = vrot.lane.b32.xlu0 %v276, 38
        %v2455 = vpop.permute.xlu0 %2454
        %2456 = vrot.lane.b32.xlu0 %v277, 38
        %v2457 = vpop.permute.xlu0 %2456
        %2458 = vrot.lane.b32.xlu0 %v278, 38
        %v2459 = vpop.permute.xlu0 %2458
        %2460 = vrot.lane.b32.xlu0 %v279, 38
        %v2461 = vpop.permute.xlu0 %2460
        %2462 = vrot.lane.b32.xlu0 %v280, 38
        %v2463 = vpop.permute.xlu0 %2462
        %2464 = vrot.lane.b32.xlu0 %v281, 38
        %v2465 = vpop.permute.xlu0 %2464
        %2466 = vrot.lane.b32.xlu0 %v282, 38
        %v2467 = vpop.permute.xlu0 %2466
        %2468 = vrot.lane.b32.xlu0 %v284, 38
        %v2469 = vpop.permute.xlu0 %2468
        %2470 = vrot.lane.b32.xlu0 %v285, 38
        %v2471 = vpop.permute.xlu0 %2470
        %2472 = vrot.lane.b32.xlu0 %v286, 38
        %v2473 = vpop.permute.xlu0 %2472
        %2474 = vrot.lane.b32.xlu0 %v287, 38
        %v2475 = vpop.permute.xlu0 %2474
        %2476 = vrot.lane.b32.xlu0 %v288, 38
        %v2477 = vpop.permute.xlu0 %2476
        %2478 = vrot.lane.b32.xlu0 %v289, 38
        %v2479 = vpop.permute.xlu0 %2478
        %2480 = vrot.lane.b32.xlu0 %v290, 38
        %v2481 = vpop.permute.xlu0 %2480
        %2482 = vrot.lane.b32.xlu0 %v291, 38
        %v2483 = vpop.permute.xlu0 %2482
        %2484 = vrot.lane.b32.xlu0 %v293, 38
        %v2485 = vpop.permute.xlu0 %2484
        %2486 = vrot.lane.b32.xlu0 %v294, 38
        %v2487 = vpop.permute.xlu0 %2486
        %2488 = vrot.lane.b32.xlu0 %v295, 38
        %v2489 = vpop.permute.xlu0 %2488
        %2490 = vrot.lane.b32.xlu0 %v296, 38
        %v2491 = vpop.permute.xlu0 %2490
        %2492 = vrot.lane.b32.xlu0 %v297, 38
        %v2493 = vpop.permute.xlu0 %2492
        %2494 = vrot.lane.b32.xlu0 %v298, 38
        %v2495 = vpop.permute.xlu0 %2494
        %2496 = vrot.lane.b32.xlu0 %v299, 38
        %v2497 = vpop.permute.xlu0 %2496
        %2498 = vrot.lane.b32.xlu0 %v300, 38
        %v2499 = vpop.permute.xlu0 %2498
        %vm2500 = vcmask 310272
        %v2501 = vsel %vm2500, %v2437, %v2439
        %v2502 = vsel %vm2500, %v2439, %v2441
        %v2503 = vsel %vm2500, %v2441, %v2443
        %v2504 = vsel %vm2500, %v2443, %v2445
        %v2505 = vsel %vm2500, %v2445, %v2447
        %v2506 = vsel %vm2500, %v2447, %v2449
        %v2507 = vsel %vm2500, %v2449, %v2451
        %v2508 = vsel %vm2500, %v2453, %v2455
        %v2509 = vsel %vm2500, %v2455, %v2457
        %v2510 = vsel %vm2500, %v2457, %v2459
        %v2511 = vsel %vm2500, %v2459, %v2461
        %v2512 = vsel %vm2500, %v2461, %v2463
        %v2513 = vsel %vm2500, %v2463, %v2465
        %v2514 = vsel %vm2500, %v2465, %v2467
        %v2515 = vsel %vm2500, %v2469, %v2471
        %v2516 = vsel %vm2500, %v2471, %v2473
        %v2517 = vsel %vm2500, %v2473, %v2475
        %v2518 = vsel %vm2500, %v2475, %v2477
        %v2519 = vsel %vm2500, %v2477, %v2479
        %v2520 = vsel %vm2500, %v2479, %v2481
        %v2521 = vsel %vm2500, %v2481, %v2483
        %v2522 = vsel %vm2500, %v2485, %v2487
        %v2523 = vsel %vm2500, %v2487, %v2489
        %v2524 = vsel %vm2500, %v2489, %v2491
        %v2525 = vsel %vm2500, %v2491, %v2493
        %v2526 = vsel %vm2500, %v2493, %v2495
        %v2527 = vsel %vm2500, %v2495, %v2497
        %v2528 = vsel %vm2500, %v2497, %v2499
        %2529 = vrot.lane.b32.xlu0 %v266, 37
        %v2530 = vpop.permute.xlu0 %2529
        %2531 = vrot.lane.b32.xlu0 %v267, 37
        %v2532 = vpop.permute.xlu0 %2531
        %2533 = vrot.lane.b32.xlu0 %v268, 37
        %v2534 = vpop.permute.xlu0 %2533
        %2535 = vrot.lane.b32.xlu0 %v269, 37
        %v2536 = vpop.permute.xlu0 %2535
        %2537 = vrot.lane.b32.xlu0 %v270, 37
        %v2538 = vpop.permute.xlu0 %2537
        %2539 = vrot.lane.b32.xlu0 %v271, 37
        %v2540 = vpop.permute.xlu0 %2539
        %2541 = vrot.lane.b32.xlu0 %v272, 37
        %v2542 = vpop.permute.xlu0 %2541
        %2543 = vrot.lane.b32.xlu0 %v273, 37
        %v2544 = vpop.permute.xlu0 %2543
        %2545 = vrot.lane.b32.xlu0 %v275, 37
        %v2546 = vpop.permute.xlu0 %2545
        %2547 = vrot.lane.b32.xlu0 %v276, 37
        %v2548 = vpop.permute.xlu0 %2547
        %2549 = vrot.lane.b32.xlu0 %v277, 37
        %v2550 = vpop.permute.xlu0 %2549
        %2551 = vrot.lane.b32.xlu0 %v278, 37
        %v2552 = vpop.permute.xlu0 %2551
        %2553 = vrot.lane.b32.xlu0 %v279, 37
        %v2554 = vpop.permute.xlu0 %2553
        %2555 = vrot.lane.b32.xlu0 %v280, 37
        %v2556 = vpop.permute.xlu0 %2555
        %2557 = vrot.lane.b32.xlu0 %v281, 37
        %v2558 = vpop.permute.xlu0 %2557
        %2559 = vrot.lane.b32.xlu0 %v282, 37
        %v2560 = vpop.permute.xlu0 %2559
        %2561 = vrot.lane.b32.xlu0 %v284, 37
        %v2562 = vpop.permute.xlu0 %2561
        %2563 = vrot.lane.b32.xlu0 %v285, 37
        %v2564 = vpop.permute.xlu0 %2563
        %2565 = vrot.lane.b32.xlu0 %v286, 37
        %v2566 = vpop.permute.xlu0 %2565
        %2567 = vrot.lane.b32.xlu0 %v287, 37
        %v2568 = vpop.permute.xlu0 %2567
        %2569 = vrot.lane.b32.xlu0 %v288, 37
        %v2570 = vpop.permute.xlu0 %2569
        %2571 = vrot.lane.b32.xlu0 %v289, 37
        %v2572 = vpop.permute.xlu0 %2571
        %2573 = vrot.lane.b32.xlu0 %v290, 37
        %v2574 = vpop.permute.xlu0 %2573
        %2575 = vrot.lane.b32.xlu0 %v291, 37
        %v2576 = vpop.permute.xlu0 %2575
        %2577 = vrot.lane.b32.xlu0 %v293, 37
        %v2578 = vpop.permute.xlu0 %2577
        %2579 = vrot.lane.b32.xlu0 %v294, 37
        %v2580 = vpop.permute.xlu0 %2579
        %2581 = vrot.lane.b32.xlu0 %v295, 37
        %v2582 = vpop.permute.xlu0 %2581
        %2583 = vrot.lane.b32.xlu0 %v296, 37
        %v2584 = vpop.permute.xlu0 %2583
        %2585 = vrot.lane.b32.xlu0 %v297, 37
        %v2586 = vpop.permute.xlu0 %2585
        %2587 = vrot.lane.b32.xlu0 %v298, 37
        %v2588 = vpop.permute.xlu0 %2587
        %2589 = vrot.lane.b32.xlu0 %v299, 37
        %v2590 = vpop.permute.xlu0 %2589
        %2591 = vrot.lane.b32.xlu0 %v300, 37
        %v2592 = vpop.permute.xlu0 %2591
        %vm2593 = vcmask 302080
        %v2594 = vsel %vm2593, %v2530, %v2532
        %v2595 = vsel %vm2593, %v2532, %v2534
        %v2596 = vsel %vm2593, %v2534, %v2536
        %v2597 = vsel %vm2593, %v2536, %v2538
        %v2598 = vsel %vm2593, %v2538, %v2540
        %v2599 = vsel %vm2593, %v2540, %v2542
        %v2600 = vsel %vm2593, %v2542, %v2544
        %v2601 = vsel %vm2593, %v2546, %v2548
        %v2602 = vsel %vm2593, %v2548, %v2550
        %v2603 = vsel %vm2593, %v2550, %v2552
        %v2604 = vsel %vm2593, %v2552, %v2554
        %v2605 = vsel %vm2593, %v2554, %v2556
        %v2606 = vsel %vm2593, %v2556, %v2558
        %v2607 = vsel %vm2593, %v2558, %v2560
        %v2608 = vsel %vm2593, %v2562, %v2564
        %v2609 = vsel %vm2593, %v2564, %v2566
        %v2610 = vsel %vm2593, %v2566, %v2568
        %v2611 = vsel %vm2593, %v2568, %v2570
        %v2612 = vsel %vm2593, %v2570, %v2572
        %v2613 = vsel %vm2593, %v2572, %v2574
        %v2614 = vsel %vm2593, %v2574, %v2576
        %v2615 = vsel %vm2593, %v2578, %v2580
        %v2616 = vsel %vm2593, %v2580, %v2582
        %v2617 = vsel %vm2593, %v2582, %v2584
        %v2618 = vsel %vm2593, %v2584, %v2586
        %v2619 = vsel %vm2593, %v2586, %v2588
        %v2620 = vsel %vm2593, %v2588, %v2590
        %v2621 = vsel %vm2593, %v2590, %v2592
        %2622 = vrot.lane.b32.xlu0 %v266, 29
        %v2623 = vpop.permute.xlu0 %2622
        %2624 = vrot.lane.b32.xlu0 %v267, 29
        %v2625 = vpop.permute.xlu0 %2624
        %2626 = vrot.lane.b32.xlu0 %v268, 29
        %v2627 = vpop.permute.xlu0 %2626
        %2628 = vrot.lane.b32.xlu0 %v269, 29
        %v2629 = vpop.permute.xlu0 %2628
        %2630 = vrot.lane.b32.xlu0 %v270, 29
        %v2631 = vpop.permute.xlu0 %2630
        %2632 = vrot.lane.b32.xlu0 %v271, 29
        %v2633 = vpop.permute.xlu0 %2632
        %2634 = vrot.lane.b32.xlu0 %v272, 29
        %v2635 = vpop.permute.xlu0 %2634
        %2636 = vrot.lane.b32.xlu0 %v273, 29
        %v2637 = vpop.permute.xlu0 %2636
        %2638 = vrot.lane.b32.xlu0 %v275, 29
        %v2639 = vpop.permute.xlu0 %2638
        %2640 = vrot.lane.b32.xlu0 %v276, 29
        %v2641 = vpop.permute.xlu0 %2640
        %2642 = vrot.lane.b32.xlu0 %v277, 29
        %v2643 = vpop.permute.xlu0 %2642
        %2644 = vrot.lane.b32.xlu0 %v278, 29
        %v2645 = vpop.permute.xlu0 %2644
        %2646 = vrot.lane.b32.xlu0 %v279, 29
        %v2647 = vpop.permute.xlu0 %2646
        %2648 = vrot.lane.b32.xlu0 %v280, 29
        %v2649 = vpop.permute.xlu0 %2648
        %2650 = vrot.lane.b32.xlu0 %v281, 29
        %v2651 = vpop.permute.xlu0 %2650
        %2652 = vrot.lane.b32.xlu0 %v282, 29
        %v2653 = vpop.permute.xlu0 %2652
        %2654 = vrot.lane.b32.xlu0 %v284, 29
        %v2655 = vpop.permute.xlu0 %2654
        %2656 = vrot.lane.b32.xlu0 %v285, 29
        %v2657 = vpop.permute.xlu0 %2656
        %2658 = vrot.lane.b32.xlu0 %v286, 29
        %v2659 = vpop.permute.xlu0 %2658
        %2660 = vrot.lane.b32.xlu0 %v287, 29
        %v2661 = vpop.permute.xlu0 %2660
        %2662 = vrot.lane.b32.xlu0 %v288, 29
        %v2663 = vpop.permute.xlu0 %2662
        %2664 = vrot.lane.b32.xlu0 %v289, 29
        %v2665 = vpop.permute.xlu0 %2664
        %2666 = vrot.lane.b32.xlu0 %v290, 29
        %v2667 = vpop.permute.xlu0 %2666
        %2668 = vrot.lane.b32.xlu0 %v291, 29
        %v2669 = vpop.permute.xlu0 %2668
        %2670 = vrot.lane.b32.xlu0 %v293, 29
        %v2671 = vpop.permute.xlu0 %2670
        %2672 = vrot.lane.b32.xlu0 %v294, 29
        %v2673 = vpop.permute.xlu0 %2672
        %2674 = vrot.lane.b32.xlu0 %v295, 29
        %v2675 = vpop.permute.xlu0 %2674
        %2676 = vrot.lane.b32.xlu0 %v296, 29
        %v2677 = vpop.permute.xlu0 %2676
        %2678 = vrot.lane.b32.xlu0 %v297, 29
        %v2679 = vpop.permute.xlu0 %2678
        %2680 = vrot.lane.b32.xlu0 %v298, 29
        %v2681 = vpop.permute.xlu0 %2680
        %2682 = vrot.lane.b32.xlu0 %v299, 29
        %v2683 = vpop.permute.xlu0 %2682
        %2684 = vrot.lane.b32.xlu0 %v300, 29
        %v2685 = vpop.permute.xlu0 %2684
        %vm2686 = vcmask 236544
        %v2687 = vsel %vm2686, %v2623, %v2625
        %v2688 = vsel %vm2686, %v2625, %v2627
        %v2689 = vsel %vm2686, %v2627, %v2629
        %v2690 = vsel %vm2686, %v2629, %v2631
        %v2691 = vsel %vm2686, %v2631, %v2633
        %v2692 = vsel %vm2686, %v2633, %v2635
        %v2693 = vsel %vm2686, %v2635, %v2637
        %v2694 = vsel %vm2686, %v2639, %v2641
        %v2695 = vsel %vm2686, %v2641, %v2643
        %v2696 = vsel %vm2686, %v2643, %v2645
        %v2697 = vsel %vm2686, %v2645, %v2647
        %v2698 = vsel %vm2686, %v2647, %v2649
        %v2699 = vsel %vm2686, %v2649, %v2651
        %v2700 = vsel %vm2686, %v2651, %v2653
        %v2701 = vsel %vm2686, %v2655, %v2657
        %v2702 = vsel %vm2686, %v2657, %v2659
        %v2703 = vsel %vm2686, %v2659, %v2661
        %v2704 = vsel %vm2686, %v2661, %v2663
        %v2705 = vsel %vm2686, %v2663, %v2665
        %v2706 = vsel %vm2686, %v2665, %v2667
        %v2707 = vsel %vm2686, %v2667, %v2669
        %v2708 = vsel %vm2686, %v2671, %v2673
        %v2709 = vsel %vm2686, %v2673, %v2675
        %v2710 = vsel %vm2686, %v2675, %v2677
        %v2711 = vsel %vm2686, %v2677, %v2679
        %v2712 = vsel %vm2686, %v2679, %v2681
        %v2713 = vsel %vm2686, %v2681, %v2683
        %v2714 = vsel %vm2686, %v2683, %v2685
        %2715 = vrot.lane.b32.xlu0 %v273, 28
        %v2716 = vpop.permute.xlu0 %2715
        %2717 = vrot.lane.b32.xlu0 %v282, 28
        %v2718 = vpop.permute.xlu0 %2717
        %2719 = vrot.lane.b32.xlu0 %v291, 28
        %v2720 = vpop.permute.xlu0 %2719
        %2721 = vrot.lane.b32.xlu0 %v300, 28
        %v2722 = vpop.permute.xlu0 %2721
        %v2723 = vsel %vm1301, %v1252, %v2716
        %v2724 = vsel %vm1301, %v1268, %v2718
        %v2725 = vsel %vm1301, %v1284, %v2720
        %v2726 = vsel %vm1301, %v1300, %v2722
        %2727 = vrot.lane.b32.xlu0 %v273, 27
        %v2728 = vpop.permute.xlu0 %2727
        %2729 = vrot.lane.b32.xlu0 %v282, 27
        %v2730 = vpop.permute.xlu0 %2729
        %2731 = vrot.lane.b32.xlu0 %v291, 27
        %v2732 = vpop.permute.xlu0 %2731
        %2733 = vrot.lane.b32.xlu0 %v300, 27
        %v2734 = vpop.permute.xlu0 %2733
        %v2735 = vsel %vm1422, %v1373, %v2728
        %v2736 = vsel %vm1422, %v1389, %v2730
        %v2737 = vsel %vm1422, %v1405, %v2732
        %v2738 = vsel %vm1422, %v1421, %v2734
        %2739 = vrot.lane.b32.xlu0 %v265, 7
        %v2740 = vpop.permute.xlu0 %2739
        %2741 = vrot.lane.b32.xlu0 %v266, 7
        %v2742 = vpop.permute.xlu0 %2741
        %2743 = vrot.lane.b32.xlu0 %v267, 7
        %v2744 = vpop.permute.xlu0 %2743
        %2745 = vrot.lane.b32.xlu0 %v268, 7
        %v2746 = vpop.permute.xlu0 %2745
        %2747 = vrot.lane.b32.xlu0 %v269, 7
        %v2748 = vpop.permute.xlu0 %2747
        %2749 = vrot.lane.b32.xlu0 %v270, 7
        %v2750 = vpop.permute.xlu0 %2749
        %2751 = vrot.lane.b32.xlu0 %v271, 7
        %v2752 = vpop.permute.xlu0 %2751
        %2753 = vrot.lane.b32.xlu0 %v272, 7
        %v2754 = vpop.permute.xlu0 %2753
        %2755 = vrot.lane.b32.xlu0 %v274, 7
        %v2756 = vpop.permute.xlu0 %2755
        %2757 = vrot.lane.b32.xlu0 %v275, 7
        %v2758 = vpop.permute.xlu0 %2757
        %2759 = vrot.lane.b32.xlu0 %v276, 7
        %v2760 = vpop.permute.xlu0 %2759
        %2761 = vrot.lane.b32.xlu0 %v277, 7
        %v2762 = vpop.permute.xlu0 %2761
        %2763 = vrot.lane.b32.xlu0 %v278, 7
        %v2764 = vpop.permute.xlu0 %2763
        %2765 = vrot.lane.b32.xlu0 %v279, 7
        %v2766 = vpop.permute.xlu0 %2765
        %2767 = vrot.lane.b32.xlu0 %v280, 7
        %v2768 = vpop.permute.xlu0 %2767
        %2769 = vrot.lane.b32.xlu0 %v281, 7
        %v2770 = vpop.permute.xlu0 %2769
        %2771 = vrot.lane.b32.xlu0 %v283, 7
        %v2772 = vpop.permute.xlu0 %2771
        %2773 = vrot.lane.b32.xlu0 %v284, 7
        %v2774 = vpop.permute.xlu0 %2773
        %2775 = vrot.lane.b32.xlu0 %v285, 7
        %v2776 = vpop.permute.xlu0 %2775
        %2777 = vrot.lane.b32.xlu0 %v286, 7
        %v2778 = vpop.permute.xlu0 %2777
        %2779 = vrot.lane.b32.xlu0 %v287, 7
        %v2780 = vpop.permute.xlu0 %2779
        %2781 = vrot.lane.b32.xlu0 %v288, 7
        %v2782 = vpop.permute.xlu0 %2781
        %2783 = vrot.lane.b32.xlu0 %v289, 7
        %v2784 = vpop.permute.xlu0 %2783
        %2785 = vrot.lane.b32.xlu0 %v290, 7
        %v2786 = vpop.permute.xlu0 %2785
        %2787 = vrot.lane.b32.xlu0 %v292, 7
        %v2788 = vpop.permute.xlu0 %2787
        %2789 = vrot.lane.b32.xlu0 %v293, 7
        %v2790 = vpop.permute.xlu0 %2789
        %2791 = vrot.lane.b32.xlu0 %v294, 7
        %v2792 = vpop.permute.xlu0 %2791
        %2793 = vrot.lane.b32.xlu0 %v295, 7
        %v2794 = vpop.permute.xlu0 %2793
        %2795 = vrot.lane.b32.xlu0 %v296, 7
        %v2796 = vpop.permute.xlu0 %2795
        %2797 = vrot.lane.b32.xlu0 %v297, 7
        %v2798 = vpop.permute.xlu0 %2797
        %2799 = vrot.lane.b32.xlu0 %v298, 7
        %v2800 = vpop.permute.xlu0 %2799
        %2801 = vrot.lane.b32.xlu0 %v299, 7
        %v2802 = vpop.permute.xlu0 %2801
        %2803 = vrot.lane.b32.xlu0 %v418, 7
        %v2804 = vpop.permute.xlu0 %2803
        %2805 = vrot.lane.b32.xlu0 %v419, 7
        %v2806 = vpop.permute.xlu0 %2805
        %2807 = vrot.lane.b32.xlu0 %v420, 7
        %v2808 = vpop.permute.xlu0 %2807
        %2809 = vrot.lane.b32.xlu0 %v421, 7
        %v2810 = vpop.permute.xlu0 %2809
        %2811 = vrot.lane.b32.xlu0 %v422, 7
        %v2812 = vpop.permute.xlu0 %2811
        %2813 = vrot.lane.b32.xlu0 %v423, 7
        %v2814 = vpop.permute.xlu0 %2813
        %2815 = vrot.lane.b32.xlu0 %v2092, 7
        %v2816 = vpop.permute.xlu0 %2815
        %2817 = vrot.lane.b32.xlu0 %v2085, 7
        %v2818 = vpop.permute.xlu0 %2817
        %2819 = vrot.lane.b32.xlu0 %v424, 7
        %v2820 = vpop.permute.xlu0 %2819
        %2821 = vrot.lane.b32.xlu0 %v425, 7
        %v2822 = vpop.permute.xlu0 %2821
        %2823 = vrot.lane.b32.xlu0 %v426, 7
        %v2824 = vpop.permute.xlu0 %2823
        %2825 = vrot.lane.b32.xlu0 %v427, 7
        %v2826 = vpop.permute.xlu0 %2825
        %2827 = vrot.lane.b32.xlu0 %v428, 7
        %v2828 = vpop.permute.xlu0 %2827
        %2829 = vrot.lane.b32.xlu0 %v429, 7
        %v2830 = vpop.permute.xlu0 %2829
        %2831 = vrot.lane.b32.xlu0 %v2093, 7
        %v2832 = vpop.permute.xlu0 %2831
        %2833 = vrot.lane.b32.xlu0 %v2087, 7
        %v2834 = vpop.permute.xlu0 %2833
        %2835 = vrot.lane.b32.xlu0 %v430, 7
        %v2836 = vpop.permute.xlu0 %2835
        %2837 = vrot.lane.b32.xlu0 %v431, 7
        %v2838 = vpop.permute.xlu0 %2837
        %2839 = vrot.lane.b32.xlu0 %v432, 7
        %v2840 = vpop.permute.xlu0 %2839
        %2841 = vrot.lane.b32.xlu0 %v433, 7
        %v2842 = vpop.permute.xlu0 %2841
        %2843 = vrot.lane.b32.xlu0 %v434, 7
        %v2844 = vpop.permute.xlu0 %2843
        %2845 = vrot.lane.b32.xlu0 %v435, 7
        %v2846 = vpop.permute.xlu0 %2845
        %2847 = vrot.lane.b32.xlu0 %v2094, 7
        %v2848 = vpop.permute.xlu0 %2847
        %2849 = vrot.lane.b32.xlu0 %v2089, 7
        %v2850 = vpop.permute.xlu0 %2849
        %2851 = vrot.lane.b32.xlu0 %v436, 7
        %v2852 = vpop.permute.xlu0 %2851
        %2853 = vrot.lane.b32.xlu0 %v437, 7
        %v2854 = vpop.permute.xlu0 %2853
        %2855 = vrot.lane.b32.xlu0 %v438, 7
        %v2856 = vpop.permute.xlu0 %2855
        %2857 = vrot.lane.b32.xlu0 %v439, 7
        %v2858 = vpop.permute.xlu0 %2857
        %2859 = vrot.lane.b32.xlu0 %v440, 7
        %v2860 = vpop.permute.xlu0 %2859
        %2861 = vrot.lane.b32.xlu0 %v441, 7
        %v2862 = vpop.permute.xlu0 %2861
        %2863 = vrot.lane.b32.xlu0 %v2095, 7
        %v2864 = vpop.permute.xlu0 %2863
        %2865 = vrot.lane.b32.xlu0 %v2091, 7
        %v2866 = vpop.permute.xlu0 %2865
        %2867 = vrot.lane.b32.xlu0 %v2097, 7
        %v2868 = vpop.permute.xlu0 %2867
        %2869 = vrot.lane.b32.xlu0 %v2153, 7
        %v2870 = vpop.permute.xlu0 %2869
        %2871 = vrot.lane.b32.xlu0 %v2154, 7
        %v2872 = vpop.permute.xlu0 %2871
        %2873 = vrot.lane.b32.xlu0 %v2155, 7
        %v2874 = vpop.permute.xlu0 %2873
        %2875 = vrot.lane.b32.xlu0 %v2156, 7
        %v2876 = vpop.permute.xlu0 %2875
        %2877 = vrot.lane.b32.xlu0 %v2157, 7
        %v2878 = vpop.permute.xlu0 %2877
        %2879 = vrot.lane.b32.xlu0 %v2158, 7
        %v2880 = vpop.permute.xlu0 %2879
        %2881 = vrot.lane.b32.xlu0 %v2109, 7
        %v2882 = vpop.permute.xlu0 %2881
        %2883 = vrot.lane.b32.xlu0 %v2111, 7
        %v2884 = vpop.permute.xlu0 %2883
        %2885 = vrot.lane.b32.xlu0 %v2159, 7
        %v2886 = vpop.permute.xlu0 %2885
        %2887 = vrot.lane.b32.xlu0 %v2160, 7
        %v2888 = vpop.permute.xlu0 %2887
        %2889 = vrot.lane.b32.xlu0 %v2161, 7
        %v2890 = vpop.permute.xlu0 %2889
        %2891 = vrot.lane.b32.xlu0 %v2162, 7
        %v2892 = vpop.permute.xlu0 %2891
        %2893 = vrot.lane.b32.xlu0 %v2163, 7
        %v2894 = vpop.permute.xlu0 %2893
        %2895 = vrot.lane.b32.xlu0 %v2164, 7
        %v2896 = vpop.permute.xlu0 %2895
        %2897 = vrot.lane.b32.xlu0 %v2123, 7
        %v2898 = vpop.permute.xlu0 %2897
        %2899 = vrot.lane.b32.xlu0 %v2125, 7
        %v2900 = vpop.permute.xlu0 %2899
        %2901 = vrot.lane.b32.xlu0 %v2165, 7
        %v2902 = vpop.permute.xlu0 %2901
        %2903 = vrot.lane.b32.xlu0 %v2166, 7
        %v2904 = vpop.permute.xlu0 %2903
        %2905 = vrot.lane.b32.xlu0 %v2167, 7
        %v2906 = vpop.permute.xlu0 %2905
        %2907 = vrot.lane.b32.xlu0 %v2168, 7
        %v2908 = vpop.permute.xlu0 %2907
        %2909 = vrot.lane.b32.xlu0 %v2169, 7
        %v2910 = vpop.permute.xlu0 %2909
        %2911 = vrot.lane.b32.xlu0 %v2170, 7
        %v2912 = vpop.permute.xlu0 %2911
        %2913 = vrot.lane.b32.xlu0 %v2137, 7
        %v2914 = vpop.permute.xlu0 %2913
        %2915 = vrot.lane.b32.xlu0 %v2139, 7
        %v2916 = vpop.permute.xlu0 %2915
        %2917 = vrot.lane.b32.xlu0 %v2171, 7
        %v2918 = vpop.permute.xlu0 %2917
        %2919 = vrot.lane.b32.xlu0 %v2172, 7
        %v2920 = vpop.permute.xlu0 %2919
        %2921 = vrot.lane.b32.xlu0 %v2173, 7
        %v2922 = vpop.permute.xlu0 %2921
        %2923 = vrot.lane.b32.xlu0 %v2174, 7
        %v2924 = vpop.permute.xlu0 %2923
        %2925 = vrot.lane.b32.xlu0 %v2175, 7
        %v2926 = vpop.permute.xlu0 %2925
        %2927 = vrot.lane.b32.xlu0 %v2176, 7
        %v2928 = vpop.permute.xlu0 %2927
        %2929 = vrot.lane.b32.xlu0 %v2151, 7
        %v2930 = vpop.permute.xlu0 %2929
        %2931 = vrot.lane.b32.xlu0 %v2178, 7
        %v2932 = vpop.permute.xlu0 %2931
        %2933 = vrot.lane.b32.xlu0 %v2234, 7
        %v2934 = vpop.permute.xlu0 %2933
        %2935 = vrot.lane.b32.xlu0 %v2235, 7
        %v2936 = vpop.permute.xlu0 %2935
        %2937 = vrot.lane.b32.xlu0 %v2236, 7
        %v2938 = vpop.permute.xlu0 %2937
        %2939 = vrot.lane.b32.xlu0 %v2237, 7
        %v2940 = vpop.permute.xlu0 %2939
        %2941 = vrot.lane.b32.xlu0 %v2238, 7
        %v2942 = vpop.permute.xlu0 %2941
        %2943 = vrot.lane.b32.xlu0 %v2239, 7
        %v2944 = vpop.permute.xlu0 %2943
        %2945 = vrot.lane.b32.xlu0 %v2190, 7
        %v2946 = vpop.permute.xlu0 %2945
        %2947 = vrot.lane.b32.xlu0 %v2192, 7
        %v2948 = vpop.permute.xlu0 %2947
        %2949 = vrot.lane.b32.xlu0 %v2240, 7
        %v2950 = vpop.permute.xlu0 %2949
        %2951 = vrot.lane.b32.xlu0 %v2241, 7
        %v2952 = vpop.permute.xlu0 %2951
        %2953 = vrot.lane.b32.xlu0 %v2242, 7
        %v2954 = vpop.permute.xlu0 %2953
        %2955 = vrot.lane.b32.xlu0 %v2243, 7
        %v2956 = vpop.permute.xlu0 %2955
        %2957 = vrot.lane.b32.xlu0 %v2244, 7
        %v2958 = vpop.permute.xlu0 %2957
        %2959 = vrot.lane.b32.xlu0 %v2245, 7
        %v2960 = vpop.permute.xlu0 %2959
        %2961 = vrot.lane.b32.xlu0 %v2204, 7
        %v2962 = vpop.permute.xlu0 %2961
        %2963 = vrot.lane.b32.xlu0 %v2206, 7
        %v2964 = vpop.permute.xlu0 %2963
        %2965 = vrot.lane.b32.xlu0 %v2246, 7
        %v2966 = vpop.permute.xlu0 %2965
        %2967 = vrot.lane.b32.xlu0 %v2247, 7
        %v2968 = vpop.permute.xlu0 %2967
        %2969 = vrot.lane.b32.xlu0 %v2248, 7
        %v2970 = vpop.permute.xlu0 %2969
        %2971 = vrot.lane.b32.xlu0 %v2249, 7
        %v2972 = vpop.permute.xlu0 %2971
        %2973 = vrot.lane.b32.xlu0 %v2250, 7
        %v2974 = vpop.permute.xlu0 %2973
        %2975 = vrot.lane.b32.xlu0 %v2251, 7
        %v2976 = vpop.permute.xlu0 %2975
        %2977 = vrot.lane.b32.xlu0 %v2218, 7
        %v2978 = vpop.permute.xlu0 %2977
        %2979 = vrot.lane.b32.xlu0 %v2220, 7
        %v2980 = vpop.permute.xlu0 %2979
        %2981 = vrot.lane.b32.xlu0 %v2252, 7
        %v2982 = vpop.permute.xlu0 %2981
        %2983 = vrot.lane.b32.xlu0 %v2253, 7
        %v2984 = vpop.permute.xlu0 %2983
        %2985 = vrot.lane.b32.xlu0 %v2254, 7
        %v2986 = vpop.permute.xlu0 %2985
        %2987 = vrot.lane.b32.xlu0 %v2255, 7
        %v2988 = vpop.permute.xlu0 %2987
        %2989 = vrot.lane.b32.xlu0 %v2256, 7
        %v2990 = vpop.permute.xlu0 %2989
        %2991 = vrot.lane.b32.xlu0 %v2257, 7
        %v2992 = vpop.permute.xlu0 %2991
        %2993 = vrot.lane.b32.xlu0 %v2232, 7
        %v2994 = vpop.permute.xlu0 %2993
        %2995 = vrot.lane.b32.xlu0 %v2259, 7
        %v2996 = vpop.permute.xlu0 %2995
        %2997 = vrot.lane.b32.xlu0 %v2315, 7
        %v2998 = vpop.permute.xlu0 %2997
        %2999 = vrot.lane.b32.xlu0 %v2316, 7
        %v3000 = vpop.permute.xlu0 %2999
        %3001 = vrot.lane.b32.xlu0 %v2317, 7
        %v3002 = vpop.permute.xlu0 %3001
        %3003 = vrot.lane.b32.xlu0 %v2318, 7
        %v3004 = vpop.permute.xlu0 %3003
        %3005 = vrot.lane.b32.xlu0 %v2319, 7
        %v3006 = vpop.permute.xlu0 %3005
        %3007 = vrot.lane.b32.xlu0 %v2320, 7
        %v3008 = vpop.permute.xlu0 %3007
        %3009 = vrot.lane.b32.xlu0 %v2271, 7
        %v3010 = vpop.permute.xlu0 %3009
        %3011 = vrot.lane.b32.xlu0 %v2273, 7
        %v3012 = vpop.permute.xlu0 %3011
        %3013 = vrot.lane.b32.xlu0 %v2321, 7
        %v3014 = vpop.permute.xlu0 %3013
        %3015 = vrot.lane.b32.xlu0 %v2322, 7
        %v3016 = vpop.permute.xlu0 %3015
        %3017 = vrot.lane.b32.xlu0 %v2323, 7
        %v3018 = vpop.permute.xlu0 %3017
        %3019 = vrot.lane.b32.xlu0 %v2324, 7
        %v3020 = vpop.permute.xlu0 %3019
        %3021 = vrot.lane.b32.xlu0 %v2325, 7
        %v3022 = vpop.permute.xlu0 %3021
        %3023 = vrot.lane.b32.xlu0 %v2326, 7
        %v3024 = vpop.permute.xlu0 %3023
        %3025 = vrot.lane.b32.xlu0 %v2285, 7
        %v3026 = vpop.permute.xlu0 %3025
        %3027 = vrot.lane.b32.xlu0 %v2287, 7
        %v3028 = vpop.permute.xlu0 %3027
        %3029 = vrot.lane.b32.xlu0 %v2327, 7
        %v3030 = vpop.permute.xlu0 %3029
        %3031 = vrot.lane.b32.xlu0 %v2328, 7
        %v3032 = vpop.permute.xlu0 %3031
        %3033 = vrot.lane.b32.xlu0 %v2329, 7
        %v3034 = vpop.permute.xlu0 %3033
        %3035 = vrot.lane.b32.xlu0 %v2330, 7
        %v3036 = vpop.permute.xlu0 %3035
        %3037 = vrot.lane.b32.xlu0 %v2331, 7
        %v3038 = vpop.permute.xlu0 %3037
        %3039 = vrot.lane.b32.xlu0 %v2332, 7
        %v3040 = vpop.permute.xlu0 %3039
        %3041 = vrot.lane.b32.xlu0 %v2299, 7
        %v3042 = vpop.permute.xlu0 %3041
        %3043 = vrot.lane.b32.xlu0 %v2301, 7
        %v3044 = vpop.permute.xlu0 %3043
        %3045 = vrot.lane.b32.xlu0 %v2333, 7
        %v3046 = vpop.permute.xlu0 %3045
        %3047 = vrot.lane.b32.xlu0 %v2334, 7
        %v3048 = vpop.permute.xlu0 %3047
        %3049 = vrot.lane.b32.xlu0 %v2335, 7
        %v3050 = vpop.permute.xlu0 %3049
        %3051 = vrot.lane.b32.xlu0 %v2336, 7
        %v3052 = vpop.permute.xlu0 %3051
        %3053 = vrot.lane.b32.xlu0 %v2337, 7
        %v3054 = vpop.permute.xlu0 %3053
        %3055 = vrot.lane.b32.xlu0 %v2338, 7
        %v3056 = vpop.permute.xlu0 %3055
        %3057 = vrot.lane.b32.xlu0 %v2313, 7
        %v3058 = vpop.permute.xlu0 %3057
        %3059 = vrot.lane.b32.xlu0 %v2344, 7
        %v3060 = vpop.permute.xlu0 %3059
        %3061 = vrot.lane.b32.xlu0 %v2408, 7
        %v3062 = vpop.permute.xlu0 %3061
        %3063 = vrot.lane.b32.xlu0 %v2409, 7
        %v3064 = vpop.permute.xlu0 %3063
        %3065 = vrot.lane.b32.xlu0 %v2410, 7
        %v3066 = vpop.permute.xlu0 %3065
        %3067 = vrot.lane.b32.xlu0 %v2411, 7
        %v3068 = vpop.permute.xlu0 %3067
        %3069 = vrot.lane.b32.xlu0 %v2412, 7
        %v3070 = vpop.permute.xlu0 %3069
        %3071 = vrot.lane.b32.xlu0 %v2413, 7
        %v3072 = vpop.permute.xlu0 %3071
        %3073 = vrot.lane.b32.xlu0 %v2414, 7
        %v3074 = vpop.permute.xlu0 %3073
        %3075 = vrot.lane.b32.xlu0 %v2360, 7
        %v3076 = vpop.permute.xlu0 %3075
        %3077 = vrot.lane.b32.xlu0 %v2415, 7
        %v3078 = vpop.permute.xlu0 %3077
        %3079 = vrot.lane.b32.xlu0 %v2416, 7
        %v3080 = vpop.permute.xlu0 %3079
        %3081 = vrot.lane.b32.xlu0 %v2417, 7
        %v3082 = vpop.permute.xlu0 %3081
        %3083 = vrot.lane.b32.xlu0 %v2418, 7
        %v3084 = vpop.permute.xlu0 %3083
        %3085 = vrot.lane.b32.xlu0 %v2419, 7
        %v3086 = vpop.permute.xlu0 %3085
        %3087 = vrot.lane.b32.xlu0 %v2420, 7
        %v3088 = vpop.permute.xlu0 %3087
        %3089 = vrot.lane.b32.xlu0 %v2421, 7
        %v3090 = vpop.permute.xlu0 %3089
        %3091 = vrot.lane.b32.xlu0 %v2376, 7
        %v3092 = vpop.permute.xlu0 %3091
        %3093 = vrot.lane.b32.xlu0 %v2422, 7
        %v3094 = vpop.permute.xlu0 %3093
        %3095 = vrot.lane.b32.xlu0 %v2423, 7
        %v3096 = vpop.permute.xlu0 %3095
        %3097 = vrot.lane.b32.xlu0 %v2424, 7
        %v3098 = vpop.permute.xlu0 %3097
        %3099 = vrot.lane.b32.xlu0 %v2425, 7
        %v3100 = vpop.permute.xlu0 %3099
        %3101 = vrot.lane.b32.xlu0 %v2426, 7
        %v3102 = vpop.permute.xlu0 %3101
        %3103 = vrot.lane.b32.xlu0 %v2427, 7
        %v3104 = vpop.permute.xlu0 %3103
        %3105 = vrot.lane.b32.xlu0 %v2428, 7
        %v3106 = vpop.permute.xlu0 %3105
        %3107 = vrot.lane.b32.xlu0 %v2392, 7
        %v3108 = vpop.permute.xlu0 %3107
        %3109 = vrot.lane.b32.xlu0 %v2429, 7
        %v3110 = vpop.permute.xlu0 %3109
        %3111 = vrot.lane.b32.xlu0 %v2430, 7
        %v3112 = vpop.permute.xlu0 %3111
        %3113 = vrot.lane.b32.xlu0 %v2431, 7
        %v3114 = vpop.permute.xlu0 %3113
        %3115 = vrot.lane.b32.xlu0 %v2432, 7
        %v3116 = vpop.permute.xlu0 %3115
        %3117 = vrot.lane.b32.xlu0 %v2433, 7
        %v3118 = vpop.permute.xlu0 %3117
        %3119 = vrot.lane.b32.xlu0 %v2434, 7
        %v3120 = vpop.permute.xlu0 %3119
        %3121 = vrot.lane.b32.xlu0 %v2435, 7
        %v3122 = vpop.permute.xlu0 %3121
        %3123 = vrot.lane.b32.xlu0 %v2437, 7
        %v3124 = vpop.permute.xlu0 %3123
        %3125 = vrot.lane.b32.xlu0 %v2501, 7
        %v3126 = vpop.permute.xlu0 %3125
        %3127 = vrot.lane.b32.xlu0 %v2502, 7
        %v3128 = vpop.permute.xlu0 %3127
        %3129 = vrot.lane.b32.xlu0 %v2503, 7
        %v3130 = vpop.permute.xlu0 %3129
        %3131 = vrot.lane.b32.xlu0 %v2504, 7
        %v3132 = vpop.permute.xlu0 %3131
        %3133 = vrot.lane.b32.xlu0 %v2505, 7
        %v3134 = vpop.permute.xlu0 %3133
        %3135 = vrot.lane.b32.xlu0 %v2506, 7
        %v3136 = vpop.permute.xlu0 %3135
        %3137 = vrot.lane.b32.xlu0 %v2507, 7
        %v3138 = vpop.permute.xlu0 %3137
        %3139 = vrot.lane.b32.xlu0 %v2453, 7
        %v3140 = vpop.permute.xlu0 %3139
        %3141 = vrot.lane.b32.xlu0 %v2508, 7
        %v3142 = vpop.permute.xlu0 %3141
        %3143 = vrot.lane.b32.xlu0 %v2509, 7
        %v3144 = vpop.permute.xlu0 %3143
        %3145 = vrot.lane.b32.xlu0 %v2510, 7
        %v3146 = vpop.permute.xlu0 %3145
        %3147 = vrot.lane.b32.xlu0 %v2511, 7
        %v3148 = vpop.permute.xlu0 %3147
        %3149 = vrot.lane.b32.xlu0 %v2512, 7
        %v3150 = vpop.permute.xlu0 %3149
        %3151 = vrot.lane.b32.xlu0 %v2513, 7
        %v3152 = vpop.permute.xlu0 %3151
        %3153 = vrot.lane.b32.xlu0 %v2514, 7
        %v3154 = vpop.permute.xlu0 %3153
        %3155 = vrot.lane.b32.xlu0 %v2469, 7
        %v3156 = vpop.permute.xlu0 %3155
        %3157 = vrot.lane.b32.xlu0 %v2515, 7
        %v3158 = vpop.permute.xlu0 %3157
        %3159 = vrot.lane.b32.xlu0 %v2516, 7
        %v3160 = vpop.permute.xlu0 %3159
        %3161 = vrot.lane.b32.xlu0 %v2517, 7
        %v3162 = vpop.permute.xlu0 %3161
        %3163 = vrot.lane.b32.xlu0 %v2518, 7
        %v3164 = vpop.permute.xlu0 %3163
        %3165 = vrot.lane.b32.xlu0 %v2519, 7
        %v3166 = vpop.permute.xlu0 %3165
        %3167 = vrot.lane.b32.xlu0 %v2520, 7
        %v3168 = vpop.permute.xlu0 %3167
        %3169 = vrot.lane.b32.xlu0 %v2521, 7
        %v3170 = vpop.permute.xlu0 %3169
        %3171 = vrot.lane.b32.xlu0 %v2485, 7
        %v3172 = vpop.permute.xlu0 %3171
        %3173 = vrot.lane.b32.xlu0 %v2522, 7
        %v3174 = vpop.permute.xlu0 %3173
        %3175 = vrot.lane.b32.xlu0 %v2523, 7
        %v3176 = vpop.permute.xlu0 %3175
        %3177 = vrot.lane.b32.xlu0 %v2524, 7
        %v3178 = vpop.permute.xlu0 %3177
        %3179 = vrot.lane.b32.xlu0 %v2525, 7
        %v3180 = vpop.permute.xlu0 %3179
        %3181 = vrot.lane.b32.xlu0 %v2526, 7
        %v3182 = vpop.permute.xlu0 %3181
        %3183 = vrot.lane.b32.xlu0 %v2527, 7
        %v3184 = vpop.permute.xlu0 %3183
        %3185 = vrot.lane.b32.xlu0 %v2528, 7
        %v3186 = vpop.permute.xlu0 %3185
        %3187 = vrot.lane.b32.xlu0 %v2530, 7
        %v3188 = vpop.permute.xlu0 %3187
        %3189 = vrot.lane.b32.xlu0 %v2594, 7
        %v3190 = vpop.permute.xlu0 %3189
        %3191 = vrot.lane.b32.xlu0 %v2595, 7
        %v3192 = vpop.permute.xlu0 %3191
        %3193 = vrot.lane.b32.xlu0 %v2596, 7
        %v3194 = vpop.permute.xlu0 %3193
        %3195 = vrot.lane.b32.xlu0 %v2597, 7
        %v3196 = vpop.permute.xlu0 %3195
        %3197 = vrot.lane.b32.xlu0 %v2598, 7
        %v3198 = vpop.permute.xlu0 %3197
        %3199 = vrot.lane.b32.xlu0 %v2599, 7
        %v3200 = vpop.permute.xlu0 %3199
        %3201 = vrot.lane.b32.xlu0 %v2600, 7
        %v3202 = vpop.permute.xlu0 %3201
        %3203 = vrot.lane.b32.xlu0 %v2546, 7
        %v3204 = vpop.permute.xlu0 %3203
        %3205 = vrot.lane.b32.xlu0 %v2601, 7
        %v3206 = vpop.permute.xlu0 %3205
        %3207 = vrot.lane.b32.xlu0 %v2602, 7
        %v3208 = vpop.permute.xlu0 %3207
        %3209 = vrot.lane.b32.xlu0 %v2603, 7
        %v3210 = vpop.permute.xlu0 %3209
        %3211 = vrot.lane.b32.xlu0 %v2604, 7
        %v3212 = vpop.permute.xlu0 %3211
        %3213 = vrot.lane.b32.xlu0 %v2605, 7
        %v3214 = vpop.permute.xlu0 %3213
        %3215 = vrot.lane.b32.xlu0 %v2606, 7
        %v3216 = vpop.permute.xlu0 %3215
        %3217 = vrot.lane.b32.xlu0 %v2607, 7
        %v3218 = vpop.permute.xlu0 %3217
        %3219 = vrot.lane.b32.xlu0 %v2562, 7
        %v3220 = vpop.permute.xlu0 %3219
        %3221 = vrot.lane.b32.xlu0 %v2608, 7
        %v3222 = vpop.permute.xlu0 %3221
        %3223 = vrot.lane.b32.xlu0 %v2609, 7
        %v3224 = vpop.permute.xlu0 %3223
        %3225 = vrot.lane.b32.xlu0 %v2610, 7
        %v3226 = vpop.permute.xlu0 %3225
        %3227 = vrot.lane.b32.xlu0 %v2611, 7
        %v3228 = vpop.permute.xlu0 %3227
        %3229 = vrot.lane.b32.xlu0 %v2612, 7
        %v3230 = vpop.permute.xlu0 %3229
        %3231 = vrot.lane.b32.xlu0 %v2613, 7
        %v3232 = vpop.permute.xlu0 %3231
        %3233 = vrot.lane.b32.xlu0 %v2614, 7
        %v3234 = vpop.permute.xlu0 %3233
        %3235 = vrot.lane.b32.xlu0 %v2578, 7
        %v3236 = vpop.permute.xlu0 %3235
        %3237 = vrot.lane.b32.xlu0 %v2615, 7
        %v3238 = vpop.permute.xlu0 %3237
        %3239 = vrot.lane.b32.xlu0 %v2616, 7
        %v3240 = vpop.permute.xlu0 %3239
        %3241 = vrot.lane.b32.xlu0 %v2617, 7
        %v3242 = vpop.permute.xlu0 %3241
        %3243 = vrot.lane.b32.xlu0 %v2618, 7
        %v3244 = vpop.permute.xlu0 %3243
        %3245 = vrot.lane.b32.xlu0 %v2619, 7
        %v3246 = vpop.permute.xlu0 %3245
        %3247 = vrot.lane.b32.xlu0 %v2620, 7
        %v3248 = vpop.permute.xlu0 %3247
        %3249 = vrot.lane.b32.xlu0 %v2621, 7
        %v3250 = vpop.permute.xlu0 %3249
        %3251 = vrot.lane.b32.xlu0 %v2623, 7
        %v3252 = vpop.permute.xlu0 %3251
        %3253 = vrot.lane.b32.xlu0 %v2687, 7
        %v3254 = vpop.permute.xlu0 %3253
        %3255 = vrot.lane.b32.xlu0 %v2688, 7
        %v3256 = vpop.permute.xlu0 %3255
        %3257 = vrot.lane.b32.xlu0 %v2689, 7
        %v3258 = vpop.permute.xlu0 %3257
        %3259 = vrot.lane.b32.xlu0 %v2690, 7
        %v3260 = vpop.permute.xlu0 %3259
        %3261 = vrot.lane.b32.xlu0 %v2691, 7
        %v3262 = vpop.permute.xlu0 %3261
        %3263 = vrot.lane.b32.xlu0 %v2692, 7
        %v3264 = vpop.permute.xlu0 %3263
        %3265 = vrot.lane.b32.xlu0 %v2693, 7
        %v3266 = vpop.permute.xlu0 %3265
        %3267 = vrot.lane.b32.xlu0 %v2639, 7
        %v3268 = vpop.permute.xlu0 %3267
        %3269 = vrot.lane.b32.xlu0 %v2694, 7
        %v3270 = vpop.permute.xlu0 %3269
        %3271 = vrot.lane.b32.xlu0 %v2695, 7
        %v3272 = vpop.permute.xlu0 %3271
        %3273 = vrot.lane.b32.xlu0 %v2696, 7
        %v3274 = vpop.permute.xlu0 %3273
        %3275 = vrot.lane.b32.xlu0 %v2697, 7
        %v3276 = vpop.permute.xlu0 %3275
        %3277 = vrot.lane.b32.xlu0 %v2698, 7
        %v3278 = vpop.permute.xlu0 %3277
        %3279 = vrot.lane.b32.xlu0 %v2699, 7
        %v3280 = vpop.permute.xlu0 %3279
        %3281 = vrot.lane.b32.xlu0 %v2700, 7
        %v3282 = vpop.permute.xlu0 %3281
        %3283 = vrot.lane.b32.xlu0 %v2655, 7
        %v3284 = vpop.permute.xlu0 %3283
        %3285 = vrot.lane.b32.xlu0 %v2701, 7
        %v3286 = vpop.permute.xlu0 %3285
        %3287 = vrot.lane.b32.xlu0 %v2702, 7
        %v3288 = vpop.permute.xlu0 %3287
        %3289 = vrot.lane.b32.xlu0 %v2703, 7
        %v3290 = vpop.permute.xlu0 %3289
        %3291 = vrot.lane.b32.xlu0 %v2704, 7
        %v3292 = vpop.permute.xlu0 %3291
        %3293 = vrot.lane.b32.xlu0 %v2705, 7
        %v3294 = vpop.permute.xlu0 %3293
        %3295 = vrot.lane.b32.xlu0 %v2706, 7
        %v3296 = vpop.permute.xlu0 %3295
        %3297 = vrot.lane.b32.xlu0 %v2707, 7
        %v3298 = vpop.permute.xlu0 %3297
        %3299 = vrot.lane.b32.xlu0 %v2671, 7
        %v3300 = vpop.permute.xlu0 %3299
        %3301 = vrot.lane.b32.xlu0 %v2708, 7
        %v3302 = vpop.permute.xlu0 %3301
        %3303 = vrot.lane.b32.xlu0 %v2709, 7
        %v3304 = vpop.permute.xlu0 %3303
        %3305 = vrot.lane.b32.xlu0 %v2710, 7
        %v3306 = vpop.permute.xlu0 %3305
        %3307 = vrot.lane.b32.xlu0 %v2711, 7
        %v3308 = vpop.permute.xlu0 %3307
        %3309 = vrot.lane.b32.xlu0 %v2712, 7
        %v3310 = vpop.permute.xlu0 %3309
        %3311 = vrot.lane.b32.xlu0 %v2713, 7
        %v3312 = vpop.permute.xlu0 %3311
        %3313 = vrot.lane.b32.xlu0 %v2714, 7
        %v3314 = vpop.permute.xlu0 %3313
        %3315 = vrot.lane.b32.xlu0 %v1240, 7
        %v3316 = vpop.permute.xlu0 %3315
        %3317 = vrot.lane.b32.xlu0 %v1303, 7
        %v3318 = vpop.permute.xlu0 %3317
        %3319 = vrot.lane.b32.xlu0 %v1304, 7
        %v3320 = vpop.permute.xlu0 %3319
        %3321 = vrot.lane.b32.xlu0 %v1305, 7
        %v3322 = vpop.permute.xlu0 %3321
        %3323 = vrot.lane.b32.xlu0 %v1306, 7
        %v3324 = vpop.permute.xlu0 %3323
        %3325 = vrot.lane.b32.xlu0 %v1307, 7
        %v3326 = vpop.permute.xlu0 %3325
        %3327 = vrot.lane.b32.xlu0 %v1308, 7
        %v3328 = vpop.permute.xlu0 %3327
        %3329 = vrot.lane.b32.xlu0 %v2723, 7
        %v3330 = vpop.permute.xlu0 %3329
        %3331 = vrot.lane.b32.xlu0 %v1256, 7
        %v3332 = vpop.permute.xlu0 %3331
        %3333 = vrot.lane.b32.xlu0 %v1310, 7
        %v3334 = vpop.permute.xlu0 %3333
        %3335 = vrot.lane.b32.xlu0 %v1311, 7
        %v3336 = vpop.permute.xlu0 %3335
        %3337 = vrot.lane.b32.xlu0 %v1312, 7
        %v3338 = vpop.permute.xlu0 %3337
        %3339 = vrot.lane.b32.xlu0 %v1313, 7
        %v3340 = vpop.permute.xlu0 %3339
        %3341 = vrot.lane.b32.xlu0 %v1314, 7
        %v3342 = vpop.permute.xlu0 %3341
        %3343 = vrot.lane.b32.xlu0 %v1315, 7
        %v3344 = vpop.permute.xlu0 %3343
        %3345 = vrot.lane.b32.xlu0 %v2724, 7
        %v3346 = vpop.permute.xlu0 %3345
        %3347 = vrot.lane.b32.xlu0 %v1272, 7
        %v3348 = vpop.permute.xlu0 %3347
        %3349 = vrot.lane.b32.xlu0 %v1317, 7
        %v3350 = vpop.permute.xlu0 %3349
        %3351 = vrot.lane.b32.xlu0 %v1318, 7
        %v3352 = vpop.permute.xlu0 %3351
        %3353 = vrot.lane.b32.xlu0 %v1319, 7
        %v3354 = vpop.permute.xlu0 %3353
        %3355 = vrot.lane.b32.xlu0 %v1320, 7
        %v3356 = vpop.permute.xlu0 %3355
        %3357 = vrot.lane.b32.xlu0 %v1321, 7
        %v3358 = vpop.permute.xlu0 %3357
        %3359 = vrot.lane.b32.xlu0 %v1322, 7
        %v3360 = vpop.permute.xlu0 %3359
        %3361 = vrot.lane.b32.xlu0 %v2725, 7
        %v3362 = vpop.permute.xlu0 %3361
        %3363 = vrot.lane.b32.xlu0 %v1288, 7
        %v3364 = vpop.permute.xlu0 %3363
        %3365 = vrot.lane.b32.xlu0 %v1324, 7
        %v3366 = vpop.permute.xlu0 %3365
        %3367 = vrot.lane.b32.xlu0 %v1325, 7
        %v3368 = vpop.permute.xlu0 %3367
        %3369 = vrot.lane.b32.xlu0 %v1326, 7
        %v3370 = vpop.permute.xlu0 %3369
        %3371 = vrot.lane.b32.xlu0 %v1327, 7
        %v3372 = vpop.permute.xlu0 %3371
        %3373 = vrot.lane.b32.xlu0 %v1328, 7
        %v3374 = vpop.permute.xlu0 %3373
        %3375 = vrot.lane.b32.xlu0 %v1329, 7
        %v3376 = vpop.permute.xlu0 %3375
        %3377 = vrot.lane.b32.xlu0 %v2726, 7
        %v3378 = vpop.permute.xlu0 %3377
        %3379 = vrot.lane.b32.xlu0 %v1361, 7
        %v3380 = vpop.permute.xlu0 %3379
        %3381 = vrot.lane.b32.xlu0 %v1424, 7
        %v3382 = vpop.permute.xlu0 %3381
        %3383 = vrot.lane.b32.xlu0 %v1425, 7
        %v3384 = vpop.permute.xlu0 %3383
        %3385 = vrot.lane.b32.xlu0 %v1426, 7
        %v3386 = vpop.permute.xlu0 %3385
        %3387 = vrot.lane.b32.xlu0 %v1427, 7
        %v3388 = vpop.permute.xlu0 %3387
        %3389 = vrot.lane.b32.xlu0 %v1428, 7
        %v3390 = vpop.permute.xlu0 %3389
        %3391 = vrot.lane.b32.xlu0 %v1429, 7
        %v3392 = vpop.permute.xlu0 %3391
        %3393 = vrot.lane.b32.xlu0 %v2735, 7
        %v3394 = vpop.permute.xlu0 %3393
        %3395 = vrot.lane.b32.xlu0 %v1377, 7
        %v3396 = vpop.permute.xlu0 %3395
        %3397 = vrot.lane.b32.xlu0 %v1431, 7
        %v3398 = vpop.permute.xlu0 %3397
        %3399 = vrot.lane.b32.xlu0 %v1432, 7
        %v3400 = vpop.permute.xlu0 %3399
        %3401 = vrot.lane.b32.xlu0 %v1433, 7
        %v3402 = vpop.permute.xlu0 %3401
        %3403 = vrot.lane.b32.xlu0 %v1434, 7
        %v3404 = vpop.permute.xlu0 %3403
        %3405 = vrot.lane.b32.xlu0 %v1435, 7
        %v3406 = vpop.permute.xlu0 %3405
        %3407 = vrot.lane.b32.xlu0 %v1436, 7
        %v3408 = vpop.permute.xlu0 %3407
        %3409 = vrot.lane.b32.xlu0 %v2736, 7
        %v3410 = vpop.permute.xlu0 %3409
        %3411 = vrot.lane.b32.xlu0 %v1393, 7
        %v3412 = vpop.permute.xlu0 %3411
        %3413 = vrot.lane.b32.xlu0 %v1438, 7
        %v3414 = vpop.permute.xlu0 %3413
        %3415 = vrot.lane.b32.xlu0 %v1439, 7
        %v3416 = vpop.permute.xlu0 %3415
        %3417 = vrot.lane.b32.xlu0 %v1440, 7
        %v3418 = vpop.permute.xlu0 %3417
        %3419 = vrot.lane.b32.xlu0 %v1441, 7
        %v3420 = vpop.permute.xlu0 %3419
        %3421 = vrot.lane.b32.xlu0 %v1442, 7
        %v3422 = vpop.permute.xlu0 %3421
        %3423 = vrot.lane.b32.xlu0 %v1443, 7
        %v3424 = vpop.permute.xlu0 %3423
        %3425 = vrot.lane.b32.xlu0 %v2737, 7
        %v3426 = vpop.permute.xlu0 %3425
        %3427 = vrot.lane.b32.xlu0 %v1409, 7
        %v3428 = vpop.permute.xlu0 %3427
        %3429 = vrot.lane.b32.xlu0 %v1445, 7
        %v3430 = vpop.permute.xlu0 %3429
        %3431 = vrot.lane.b32.xlu0 %v1446, 7
        %v3432 = vpop.permute.xlu0 %3431
        %3433 = vrot.lane.b32.xlu0 %v1447, 7
        %v3434 = vpop.permute.xlu0 %3433
        %3435 = vrot.lane.b32.xlu0 %v1448, 7
        %v3436 = vpop.permute.xlu0 %3435
        %3437 = vrot.lane.b32.xlu0 %v1449, 7
        %v3438 = vpop.permute.xlu0 %3437
        %3439 = vrot.lane.b32.xlu0 %v1450, 7
        %v3440 = vpop.permute.xlu0 %3439
        %3441 = vrot.lane.b32.xlu0 %v2738, 7
        %v3442 = vpop.permute.xlu0 %3441
        %vm3443 = vcmask 56320
        %v3444 = vsel %vm3443, %v2740, %v2742
        %v3445 = vsel %vm3443, %v2742, %v2744
        %v3446 = vsel %vm3443, %v2744, %v2746
        %v3447 = vsel %vm3443, %v2746, %v2748
        %v3448 = vsel %vm3443, %v2748, %v2750
        %v3449 = vsel %vm3443, %v2750, %v2752
        %v3450 = vsel %vm3443, %v2752, %v2754
        %v3451 = vsel %vm3443, %v2756, %v2758
        %v3452 = vsel %vm3443, %v2758, %v2760
        %v3453 = vsel %vm3443, %v2760, %v2762
        %v3454 = vsel %vm3443, %v2762, %v2764
        %v3455 = vsel %vm3443, %v2764, %v2766
        %v3456 = vsel %vm3443, %v2766, %v2768
        %v3457 = vsel %vm3443, %v2768, %v2770
        %v3458 = vsel %vm3443, %v2772, %v2774
        %v3459 = vsel %vm3443, %v2774, %v2776
        %v3460 = vsel %vm3443, %v2776, %v2778
        %v3461 = vsel %vm3443, %v2778, %v2780
        %v3462 = vsel %vm3443, %v2780, %v2782
        %v3463 = vsel %vm3443, %v2782, %v2784
        %v3464 = vsel %vm3443, %v2784, %v2786
        %v3465 = vsel %vm3443, %v2788, %v2790
        %v3466 = vsel %vm3443, %v2790, %v2792
        %v3467 = vsel %vm3443, %v2792, %v2794
        %v3468 = vsel %vm3443, %v2794, %v2796
        %v3469 = vsel %vm3443, %v2796, %v2798
        %v3470 = vsel %vm3443, %v2798, %v2800
        %v3471 = vsel %vm3443, %v2800, %v2802
        %v3472 = vsel %vm3443, %v2804, %v2806
        %v3473 = vsel %vm3443, %v2806, %v2808
        %v3474 = vsel %vm3443, %v2808, %v2810
        %v3475 = vsel %vm3443, %v2810, %v2812
        %v3476 = vsel %vm3443, %v2812, %v2814
        %v3477 = vsel %vm3443, %v2814, %v2816
        %v3478 = vsel %vm3443, %v2816, %v2818
        %v3479 = vsel %vm3443, %v2820, %v2822
        %v3480 = vsel %vm3443, %v2822, %v2824
        %v3481 = vsel %vm3443, %v2824, %v2826
        %v3482 = vsel %vm3443, %v2826, %v2828
        %v3483 = vsel %vm3443, %v2828, %v2830
        %v3484 = vsel %vm3443, %v2830, %v2832
        %v3485 = vsel %vm3443, %v2832, %v2834
        %v3486 = vsel %vm3443, %v2836, %v2838
        %v3487 = vsel %vm3443, %v2838, %v2840
        %v3488 = vsel %vm3443, %v2840, %v2842
        %v3489 = vsel %vm3443, %v2842, %v2844
        %v3490 = vsel %vm3443, %v2844, %v2846
        %v3491 = vsel %vm3443, %v2846, %v2848
        %v3492 = vsel %vm3443, %v2848, %v2850
        %v3493 = vsel %vm3443, %v2852, %v2854
        %v3494 = vsel %vm3443, %v2854, %v2856
        %v3495 = vsel %vm3443, %v2856, %v2858
        %v3496 = vsel %vm3443, %v2858, %v2860
        %v3497 = vsel %vm3443, %v2860, %v2862
        %v3498 = vsel %vm3443, %v2862, %v2864
        %v3499 = vsel %vm3443, %v2864, %v2866
        %v3500 = vsel %vm3443, %v2868, %v2870
        %v3501 = vsel %vm3443, %v2870, %v2872
        %v3502 = vsel %vm3443, %v2872, %v2874
        %v3503 = vsel %vm3443, %v2874, %v2876
        %v3504 = vsel %vm3443, %v2876, %v2878
        %v3505 = vsel %vm3443, %v2878, %v2880
        %v3506 = vsel %vm3443, %v2880, %v2882
        %v3507 = vsel %vm3443, %v2884, %v2886
        %v3508 = vsel %vm3443, %v2886, %v2888
        %v3509 = vsel %vm3443, %v2888, %v2890
        %v3510 = vsel %vm3443, %v2890, %v2892
        %v3511 = vsel %vm3443, %v2892, %v2894
        %v3512 = vsel %vm3443, %v2894, %v2896
        %v3513 = vsel %vm3443, %v2896, %v2898
        %v3514 = vsel %vm3443, %v2900, %v2902
        %v3515 = vsel %vm3443, %v2902, %v2904
        %v3516 = vsel %vm3443, %v2904, %v2906
        %v3517 = vsel %vm3443, %v2906, %v2908
        %v3518 = vsel %vm3443, %v2908, %v2910
        %v3519 = vsel %vm3443, %v2910, %v2912
        %v3520 = vsel %vm3443, %v2912, %v2914
        %v3521 = vsel %vm3443, %v2916, %v2918
        %v3522 = vsel %vm3443, %v2918, %v2920
        %v3523 = vsel %vm3443, %v2920, %v2922
        %v3524 = vsel %vm3443, %v2922, %v2924
        %v3525 = vsel %vm3443, %v2924, %v2926
        %v3526 = vsel %vm3443, %v2926, %v2928
        %v3527 = vsel %vm3443, %v2928, %v2930
        %v3528 = vsel %vm3443, %v2932, %v2934
        %v3529 = vsel %vm3443, %v2934, %v2936
        %v3530 = vsel %vm3443, %v2936, %v2938
        %v3531 = vsel %vm3443, %v2938, %v2940
        %v3532 = vsel %vm3443, %v2940, %v2942
        %v3533 = vsel %vm3443, %v2942, %v2944
        %v3534 = vsel %vm3443, %v2944, %v2946
        %v3535 = vsel %vm3443, %v2948, %v2950
        %v3536 = vsel %vm3443, %v2950, %v2952
        %v3537 = vsel %vm3443, %v2952, %v2954
        %v3538 = vsel %vm3443, %v2954, %v2956
        %v3539 = vsel %vm3443, %v2956, %v2958
        %v3540 = vsel %vm3443, %v2958, %v2960
        %v3541 = vsel %vm3443, %v2960, %v2962
        %v3542 = vsel %vm3443, %v2964, %v2966
        %v3543 = vsel %vm3443, %v2966, %v2968
        %v3544 = vsel %vm3443, %v2968, %v2970
        %v3545 = vsel %vm3443, %v2970, %v2972
        %v3546 = vsel %vm3443, %v2972, %v2974
        %v3547 = vsel %vm3443, %v2974, %v2976
        %v3548 = vsel %vm3443, %v2976, %v2978
        %v3549 = vsel %vm3443, %v2980, %v2982
        %v3550 = vsel %vm3443, %v2982, %v2984
        %v3551 = vsel %vm3443, %v2984, %v2986
        %v3552 = vsel %vm3443, %v2986, %v2988
        %v3553 = vsel %vm3443, %v2988, %v2990
        %v3554 = vsel %vm3443, %v2990, %v2992
        %v3555 = vsel %vm3443, %v2992, %v2994
        %v3556 = vsel %vm3443, %v2996, %v2998
        %v3557 = vsel %vm3443, %v2998, %v3000
        %v3558 = vsel %vm3443, %v3000, %v3002
        %v3559 = vsel %vm3443, %v3002, %v3004
        %v3560 = vsel %vm3443, %v3004, %v3006
        %v3561 = vsel %vm3443, %v3006, %v3008
        %v3562 = vsel %vm3443, %v3008, %v3010
        %v3563 = vsel %vm3443, %v3012, %v3014
        %v3564 = vsel %vm3443, %v3014, %v3016
        %v3565 = vsel %vm3443, %v3016, %v3018
        %v3566 = vsel %vm3443, %v3018, %v3020
        %v3567 = vsel %vm3443, %v3020, %v3022
        %v3568 = vsel %vm3443, %v3022, %v3024
        %v3569 = vsel %vm3443, %v3024, %v3026
        %v3570 = vsel %vm3443, %v3028, %v3030
        %v3571 = vsel %vm3443, %v3030, %v3032
        %v3572 = vsel %vm3443, %v3032, %v3034
        %v3573 = vsel %vm3443, %v3034, %v3036
        %v3574 = vsel %vm3443, %v3036, %v3038
        %v3575 = vsel %vm3443, %v3038, %v3040
        %v3576 = vsel %vm3443, %v3040, %v3042
        %v3577 = vsel %vm3443, %v3044, %v3046
        %v3578 = vsel %vm3443, %v3046, %v3048
        %v3579 = vsel %vm3443, %v3048, %v3050
        %v3580 = vsel %vm3443, %v3050, %v3052
        %v3581 = vsel %vm3443, %v3052, %v3054
        %v3582 = vsel %vm3443, %v3054, %v3056
        %v3583 = vsel %vm3443, %v3056, %v3058
        %v3584 = vsel %vm3443, %v3060, %v3062
        %v3585 = vsel %vm3443, %v3062, %v3064
        %v3586 = vsel %vm3443, %v3064, %v3066
        %v3587 = vsel %vm3443, %v3066, %v3068
        %v3588 = vsel %vm3443, %v3068, %v3070
        %v3589 = vsel %vm3443, %v3070, %v3072
        %v3590 = vsel %vm3443, %v3072, %v3074
        %v3591 = vsel %vm3443, %v3076, %v3078
        %v3592 = vsel %vm3443, %v3078, %v3080
        %v3593 = vsel %vm3443, %v3080, %v3082
        %v3594 = vsel %vm3443, %v3082, %v3084
        %v3595 = vsel %vm3443, %v3084, %v3086
        %v3596 = vsel %vm3443, %v3086, %v3088
        %v3597 = vsel %vm3443, %v3088, %v3090
        %v3598 = vsel %vm3443, %v3092, %v3094
        %v3599 = vsel %vm3443, %v3094, %v3096
        %v3600 = vsel %vm3443, %v3096, %v3098
        %v3601 = vsel %vm3443, %v3098, %v3100
        %v3602 = vsel %vm3443, %v3100, %v3102
        %v3603 = vsel %vm3443, %v3102, %v3104
        %v3604 = vsel %vm3443, %v3104, %v3106
        %v3605 = vsel %vm3443, %v3108, %v3110
        %v3606 = vsel %vm3443, %v3110, %v3112
        %v3607 = vsel %vm3443, %v3112, %v3114
        %v3608 = vsel %vm3443, %v3114, %v3116
        %v3609 = vsel %vm3443, %v3116, %v3118
        %v3610 = vsel %vm3443, %v3118, %v3120
        %v3611 = vsel %vm3443, %v3120, %v3122
        %v3612 = vsel %vm3443, %v3124, %v3126
        %v3613 = vsel %vm3443, %v3126, %v3128
        %v3614 = vsel %vm3443, %v3128, %v3130
        %v3615 = vsel %vm3443, %v3130, %v3132
        %v3616 = vsel %vm3443, %v3132, %v3134
        %v3617 = vsel %vm3443, %v3134, %v3136
        %v3618 = vsel %vm3443, %v3136, %v3138
        %v3619 = vsel %vm3443, %v3140, %v3142
        %v3620 = vsel %vm3443, %v3142, %v3144
        %v3621 = vsel %vm3443, %v3144, %v3146
        %v3622 = vsel %vm3443, %v3146, %v3148
        %v3623 = vsel %vm3443, %v3148, %v3150
        %v3624 = vsel %vm3443, %v3150, %v3152
        %v3625 = vsel %vm3443, %v3152, %v3154
        %v3626 = vsel %vm3443, %v3156, %v3158
        %v3627 = vsel %vm3443, %v3158, %v3160
        %v3628 = vsel %vm3443, %v3160, %v3162
        %v3629 = vsel %vm3443, %v3162, %v3164
        %v3630 = vsel %vm3443, %v3164, %v3166
        %v3631 = vsel %vm3443, %v3166, %v3168
        %v3632 = vsel %vm3443, %v3168, %v3170
        %v3633 = vsel %vm3443, %v3172, %v3174
        %v3634 = vsel %vm3443, %v3174, %v3176
        %v3635 = vsel %vm3443, %v3176, %v3178
        %v3636 = vsel %vm3443, %v3178, %v3180
        %v3637 = vsel %vm3443, %v3180, %v3182
        %v3638 = vsel %vm3443, %v3182, %v3184
        %v3639 = vsel %vm3443, %v3184, %v3186
        %v3640 = vsel %vm3443, %v3188, %v3190
        %v3641 = vsel %vm3443, %v3190, %v3192
        %v3642 = vsel %vm3443, %v3192, %v3194
        %v3643 = vsel %vm3443, %v3194, %v3196
        %v3644 = vsel %vm3443, %v3196, %v3198
        %v3645 = vsel %vm3443, %v3198, %v3200
        %v3646 = vsel %vm3443, %v3200, %v3202
        %v3647 = vsel %vm3443, %v3204, %v3206
        %v3648 = vsel %vm3443, %v3206, %v3208
        %v3649 = vsel %vm3443, %v3208, %v3210
        %v3650 = vsel %vm3443, %v3210, %v3212
        %v3651 = vsel %vm3443, %v3212, %v3214
        %v3652 = vsel %vm3443, %v3214, %v3216
        %v3653 = vsel %vm3443, %v3216, %v3218
        %v3654 = vsel %vm3443, %v3220, %v3222
        %v3655 = vsel %vm3443, %v3222, %v3224
        %v3656 = vsel %vm3443, %v3224, %v3226
        %v3657 = vsel %vm3443, %v3226, %v3228
        %v3658 = vsel %vm3443, %v3228, %v3230
        %v3659 = vsel %vm3443, %v3230, %v3232
        %v3660 = vsel %vm3443, %v3232, %v3234
        %v3661 = vsel %vm3443, %v3236, %v3238
        %v3662 = vsel %vm3443, %v3238, %v3240
        %v3663 = vsel %vm3443, %v3240, %v3242
        %v3664 = vsel %vm3443, %v3242, %v3244
        %v3665 = vsel %vm3443, %v3244, %v3246
        %v3666 = vsel %vm3443, %v3246, %v3248
        %v3667 = vsel %vm3443, %v3248, %v3250
        %v3668 = vsel %vm3443, %v3252, %v3254
        %v3669 = vsel %vm3443, %v3254, %v3256
        %v3670 = vsel %vm3443, %v3256, %v3258
        %v3671 = vsel %vm3443, %v3258, %v3260
        %v3672 = vsel %vm3443, %v3260, %v3262
        %v3673 = vsel %vm3443, %v3262, %v3264
        %v3674 = vsel %vm3443, %v3264, %v3266
        %v3675 = vsel %vm3443, %v3268, %v3270
        %v3676 = vsel %vm3443, %v3270, %v3272
        %v3677 = vsel %vm3443, %v3272, %v3274
        %v3678 = vsel %vm3443, %v3274, %v3276
        %v3679 = vsel %vm3443, %v3276, %v3278
        %v3680 = vsel %vm3443, %v3278, %v3280
        %v3681 = vsel %vm3443, %v3280, %v3282
        %v3682 = vsel %vm3443, %v3284, %v3286
        %v3683 = vsel %vm3443, %v3286, %v3288
        %v3684 = vsel %vm3443, %v3288, %v3290
        %v3685 = vsel %vm3443, %v3290, %v3292
        %v3686 = vsel %vm3443, %v3292, %v3294
        %v3687 = vsel %vm3443, %v3294, %v3296
        %v3688 = vsel %vm3443, %v3296, %v3298
        %v3689 = vsel %vm3443, %v3300, %v3302
        %v3690 = vsel %vm3443, %v3302, %v3304
        %v3691 = vsel %vm3443, %v3304, %v3306
        %v3692 = vsel %vm3443, %v3306, %v3308
        %v3693 = vsel %vm3443, %v3308, %v3310
        %v3694 = vsel %vm3443, %v3310, %v3312
        %v3695 = vsel %vm3443, %v3312, %v3314
        %v3696 = vsel %vm3443, %v3316, %v3318
        %v3697 = vsel %vm3443, %v3318, %v3320
        %v3698 = vsel %vm3443, %v3320, %v3322
        %v3699 = vsel %vm3443, %v3322, %v3324
        %v3700 = vsel %vm3443, %v3324, %v3326
        %v3701 = vsel %vm3443, %v3326, %v3328
        %v3702 = vsel %vm3443, %v3328, %v3330
        %v3703 = vsel %vm3443, %v3332, %v3334
        %v3704 = vsel %vm3443, %v3334, %v3336
        %v3705 = vsel %vm3443, %v3336, %v3338
        %v3706 = vsel %vm3443, %v3338, %v3340
        %v3707 = vsel %vm3443, %v3340, %v3342
        %v3708 = vsel %vm3443, %v3342, %v3344
        %v3709 = vsel %vm3443, %v3344, %v3346
        %v3710 = vsel %vm3443, %v3348, %v3350
        %v3711 = vsel %vm3443, %v3350, %v3352
        %v3712 = vsel %vm3443, %v3352, %v3354
        %v3713 = vsel %vm3443, %v3354, %v3356
        %v3714 = vsel %vm3443, %v3356, %v3358
        %v3715 = vsel %vm3443, %v3358, %v3360
        %v3716 = vsel %vm3443, %v3360, %v3362
        %v3717 = vsel %vm3443, %v3364, %v3366
        %v3718 = vsel %vm3443, %v3366, %v3368
        %v3719 = vsel %vm3443, %v3368, %v3370
        %v3720 = vsel %vm3443, %v3370, %v3372
        %v3721 = vsel %vm3443, %v3372, %v3374
        %v3722 = vsel %vm3443, %v3374, %v3376
        %v3723 = vsel %vm3443, %v3376, %v3378
        %v3724 = vsel %vm3443, %v3380, %v3382
        %v3725 = vsel %vm3443, %v3382, %v3384
        %v3726 = vsel %vm3443, %v3384, %v3386
        %v3727 = vsel %vm3443, %v3386, %v3388
        %v3728 = vsel %vm3443, %v3388, %v3390
        %v3729 = vsel %vm3443, %v3390, %v3392
        %v3730 = vsel %vm3443, %v3392, %v3394
        %v3731 = vsel %vm3443, %v3396, %v3398
        %v3732 = vsel %vm3443, %v3398, %v3400
        %v3733 = vsel %vm3443, %v3400, %v3402
        %v3734 = vsel %vm3443, %v3402, %v3404
        %v3735 = vsel %vm3443, %v3404, %v3406
        %v3736 = vsel %vm3443, %v3406, %v3408
        %v3737 = vsel %vm3443, %v3408, %v3410
        %v3738 = vsel %vm3443, %v3412, %v3414
        %v3739 = vsel %vm3443, %v3414, %v3416
        %v3740 = vsel %vm3443, %v3416, %v3418
        %v3741 = vsel %vm3443, %v3418, %v3420
        %v3742 = vsel %vm3443, %v3420, %v3422
        %v3743 = vsel %vm3443, %v3422, %v3424
        %v3744 = vsel %vm3443, %v3424, %v3426
        %v3745 = vsel %vm3443, %v3428, %v3430
        %v3746 = vsel %vm3443, %v3430, %v3432
        %v3747 = vsel %vm3443, %v3432, %v3434
        %v3748 = vsel %vm3443, %v3434, %v3436
        %v3749 = vsel %vm3443, %v3436, %v3438
        %v3750 = vsel %vm3443, %v3438, %v3440
        %v3751 = vsel %vm3443, %v3440, %v3442
        %4061 = vset.pattern.permute.xlu0 0
        %4062 = vperm.xlu0 %4061, %v329
        %v4063 = vpop.permute.xlu0 %4062
        %4066 = vset.pattern.permute.xlu0 0
        %4067 = vperm.xlu0 %4066, %v330
        %v4068 = vpop.permute.xlu0 %4067
        %4071 = vset.pattern.permute.xlu0 0
        %4072 = vperm.xlu0 %4071, %v331
        %v4073 = vpop.permute.xlu0 %4072
        %4076 = vset.pattern.permute.xlu0 0
        %4077 = vperm.xlu0 %4076, %v332
        %v4078 = vpop.permute.xlu0 %4077
        %vm4080 = vcmask 785408
        %v4082 = vsel %vm4080, %v307, 0
        %v4085 = vsel %vm4080, %v314, 0
        %v4088 = vsel %vm4080, %v321, 0
        %v4091 = vsel %vm4080, %v328, 0
        %4093 = vmatprep.subr.mxu0 %v266
        %4094 = vmatpush1.msra.mxu0 %v265
        %4095 = vmatprep.subr.mxu0 %v275
        %4096 = vmatpush1.msra.mxu0 %v274
        %4097 = vmatprep.subr.mxu0 %v284
        %4098 = vmatpush1.msra.mxu0 %v283
        %4099 = vmatprep.subr.mxu0 %v293
        %4100 = vmatpush1.msra.mxu0 %v292
        %4101 = vmatprep.subr.mxu0 %v419
        %4102 = vmatpush1.msra.mxu0 %v418
        %4103 = vmatprep.subr.mxu0 %v425
        %4104 = vmatpush1.msra.mxu0 %v424
        %4105 = vmatprep.subr.mxu0 %v431
        %4106 = vmatpush1.msra.mxu0 %v430
        %4107 = vmatprep.subr.mxu0 %v437
        %4108 = vmatpush1.msra.mxu0 %v436
        %4109 = vmatprep.subr.mxu0 %v528
        %4110 = vmatpush1.msra.mxu0 %v527
        %4111 = vmatprep.subr.mxu0 %v534
        %4112 = vmatpush1.msra.mxu0 %v533
        %4113 = vmatprep.subr.mxu0 %v540
        %4114 = vmatpush1.msra.mxu0 %v539
        %4115 = vmatprep.subr.mxu0 %v546
        %4116 = vmatpush1.msra.mxu0 %v545
        %4117 = vmatprep.subr.mxu0 %v637
        %4118 = vmatpush1.msra.mxu0 %v636
        %4119 = vmatprep.subr.mxu0 %v643
        %4120 = vmatpush1.msra.mxu0 %v642
        %4121 = vmatprep.subr.mxu0 %v649
        %4122 = vmatpush1.msra.mxu0 %v648
        %4123 = vmatprep.subr.mxu0 %v655
        %4124 = vmatpush1.msra.mxu0 %v654
        %4125 = vmatprep.subr.mxu0 %v746
        %4126 = vmatpush1.msra.mxu0 %v745
        %4127 = vmatprep.subr.mxu0 %v752
        %4128 = vmatpush1.msra.mxu0 %v751
        %4129 = vmatprep.subr.mxu0 %v758
        %4130 = vmatpush1.msra.mxu0 %v757
        %4131 = vmatprep.subr.mxu0 %v764
        %4132 = vmatpush1.msra.mxu0 %v763
        %4133 = vmatprep.subr.mxu0 %v855
        %4134 = vmatpush1.msra.mxu0 %v854
        %4135 = vmatprep.subr.mxu0 %v861
        %4136 = vmatpush1.msra.mxu0 %v860
        %4137 = vmatprep.subr.mxu0 %v867
        %4138 = vmatpush1.msra.mxu0 %v866
        %4139 = vmatprep.subr.mxu0 %v873
        %4140 = vmatpush1.msra.mxu0 %v872
        %4141 = vmatprep.subr.mxu0 %v964
        %4142 = vmatpush1.msra.mxu0 %v963
        %4143 = vmatprep.subr.mxu0 %v970
        %4144 = vmatpush1.msra.mxu0 %v969
        %4145 = vmatprep.subr.mxu0 %v976
        %4146 = vmatpush1.msra.mxu0 %v975
        %4147 = vmatprep.subr.mxu0 %v982
        %4148 = vmatpush1.msra.mxu0 %v981
        %4149 = vmatprep.subr.mxu0 %v1073
        %4150 = vmatpush1.msra.mxu0 %v1072
        %4151 = vmatprep.subr.mxu0 %v1079
        %4152 = vmatpush1.msra.mxu0 %v1078
        %4153 = vmatprep.subr.mxu0 %v1085
        %4154 = vmatpush1.msra.mxu0 %v1084
        %4155 = vmatprep.subr.mxu0 %v1091
        %4156 = vmatpush1.msra.mxu0 %v1090
        %4157 = vmatprep.mubr.f32.mxu0 %v302
        %4158 = vmatmul.mubr.f32.gmra.mrb[0].mxu0 %v301
        %v4159 = vpop.f32.mrb[0].mxu0
        %v4160 = vadd.f32 %v4063, %v4159
        %v4161 = vpop.f32.mrb[0].mxu0
        %v4162 = vadd.f32 %v4063, %v4161
        %4163 = vmatprep.mubr.f32.mxu0 %v309
        %4164 = vmatmul.mubr.f32.gmra.mrb[0].mxu0 %v308
        %v4165 = vpop.f32.mrb[0].mxu0
        %v4166 = vadd.f32 %v4068, %v4165
        %v4167 = vpop.f32.mrb[0].mxu0
        %v4168 = vadd.f32 %v4068, %v4167
        %4169 = vmatprep.mubr.f32.mxu0 %v316
        %4170 = vmatmul.mubr.f32.gmra.mrb[0].mxu0 %v315
        %v4171 = vpop.f32.mrb[0].mxu0
        %v4172 = vadd.f32 %v4073, %v4171
        %v4173 = vpop.f32.mrb[0].mxu0
        %v4174 = vadd.f32 %v4073, %v4173
        %4175 = vmatprep.mubr.f32.mxu0 %v323
        %4176 = vmatmul.mubr.f32.gmra.mrb[0].mxu0 %v322
        %v4177 = vpop.f32.mrb[0].mxu0
        %v4178 = vadd.f32 %v4078, %v4177
        %v4179 = vpop.f32.mrb[0].mxu0
        %v4180 = vadd.f32 %v4078, %v4179
        %4181 = vdwg.mxu0
        %4182 = vmatprep.subr.mxu0 %v1182
        %4183 = vmatpush1.msra.mxu0 %v1181
        %4184 = vmatprep.subr.mxu0 %v1188
        %4185 = vmatpush1.msra.mxu0 %v1187
        %4186 = vmatprep.subr.mxu0 %v1194
        %4187 = vmatpush1.msra.mxu0 %v1193
        %4188 = vmatprep.subr.mxu0 %v1200
        %4189 = vmatpush1.msra.mxu0 %v1199
        %4190 = vmatprep.subr.mxu0 %v1303
        %4191 = vmatpush1.msra.mxu0 %v1302
        %4192 = vmatprep.subr.mxu0 %v1310
        %4193 = vmatpush1.msra.mxu0 %v1309
        %4194 = vmatprep.subr.mxu0 %v1317
        %4195 = vmatpush1.msra.mxu0 %v1316
        %4196 = vmatprep.subr.mxu0 %v1324
        %4197 = vmatpush1.msra.mxu0 %v1323
        %4198 = vmatprep.subr.mxu0 %v1424
        %4199 = vmatpush1.msra.mxu0 %v1423
        %4200 = vmatprep.subr.mxu0 %v1431
        %4201 = vmatpush1.msra.mxu0 %v1430
        %4202 = vmatprep.subr.mxu0 %v1438
        %4203 = vmatpush1.msra.mxu0 %v1437
        %4204 = vmatprep.subr.mxu0 %v1445
        %4205 = vmatpush1.msra.mxu0 %v1444
        %4206 = vmatprep.subr.mxu0 %v1545
        %4207 = vmatpush1.msra.mxu0 %v1544
        %4208 = vmatprep.subr.mxu0 %v1552
        %4209 = vmatpush1.msra.mxu0 %v1551
        %4210 = vmatprep.subr.mxu0 %v1559
        %4211 = vmatpush1.msra.mxu0 %v1558
        %4212 = vmatprep.subr.mxu0 %v1566
        %4213 = vmatpush1.msra.mxu0 %v1565
        %4214 = vmatprep.subr.mxu0 %v1666
        %4215 = vmatpush1.msra.mxu0 %v1665
        %4216 = vmatprep.subr.mxu0 %v1673
        %4217 = vmatpush1.msra.mxu0 %v1672
        %4218 = vmatprep.subr.mxu0 %v1680
        %4219 = vmatpush1.msra.mxu0 %v1679
        %4220 = vmatprep.subr.mxu0 %v1687
        %4221 = vmatpush1.msra.mxu0 %v1686
        %4222 = vmatprep.subr.mxu0 %v1787
        %4223 = vmatpush1.msra.mxu0 %v1786
        %4224 = vmatprep.subr.mxu0 %v1794
        %4225 = vmatpush1.msra.mxu0 %v1793
        %4226 = vmatprep.subr.mxu0 %v1801
        %4227 = vmatpush1.msra.mxu0 %v1800
        %4228 = vmatprep.subr.mxu0 %v1808
        %4229 = vmatpush1.msra.mxu0 %v1807
        %4230 = vmatprep.subr.mxu0 %v1908
        %4231 = vmatpush1.msra.mxu0 %v1907
        %4232 = vmatprep.subr.mxu0 %v1915
        %4233 = vmatpush1.msra.mxu0 %v1914
        %4234 = vmatprep.subr.mxu0 %v1922
        %4235 = vmatpush1.msra.mxu0 %v1921
        %4236 = vmatprep.subr.mxu0 %v1929
        %4237 = vmatpush1.msra.mxu0 %v1928
        %4238 = vmatprep.subr.mxu0 %v2029
        %4239 = vmatpush1.msra.mxu0 %v2028
        %4240 = vmatprep.subr.mxu0 %v2036
        %4241 = vmatpush1.msra.mxu0 %v2035
        %4242 = vmatprep.subr.mxu0 %v2043
        %4243 = vmatpush1.msra.mxu0 %v2042
        %4244 = vmatprep.subr.mxu0 %v2050
        %4245 = vmatpush1.msra.mxu0 %v2049
        %4246 = vmatprep.mubr.f32.mxu0 %v304
        %4247 = vmatmul.mubr.f32.gmra.mrb[0].mxu0 %v303
        %v4248 = vpop.f32.mrb[0].mxu0
        %v4249 = vadd.f32 %v4160, %v4248
        %v4250 = vpop.f32.mrb[0].mxu0
        %v4251 = vadd.f32 %v4162, %v4250
        %4252 = vmatprep.mubr.f32.mxu0 %v311
        %4253 = vmatmul.mubr.f32.gmra.mrb[0].mxu0 %v310
        %v4254 = vpop.f32.mrb[0].mxu0
        %v4255 = vadd.f32 %v4166, %v4254
        %v4256 = vpop.f32.mrb[0].mxu0
        %v4257 = vadd.f32 %v4168, %v4256
        %4258 = vmatprep.mubr.f32.mxu0 %v318
        %4259 = vmatmul.mubr.f32.gmra.mrb[0].mxu0 %v317
        %v4260 = vpop.f32.mrb[0].mxu0
        %v4261 = vadd.f32 %v4172, %v4260
        %v4262 = vpop.f32.mrb[0].mxu0
        %v4263 = vadd.f32 %v4174, %v4262
        %4264 = vmatprep.mubr.f32.mxu0 %v325
        %4265 = vmatmul.mubr.f32.gmra.mrb[0].mxu0 %v324
        %v4266 = vpop.f32.mrb[0].mxu0
        %v4267 = vadd.f32 %v4178, %v4266
        %v4268 = vpop.f32.mrb[0].mxu0
        %v4269 = vadd.f32 %v4180, %v4268
        %4270 = vdwg.mxu0
        %4271 = vmatprep.subr.mxu0 %v3445
        %4272 = vmatpush1.msra.mxu0 %v3444
        %4273 = vmatprep.subr.mxu0 %v3452
        %4274 = vmatpush1.msra.mxu0 %v3451
        %4275 = vmatprep.subr.mxu0 %v3459
        %4276 = vmatpush1.msra.mxu0 %v3458
        %4277 = vmatprep.subr.mxu0 %v3466
        %4278 = vmatpush1.msra.mxu0 %v3465
        %4279 = vmatprep.subr.mxu0 %v3473
        %4280 = vmatpush1.msra.mxu0 %v3472
        %4281 = vmatprep.subr.mxu0 %v3480
        %4282 = vmatpush1.msra.mxu0 %v3479
        %4283 = vmatprep.subr.mxu0 %v3487
        %4284 = vmatpush1.msra.mxu0 %v3486
        %4285 = vmatprep.subr.mxu0 %v3494
        %4286 = vmatpush1.msra.mxu0 %v3493
        %4287 = vmatprep.subr.mxu0 %v3501
        %4288 = vmatpush1.msra.mxu0 %v3500
        %4289 = vmatprep.subr.mxu0 %v3508
        %4290 = vmatpush1.msra.mxu0 %v3507
        %4291 = vmatprep.subr.mxu0 %v3515
        %4292 = vmatpush1.msra.mxu0 %v3514
        %4293 = vmatprep.subr.mxu0 %v3522
        %4294 = vmatpush1.msra.mxu0 %v3521
        %4295 = vmatprep.subr.mxu0 %v3529
        %4296 = vmatpush1.msra.mxu0 %v3528
        %4297 = vmatprep.subr.mxu0 %v3536
        %4298 = vmatpush1.msra.mxu0 %v3535
        %4299 = vmatprep.subr.mxu0 %v3543
        %4300 = vmatpush1.msra.mxu0 %v3542
        %4301 = vmatprep.subr.mxu0 %v3550
        %4302 = vmatpush1.msra.mxu0 %v3549
        %4303 = vmatprep.subr.mxu0 %v3557
        %4304 = vmatpush1.msra.mxu0 %v3556
        %4305 = vmatprep.subr.mxu0 %v3564
        %4306 = vmatpush1.msra.mxu0 %v3563
        %4307 = vmatprep.subr.mxu0 %v3571
        %4308 = vmatpush1.msra.mxu0 %v3570
        %4309 = vmatprep.subr.mxu0 %v3578
        %4310 = vmatpush1.msra.mxu0 %v3577
        %4311 = vmatprep.subr.mxu0 %v3585
        %4312 = vmatpush1.msra.mxu0 %v3584
        %4313 = vmatprep.subr.mxu0 %v3592
        %4314 = vmatpush1.msra.mxu0 %v3591
        %4315 = vmatprep.subr.mxu0 %v3599
        %4316 = vmatpush1.msra.mxu0 %v3598
        %4317 = vmatprep.subr.mxu0 %v3606
        %4318 = vmatpush1.msra.mxu0 %v3605
        %4319 = vmatprep.subr.mxu0 %v3613
        %4320 = vmatpush1.msra.mxu0 %v3612
        %4321 = vmatprep.subr.mxu0 %v3620
        %4322 = vmatpush1.msra.mxu0 %v3619
        %4323 = vmatprep.subr.mxu0 %v3627
        %4324 = vmatpush1.msra.mxu0 %v3626
        %4325 = vmatprep.subr.mxu0 %v3634
        %4326 = vmatpush1.msra.mxu0 %v3633
        %4327 = vmatprep.subr.mxu0 %v3641
        %4328 = vmatpush1.msra.mxu0 %v3640
        %4329 = vmatprep.subr.mxu0 %v3648
        %4330 = vmatpush1.msra.mxu0 %v3647
        %4331 = vmatprep.subr.mxu0 %v3655
        %4332 = vmatpush1.msra.mxu0 %v3654
        %4333 = vmatprep.subr.mxu0 %v3662
        %4334 = vmatpush1.msra.mxu0 %v3661
        %4335 = vmatprep.mubr.f32.mxu0 %v306
        %4336 = vmatmul.mubr.f32.gmra.mrb[0].mxu0 %v305
        %v4337 = vpop.f32.mrb[0].mxu0
        %v4338 = vadd.f32 %v4249, %v4337
        %v4339 = vpop.f32.mrb[0].mxu0
        %v4340 = vadd.f32 %v4251, %v4339
        %4341 = vmatprep.mubr.f32.mxu0 %v313
        %4342 = vmatmul.mubr.f32.gmra.mrb[0].mxu0 %v312
        %v4343 = vpop.f32.mrb[0].mxu0
        %v4344 = vadd.f32 %v4255, %v4343
        %v4345 = vpop.f32.mrb[0].mxu0
        %v4346 = vadd.f32 %v4257, %v4345
        %4347 = vmatprep.mubr.f32.mxu0 %v320
        %4348 = vmatmul.mubr.f32.gmra.mrb[0].mxu0 %v319
        %v4349 = vpop.f32.mrb[0].mxu0
        %v4350 = vadd.f32 %v4261, %v4349
        %v4351 = vpop.f32.mrb[0].mxu0
        %v4352 = vadd.f32 %v4263, %v4351
        %4353 = vmatprep.mubr.f32.mxu0 %v327
        %4354 = vmatmul.mubr.f32.gmra.mrb[0].mxu0 %v326
        %v4355 = vpop.f32.mrb[0].mxu0
        %v4356 = vadd.f32 %v4267, %v4355
        %v4357 = vpop.f32.mrb[0].mxu0
        %v4358 = vadd.f32 %v4269, %v4357
        %4359 = vdwg.mxu0
        %4360 = vmatprep.subr.mxu0 %v3669
        %4361 = vmatpush1.msra.mxu0 %v3668
        %4362 = vmatprep.subr.mxu0 %v3676
        %4363 = vmatpush1.msra.mxu0 %v3675
        %4364 = vmatprep.subr.mxu0 %v3683
        %4365 = vmatpush1.msra.mxu0 %v3682
        %4366 = vmatprep.subr.mxu0 %v3690
        %4367 = vmatpush1.msra.mxu0 %v3689
        %4368 = vmatprep.subr.mxu0 %v3697
        %4369 = vmatpush1.msra.mxu0 %v3696
        %4370 = vmatprep.subr.mxu0 %v3704
        %4371 = vmatpush1.msra.mxu0 %v3703
        %4372 = vmatprep.subr.mxu0 %v3711
        %4373 = vmatpush1.msra.mxu0 %v3710
        %4374 = vmatprep.subr.mxu0 %v3718
        %4375 = vmatpush1.msra.mxu0 %v3717
        %4376 = vmatprep.subr.mxu0 %v3725
        %4377 = vmatpush1.msra.mxu0 %v3724
        %4378 = vmatprep.subr.mxu0 %v3732
        %4379 = vmatpush1.msra.mxu0 %v3731
        %4380 = vmatprep.subr.mxu0 %v3739
        %4381 = vmatpush1.msra.mxu0 %v3738
        %4382 = vmatprep.subr.mxu0 %v3746
        %4383 = vmatpush1.msra.mxu0 %v3745
        %4384 = vmatprep.subr.mxu0 0.0
        %4385 = vmatpush1.msra.mxu0 0.0
        %4386 = vmatprep.subr.mxu0 0.0
        %4387 = vmatpush1.msra.mxu0 0.0
        %4388 = vmatprep.subr.mxu0 0.0
        %4389 = vmatpush1.msra.mxu0 0.0
        %4390 = vmatprep.subr.mxu0 0.0
        %4391 = vmatpush1.msra.mxu0 0.0
        %4392 = vmatprep.subr.mxu0 0.0
        %4393 = vmatpush1.msra.mxu0 0.0
        %4394 = vmatprep.subr.mxu0 0.0
        %4395 = vmatpush1.msra.mxu0 0.0
        %4396 = vmatprep.subr.mxu0 0.0
        %4397 = vmatpush1.msra.mxu0 0.0
        %4398 = vmatprep.subr.mxu0 0.0
        %4399 = vmatpush1.msra.mxu0 0.0
        %4400 = vmatprep.subr.mxu0 0.0
        %4401 = vmatpush1.msra.mxu0 0.0
        %4402 = vmatprep.subr.mxu0 0.0
        %4403 = vmatpush1.msra.mxu0 0.0
        %4404 = vmatprep.subr.mxu0 0.0
        %4405 = vmatpush1.msra.mxu0 0.0
        %4406 = vmatprep.subr.mxu0 0.0
        %4407 = vmatpush1.msra.mxu0 0.0
        %4408 = vmatprep.subr.mxu0 0.0
        %4409 = vmatpush1.msra.mxu0 0.0
        %4410 = vmatprep.subr.mxu0 0.0
        %4411 = vmatpush1.msra.mxu0 0.0
        %4412 = vmatprep.subr.mxu0 0.0
        %4413 = vmatpush1.msra.mxu0 0.0
        %4414 = vmatprep.subr.mxu0 0.0
        %4415 = vmatpush1.msra.mxu0 0.0
        %4416 = vmatprep.subr.mxu0 0.0
        %4417 = vmatpush1.msra.mxu0 0.0
        %4418 = vmatprep.subr.mxu0 0.0
        %4419 = vmatpush1.msra.mxu0 0.0
        %4420 = vmatprep.subr.mxu0 0.0
        %4421 = vmatpush1.msra.mxu0 0.0
        %4422 = vmatprep.subr.mxu0 0.0
        %4423 = vmatpush1.msra.mxu0 0.0
        %4424 = vmatprep.mubr.f32.mxu0 0.0
        %4425 = vmatmul.mubr.f32.gmra.mrb[0].mxu0 %v4082
        %v4426 = vpop.f32.mrb[0].mxu0
        %v4427 = vadd.f32 %v4338, %v4426
        %v4428 = vpop.f32.mrb[0].mxu0
        %v4429 = vadd.f32 %v4340, %v4428
        %4430 = vmatprep.mubr.f32.mxu0 0.0
        %4431 = vmatmul.mubr.f32.gmra.mrb[0].mxu0 %v4085
        %v4432 = vpop.f32.mrb[0].mxu0
        %v4433 = vadd.f32 %v4344, %v4432
        %v4434 = vpop.f32.mrb[0].mxu0
        %v4435 = vadd.f32 %v4346, %v4434
        %4436 = vmatprep.mubr.f32.mxu0 0.0
        %4437 = vmatmul.mubr.f32.gmra.mrb[0].mxu0 %v4088
        %v4438 = vpop.f32.mrb[0].mxu0
        %v4439 = vadd.f32 %v4350, %v4438
        %v4440 = vpop.f32.mrb[0].mxu0
        %v4441 = vadd.f32 %v4352, %v4440
        %4442 = vmatprep.mubr.f32.mxu0 0.0
        %4443 = vmatmul.mubr.f32.gmra.mrb[0].mxu0 %v4091
        %v4444 = vpop.f32.mrb[0].mxu0
        %v4445 = vadd.f32 %v4356, %v4444
        %v4446 = vpop.f32.mrb[0].mxu0
        %v4447 = vadd.f32 %v4358, %v4446
        %4448 = vdwg.mxu0
        %4449 = vmatprep.subr.mxu0 %v268
        %4450 = vmatpush1.msra.mxu0 %v267
        %4451 = vmatprep.subr.mxu0 %v277
        %4452 = vmatpush1.msra.mxu0 %v276
        %4453 = vmatprep.subr.mxu0 %v286
        %4454 = vmatpush1.msra.mxu0 %v285
        %4455 = vmatprep.subr.mxu0 %v295
        %4456 = vmatpush1.msra.mxu0 %v294
        %4457 = vmatprep.subr.mxu0 %v421
        %4458 = vmatpush1.msra.mxu0 %v420
        %4459 = vmatprep.subr.mxu0 %v427
        %4460 = vmatpush1.msra.mxu0 %v426
        %4461 = vmatprep.subr.mxu0 %v433
        %4462 = vmatpush1.msra.mxu0 %v432
        %4463 = vmatprep.subr.mxu0 %v439
        %4464 = vmatpush1.msra.mxu0 %v438
        %4465 = vmatprep.subr.mxu0 %v530
        %4466 = vmatpush1.msra.mxu0 %v529
        %4467 = vmatprep.subr.mxu0 %v536
        %4468 = vmatpush1.msra.mxu0 %v535
        %4469 = vmatprep.subr.mxu0 %v542
        %4470 = vmatpush1.msra.mxu0 %v541
        %4471 = vmatprep.subr.mxu0 %v548
        %4472 = vmatpush1.msra.mxu0 %v547
        %4473 = vmatprep.subr.mxu0 %v639
        %4474 = vmatpush1.msra.mxu0 %v638
        %4475 = vmatprep.subr.mxu0 %v645
        %4476 = vmatpush1.msra.mxu0 %v644
        %4477 = vmatprep.subr.mxu0 %v651
        %4478 = vmatpush1.msra.mxu0 %v650
        %4479 = vmatprep.subr.mxu0 %v657
        %4480 = vmatpush1.msra.mxu0 %v656
        %4481 = vmatprep.subr.mxu0 %v748
        %4482 = vmatpush1.msra.mxu0 %v747
        %4483 = vmatprep.subr.mxu0 %v754
        %4484 = vmatpush1.msra.mxu0 %v753
        %4485 = vmatprep.subr.mxu0 %v760
        %4486 = vmatpush1.msra.mxu0 %v759
        %4487 = vmatprep.subr.mxu0 %v766
        %4488 = vmatpush1.msra.mxu0 %v765
        %4489 = vmatprep.subr.mxu0 %v857
        %4490 = vmatpush1.msra.mxu0 %v856
        %4491 = vmatprep.subr.mxu0 %v863
        %4492 = vmatpush1.msra.mxu0 %v862
        %4493 = vmatprep.subr.mxu0 %v869
        %4494 = vmatpush1.msra.mxu0 %v868
        %4495 = vmatprep.subr.mxu0 %v875
        %4496 = vmatpush1.msra.mxu0 %v874
        %4497 = vmatprep.subr.mxu0 %v966
        %4498 = vmatpush1.msra.mxu0 %v965
        %4499 = vmatprep.subr.mxu0 %v972
        %4500 = vmatpush1.msra.mxu0 %v971
        %4501 = vmatprep.subr.mxu0 %v978
        %4502 = vmatpush1.msra.mxu0 %v977
        %4503 = vmatprep.subr.mxu0 %v984
        %4504 = vmatpush1.msra.mxu0 %v983
        %4505 = vmatprep.subr.mxu0 %v1075
        %4506 = vmatpush1.msra.mxu0 %v1074
        %4507 = vmatprep.subr.mxu0 %v1081
        %4508 = vmatpush1.msra.mxu0 %v1080
        %4509 = vmatprep.subr.mxu0 %v1087
        %4510 = vmatpush1.msra.mxu0 %v1086
        %4511 = vmatprep.subr.mxu0 %v1093
        %4512 = vmatpush1.msra.mxu0 %v1092
        %4513 = vmatprep.mubr.f32.mxu0 %v302
        %4514 = vmatmul.mubr.f32.gmra.mrb[0].mxu0 %v301
        %v4515 = vpop.f32.mrb[0].mxu0
        %v4516 = vadd.f32 %v4063, %v4515
        %v4517 = vpop.f32.mrb[0].mxu0
        %v4518 = vadd.f32 %v4063, %v4517
        %4519 = vmatprep.mubr.f32.mxu0 %v309
        %4520 = vmatmul.mubr.f32.gmra.mrb[0].mxu0 %v308
        %v4521 = vpop.f32.mrb[0].mxu0
        %v4522 = vadd.f32 %v4068, %v4521
        %v4523 = vpop.f32.mrb[0].mxu0
        %v4524 = vadd.f32 %v4068, %v4523
        %4525 = vmatprep.mubr.f32.mxu0 %v316
        %4526 = vmatmul.mubr.f32.gmra.mrb[0].mxu0 %v315
        %v4527 = vpop.f32.mrb[0].mxu0
        %v4528 = vadd.f32 %v4073, %v4527
        %v4529 = vpop.f32.mrb[0].mxu0
        %v4530 = vadd.f32 %v4073, %v4529
        %4531 = vmatprep.mubr.f32.mxu0 %v323
        %4532 = vmatmul.mubr.f32.gmra.mrb[0].mxu0 %v322
        %v4533 = vpop.f32.mrb[0].mxu0
        %v4534 = vadd.f32 %v4078, %v4533
        %v4535 = vpop.f32.mrb[0].mxu0
        %v4536 = vadd.f32 %v4078, %v4535
        %4537 = vdwg.mxu0
        %4538 = vmatprep.subr.mxu0 %v1184
        %4539 = vmatpush1.msra.mxu0 %v1183
        %4540 = vmatprep.subr.mxu0 %v1190
        %4541 = vmatpush1.msra.mxu0 %v1189
        %4542 = vmatprep.subr.mxu0 %v1196
        %4543 = vmatpush1.msra.mxu0 %v1195
        %4544 = vmatprep.subr.mxu0 %v1202
        %4545 = vmatpush1.msra.mxu0 %v1201
        %4546 = vmatprep.subr.mxu0 %v1305
        %4547 = vmatpush1.msra.mxu0 %v1304
        %4548 = vmatprep.subr.mxu0 %v1312
        %4549 = vmatpush1.msra.mxu0 %v1311
        %4550 = vmatprep.subr.mxu0 %v1319
        %4551 = vmatpush1.msra.mxu0 %v1318
        %4552 = vmatprep.subr.mxu0 %v1326
        %4553 = vmatpush1.msra.mxu0 %v1325
        %4554 = vmatprep.subr.mxu0 %v1426
        %4555 = vmatpush1.msra.mxu0 %v1425
        %4556 = vmatprep.subr.mxu0 %v1433
        %4557 = vmatpush1.msra.mxu0 %v1432
        %4558 = vmatprep.subr.mxu0 %v1440
        %4559 = vmatpush1.msra.mxu0 %v1439
        %4560 = vmatprep.subr.mxu0 %v1447
        %4561 = vmatpush1.msra.mxu0 %v1446
        %4562 = vmatprep.subr.mxu0 %v1547
        %4563 = vmatpush1.msra.mxu0 %v1546
        %4564 = vmatprep.subr.mxu0 %v1554
        %4565 = vmatpush1.msra.mxu0 %v1553
        %4566 = vmatprep.subr.mxu0 %v1561
        %4567 = vmatpush1.msra.mxu0 %v1560
        %4568 = vmatprep.subr.mxu0 %v1568
        %4569 = vmatpush1.msra.mxu0 %v1567
        %4570 = vmatprep.subr.mxu0 %v1668
        %4571 = vmatpush1.msra.mxu0 %v1667
        %4572 = vmatprep.subr.mxu0 %v1675
        %4573 = vmatpush1.msra.mxu0 %v1674
        %4574 = vmatprep.subr.mxu0 %v1682
        %4575 = vmatpush1.msra.mxu0 %v1681
        %4576 = vmatprep.subr.mxu0 %v1689
        %4577 = vmatpush1.msra.mxu0 %v1688
        %4578 = vmatprep.subr.mxu0 %v1789
        %4579 = vmatpush1.msra.mxu0 %v1788
        %4580 = vmatprep.subr.mxu0 %v1796
        %4581 = vmatpush1.msra.mxu0 %v1795
        %4582 = vmatprep.subr.mxu0 %v1803
        %4583 = vmatpush1.msra.mxu0 %v1802
        %4584 = vmatprep.subr.mxu0 %v1810
        %4585 = vmatpush1.msra.mxu0 %v1809
        %4586 = vmatprep.subr.mxu0 %v1910
        %4587 = vmatpush1.msra.mxu0 %v1909
        %4588 = vmatprep.subr.mxu0 %v1917
        %4589 = vmatpush1.msra.mxu0 %v1916
        %4590 = vmatprep.subr.mxu0 %v1924
        %4591 = vmatpush1.msra.mxu0 %v1923
        %4592 = vmatprep.subr.mxu0 %v1931
        %4593 = vmatpush1.msra.mxu0 %v1930
        %4594 = vmatprep.subr.mxu0 %v2031
        %4595 = vmatpush1.msra.mxu0 %v2030
        %4596 = vmatprep.subr.mxu0 %v2038
        %4597 = vmatpush1.msra.mxu0 %v2037
        %4598 = vmatprep.subr.mxu0 %v2045
        %4599 = vmatpush1.msra.mxu0 %v2044
        %4600 = vmatprep.subr.mxu0 %v2052
        %4601 = vmatpush1.msra.mxu0 %v2051
        %4602 = vmatprep.mubr.f32.mxu0 %v304
        %4603 = vmatmul.mubr.f32.gmra.mrb[0].mxu0 %v303
        %v4604 = vpop.f32.mrb[0].mxu0
        %v4605 = vadd.f32 %v4516, %v4604
        %v4606 = vpop.f32.mrb[0].mxu0
        %v4607 = vadd.f32 %v4518, %v4606
        %4608 = vmatprep.mubr.f32.mxu0 %v311
        %4609 = vmatmul.mubr.f32.gmra.mrb[0].mxu0 %v310
        %v4610 = vpop.f32.mrb[0].mxu0
        %v4611 = vadd.f32 %v4522, %v4610
        %v4612 = vpop.f32.mrb[0].mxu0
        %v4613 = vadd.f32 %v4524, %v4612
        %4614 = vmatprep.mubr.f32.mxu0 %v318
        %4615 = vmatmul.mubr.f32.gmra.mrb[0].mxu0 %v317
        %v4616 = vpop.f32.mrb[0].mxu0
        %v4617 = vadd.f32 %v4528, %v4616
        %v4618 = vpop.f32.mrb[0].mxu0
        %v4619 = vadd.f32 %v4530, %v4618
        %4620 = vmatprep.mubr.f32.mxu0 %v325
        %4621 = vmatmul.mubr.f32.gmra.mrb[0].mxu0 %v324
        %v4622 = vpop.f32.mrb[0].mxu0
        %v4623 = vadd.f32 %v4534, %v4622
        %v4624 = vpop.f32.mrb[0].mxu0
        %v4625 = vadd.f32 %v4536, %v4624
        %4626 = vdwg.mxu0
        %4627 = vmatprep.subr.mxu0 %v3447
        %4628 = vmatpush1.msra.mxu0 %v3446
        %4629 = vmatprep.subr.mxu0 %v3454
        %4630 = vmatpush1.msra.mxu0 %v3453
        %4631 = vmatprep.subr.mxu0 %v3461
        %4632 = vmatpush1.msra.mxu0 %v3460
        %4633 = vmatprep.subr.mxu0 %v3468
        %4634 = vmatpush1.msra.mxu0 %v3467
        %4635 = vmatprep.subr.mxu0 %v3475
        %4636 = vmatpush1.msra.mxu0 %v3474
        %4637 = vmatprep.subr.mxu0 %v3482
        %4638 = vmatpush1.msra.mxu0 %v3481
        %4639 = vmatprep.subr.mxu0 %v3489
        %4640 = vmatpush1.msra.mxu0 %v3488
        %4641 = vmatprep.subr.mxu0 %v3496
        %4642 = vmatpush1.msra.mxu0 %v3495
        %4643 = vmatprep.subr.mxu0 %v3503
        %4644 = vmatpush1.msra.mxu0 %v3502
        %4645 = vmatprep.subr.mxu0 %v3510
        %4646 = vmatpush1.msra.mxu0 %v3509
        %4647 = vmatprep.subr.mxu0 %v3517
        %4648 = vmatpush1.msra.mxu0 %v3516
        %4649 = vmatprep.subr.mxu0 %v3524
        %4650 = vmatpush1.msra.mxu0 %v3523
        %4651 = vmatprep.subr.mxu0 %v3531
        %4652 = vmatpush1.msra.mxu0 %v3530
        %4653 = vmatprep.subr.mxu0 %v3538
        %4654 = vmatpush1.msra.mxu0 %v3537
        %4655 = vmatprep.subr.mxu0 %v3545
        %4656 = vmatpush1.msra.mxu0 %v3544
        %4657 = vmatprep.subr.mxu0 %v3552
        %4658 = vmatpush1.msra.mxu0 %v3551
        %4659 = vmatprep.subr.mxu0 %v3559
        %4660 = vmatpush1.msra.mxu0 %v3558
        %4661 = vmatprep.subr.mxu0 %v3566
        %4662 = vmatpush1.msra.mxu0 %v3565
        %4663 = vmatprep.subr.mxu0 %v3573
        %4664 = vmatpush1.msra.mxu0 %v3572
        %4665 = vmatprep.subr.mxu0 %v3580
        %4666 = vmatpush1.msra.mxu0 %v3579
        %4667 = vmatprep.subr.mxu0 %v3587
        %4668 = vmatpush1.msra.mxu0 %v3586
        %4669 = vmatprep.subr.mxu0 %v3594
        %4670 = vmatpush1.msra.mxu0 %v3593
        %4671 = vmatprep.subr.mxu0 %v3601
        %4672 = vmatpush1.msra.mxu0 %v3600
        %4673 = vmatprep.subr.mxu0 %v3608
        %4674 = vmatpush1.msra.mxu0 %v3607
        %4675 = vmatprep.subr.mxu0 %v3615
        %4676 = vmatpush1.msra.mxu0 %v3614
        %4677 = vmatprep.subr.mxu0 %v3622
        %4678 = vmatpush1.msra.mxu0 %v3621
        %4679 = vmatprep.subr.mxu0 %v3629
        %4680 = vmatpush1.msra.mxu0 %v3628
        %4681 = vmatprep.subr.mxu0 %v3636
        %4682 = vmatpush1.msra.mxu0 %v3635
        %4683 = vmatprep.subr.mxu0 %v3643
        %4684 = vmatpush1.msra.mxu0 %v3642
        %4685 = vmatprep.subr.mxu0 %v3650
        %4686 = vmatpush1.msra.mxu0 %v3649
        %4687 = vmatprep.subr.mxu0 %v3657
        %4688 = vmatpush1.msra.mxu0 %v3656
        %4689 = vmatprep.subr.mxu0 %v3664
        %4690 = vmatpush1.msra.mxu0 %v3663
        %4691 = vmatprep.mubr.f32.mxu0 %v306
        %4692 = vmatmul.mubr.f32.gmra.mrb[0].mxu0 %v305
        %v4693 = vpop.f32.mrb[0].mxu0
        %v4694 = vadd.f32 %v4605, %v4693
        %v4695 = vpop.f32.mrb[0].mxu0
        %v4696 = vadd.f32 %v4607, %v4695
        %4697 = vmatprep.mubr.f32.mxu0 %v313
        %4698 = vmatmul.mubr.f32.gmra.mrb[0].mxu0 %v312
        %v4699 = vpop.f32.mrb[0].mxu0
        %v4700 = vadd.f32 %v4611, %v4699
        %v4701 = vpop.f32.mrb[0].mxu0
        %v4702 = vadd.f32 %v4613, %v4701
        %4703 = vmatprep.mubr.f32.mxu0 %v320
        %4704 = vmatmul.mubr.f32.gmra.mrb[0].mxu0 %v319
        %v4705 = vpop.f32.mrb[0].mxu0
        %v4706 = vadd.f32 %v4617, %v4705
        %v4707 = vpop.f32.mrb[0].mxu0
        %v4708 = vadd.f32 %v4619, %v4707
        %4709 = vmatprep.mubr.f32.mxu0 %v327
        %4710 = vmatmul.mubr.f32.gmra.mrb[0].mxu0 %v326
        %v4711 = vpop.f32.mrb[0].mxu0
        %v4712 = vadd.f32 %v4623, %v4711
        %v4713 = vpop.f32.mrb[0].mxu0
        %v4714 = vadd.f32 %v4625, %v4713
        %4715 = vdwg.mxu0
        %4716 = vmatprep.subr.mxu0 %v3671
        %4717 = vmatpush1.msra.mxu0 %v3670
        %4718 = vmatprep.subr.mxu0 %v3678
        %4719 = vmatpush1.msra.mxu0 %v3677
        %4720 = vmatprep.subr.mxu0 %v3685
        %4721 = vmatpush1.msra.mxu0 %v3684
        %4722 = vmatprep.subr.mxu0 %v3692
        %4723 = vmatpush1.msra.mxu0 %v3691
        %4724 = vmatprep.subr.mxu0 %v3699
        %4725 = vmatpush1.msra.mxu0 %v3698
        %4726 = vmatprep.subr.mxu0 %v3706
        %4727 = vmatpush1.msra.mxu0 %v3705
        %4728 = vmatprep.subr.mxu0 %v3713
        %4729 = vmatpush1.msra.mxu0 %v3712
        %4730 = vmatprep.subr.mxu0 %v3720
        %4731 = vmatpush1.msra.mxu0 %v3719
        %4732 = vmatprep.subr.mxu0 %v3727
        %4733 = vmatpush1.msra.mxu0 %v3726
        %4734 = vmatprep.subr.mxu0 %v3734
        %4735 = vmatpush1.msra.mxu0 %v3733
        %4736 = vmatprep.subr.mxu0 %v3741
        %4737 = vmatpush1.msra.mxu0 %v3740
        %4738 = vmatprep.subr.mxu0 %v3748
        %4739 = vmatpush1.msra.mxu0 %v3747
        %4740 = vmatprep.subr.mxu0 0.0
        %4741 = vmatpush1.msra.mxu0 0.0
        %4742 = vmatprep.subr.mxu0 0.0
        %4743 = vmatpush1.msra.mxu0 0.0
        %4744 = vmatprep.subr.mxu0 0.0
        %4745 = vmatpush1.msra.mxu0 0.0
        %4746 = vmatprep.subr.mxu0 0.0
        %4747 = vmatpush1.msra.mxu0 0.0
        %4748 = vmatprep.subr.mxu0 0.0
        %4749 = vmatpush1.msra.mxu0 0.0
        %4750 = vmatprep.subr.mxu0 0.0
        %4751 = vmatpush1.msra.mxu0 0.0
        %4752 = vmatprep.subr.mxu0 0.0
        %4753 = vmatpush1.msra.mxu0 0.0
        %4754 = vmatprep.subr.mxu0 0.0
        %4755 = vmatpush1.msra.mxu0 0.0
        %4756 = vmatprep.subr.mxu0 0.0
        %4757 = vmatpush1.msra.mxu0 0.0
        %4758 = vmatprep.subr.mxu0 0.0
        %4759 = vmatpush1.msra.mxu0 0.0
        %4760 = vmatprep.subr.mxu0 0.0
        %4761 = vmatpush1.msra.mxu0 0.0
        %4762 = vmatprep.subr.mxu0 0.0
        %4763 = vmatpush1.msra.mxu0 0.0
        %4764 = vmatprep.subr.mxu0 0.0
        %4765 = vmatpush1.msra.mxu0 0.0
        %4766 = vmatprep.subr.mxu0 0.0
        %4767 = vmatpush1.msra.mxu0 0.0
        %4768 = vmatprep.subr.mxu0 0.0
        %4769 = vmatpush1.msra.mxu0 0.0
        %4770 = vmatprep.subr.mxu0 0.0
        %4771 = vmatpush1.msra.mxu0 0.0
        %4772 = vmatprep.subr.mxu0 0.0
        %4773 = vmatpush1.msra.mxu0 0.0
        %4774 = vmatprep.subr.mxu0 0.0
        %4775 = vmatpush1.msra.mxu0 0.0
        %4776 = vmatprep.subr.mxu0 0.0
        %4777 = vmatpush1.msra.mxu0 0.0
        %4778 = vmatprep.subr.mxu0 0.0
        %4779 = vmatpush1.msra.mxu0 0.0
        %4780 = vmatprep.mubr.f32.mxu0 0.0
        %4781 = vmatmul.mubr.f32.gmra.mrb[0].mxu0 %v4082
        %v4782 = vpop.f32.mrb[0].mxu0
        %v4783 = vadd.f32 %v4694, %v4782
        %v4784 = vpop.f32.mrb[0].mxu0
        %v4785 = vadd.f32 %v4696, %v4784
        %4786 = vmatprep.mubr.f32.mxu0 0.0
        %4787 = vmatmul.mubr.f32.gmra.mrb[0].mxu0 %v4085
        %v4788 = vpop.f32.mrb[0].mxu0
        %v4789 = vadd.f32 %v4700, %v4788
        %v4790 = vpop.f32.mrb[0].mxu0
        %v4791 = vadd.f32 %v4702, %v4790
        %4792 = vmatprep.mubr.f32.mxu0 0.0
        %4793 = vmatmul.mubr.f32.gmra.mrb[0].mxu0 %v4088
        %v4794 = vpop.f32.mrb[0].mxu0
        %v4795 = vadd.f32 %v4706, %v4794
        %v4796 = vpop.f32.mrb[0].mxu0
        %v4797 = vadd.f32 %v4708, %v4796
        %4798 = vmatprep.mubr.f32.mxu0 0.0
        %4799 = vmatmul.mubr.f32.gmra.mrb[0].mxu0 %v4091
        %v4800 = vpop.f32.mrb[0].mxu0
        %v4801 = vadd.f32 %v4712, %v4800
        %v4802 = vpop.f32.mrb[0].mxu0
        %v4803 = vadd.f32 %v4714, %v4802
        %4804 = vdwg.mxu0
        %4805 = vmatprep.subr.mxu0 %v270
        %4806 = vmatpush1.msra.mxu0 %v269
        %4807 = vmatprep.subr.mxu0 %v279
        %4808 = vmatpush1.msra.mxu0 %v278
        %4809 = vmatprep.subr.mxu0 %v288
        %4810 = vmatpush1.msra.mxu0 %v287
        %4811 = vmatprep.subr.mxu0 %v297
        %4812 = vmatpush1.msra.mxu0 %v296
        %4813 = vmatprep.subr.mxu0 %v423
        %4814 = vmatpush1.msra.mxu0 %v422
        %4815 = vmatprep.subr.mxu0 %v429
        %4816 = vmatpush1.msra.mxu0 %v428
        %4817 = vmatprep.subr.mxu0 %v435
        %4818 = vmatpush1.msra.mxu0 %v434
        %4819 = vmatprep.subr.mxu0 %v441
        %4820 = vmatpush1.msra.mxu0 %v440
        %4821 = vmatprep.subr.mxu0 %v532
        %4822 = vmatpush1.msra.mxu0 %v531
        %4823 = vmatprep.subr.mxu0 %v538
        %4824 = vmatpush1.msra.mxu0 %v537
        %4825 = vmatprep.subr.mxu0 %v544
        %4826 = vmatpush1.msra.mxu0 %v543
        %4827 = vmatprep.subr.mxu0 %v550
        %4828 = vmatpush1.msra.mxu0 %v549
        %4829 = vmatprep.subr.mxu0 %v641
        %4830 = vmatpush1.msra.mxu0 %v640
        %4831 = vmatprep.subr.mxu0 %v647
        %4832 = vmatpush1.msra.mxu0 %v646
        %4833 = vmatprep.subr.mxu0 %v653
        %4834 = vmatpush1.msra.mxu0 %v652
        %4835 = vmatprep.subr.mxu0 %v659
        %4836 = vmatpush1.msra.mxu0 %v658
        %4837 = vmatprep.subr.mxu0 %v750
        %4838 = vmatpush1.msra.mxu0 %v749
        %4839 = vmatprep.subr.mxu0 %v756
        %4840 = vmatpush1.msra.mxu0 %v755
        %4841 = vmatprep.subr.mxu0 %v762
        %4842 = vmatpush1.msra.mxu0 %v761
        %4843 = vmatprep.subr.mxu0 %v768
        %4844 = vmatpush1.msra.mxu0 %v767
        %4845 = vmatprep.subr.mxu0 %v859
        %4846 = vmatpush1.msra.mxu0 %v858
        %4847 = vmatprep.subr.mxu0 %v865
        %4848 = vmatpush1.msra.mxu0 %v864
        %4849 = vmatprep.subr.mxu0 %v871
        %4850 = vmatpush1.msra.mxu0 %v870
        %4851 = vmatprep.subr.mxu0 %v877
        %4852 = vmatpush1.msra.mxu0 %v876
        %4853 = vmatprep.subr.mxu0 %v968
        %4854 = vmatpush1.msra.mxu0 %v967
        %4855 = vmatprep.subr.mxu0 %v974
        %4856 = vmatpush1.msra.mxu0 %v973
        %4857 = vmatprep.subr.mxu0 %v980
        %4858 = vmatpush1.msra.mxu0 %v979
        %4859 = vmatprep.subr.mxu0 %v986
        %4860 = vmatpush1.msra.mxu0 %v985
        %4861 = vmatprep.subr.mxu0 %v1077
        %4862 = vmatpush1.msra.mxu0 %v1076
        %4863 = vmatprep.subr.mxu0 %v1083
        %4864 = vmatpush1.msra.mxu0 %v1082
        %4865 = vmatprep.subr.mxu0 %v1089
        %4866 = vmatpush1.msra.mxu0 %v1088
        %4867 = vmatprep.subr.mxu0 %v1095
        %4868 = vmatpush1.msra.mxu0 %v1094
        %4869 = vmatprep.mubr.f32.mxu0 %v302
        %4870 = vmatmul.mubr.f32.gmra.mrb[0].mxu0 %v301
        %v4871 = vpop.f32.mrb[0].mxu0
        %v4872 = vadd.f32 %v4063, %v4871
        %v4873 = vpop.f32.mrb[0].mxu0
        %v4874 = vadd.f32 %v4063, %v4873
        %4875 = vmatprep.mubr.f32.mxu0 %v309
        %4876 = vmatmul.mubr.f32.gmra.mrb[0].mxu0 %v308
        %v4877 = vpop.f32.mrb[0].mxu0
        %v4878 = vadd.f32 %v4068, %v4877
        %v4879 = vpop.f32.mrb[0].mxu0
        %v4880 = vadd.f32 %v4068, %v4879
        %4881 = vmatprep.mubr.f32.mxu0 %v316
        %4882 = vmatmul.mubr.f32.gmra.mrb[0].mxu0 %v315
        %v4883 = vpop.f32.mrb[0].mxu0
        %v4884 = vadd.f32 %v4073, %v4883
        %v4885 = vpop.f32.mrb[0].mxu0
        %v4886 = vadd.f32 %v4073, %v4885
        %4887 = vmatprep.mubr.f32.mxu0 %v323
        %4888 = vmatmul.mubr.f32.gmra.mrb[0].mxu0 %v322
        %v4889 = vpop.f32.mrb[0].mxu0
        %v4890 = vadd.f32 %v4078, %v4889
        %v4891 = vpop.f32.mrb[0].mxu0
        %v4892 = vadd.f32 %v4078, %v4891
        %4893 = vdwg.mxu0
        %4894 = vmatprep.subr.mxu0 %v1186
        %4895 = vmatpush1.msra.mxu0 %v1185
        %4896 = vmatprep.subr.mxu0 %v1192
        %4897 = vmatpush1.msra.mxu0 %v1191
        %4898 = vmatprep.subr.mxu0 %v1198
        %4899 = vmatpush1.msra.mxu0 %v1197
        %4900 = vmatprep.subr.mxu0 %v1204
        %4901 = vmatpush1.msra.mxu0 %v1203
        %4902 = vmatprep.subr.mxu0 %v1307
        %4903 = vmatpush1.msra.mxu0 %v1306
        %4904 = vmatprep.subr.mxu0 %v1314
        %4905 = vmatpush1.msra.mxu0 %v1313
        %4906 = vmatprep.subr.mxu0 %v1321
        %4907 = vmatpush1.msra.mxu0 %v1320
        %4908 = vmatprep.subr.mxu0 %v1328
        %4909 = vmatpush1.msra.mxu0 %v1327
        %4910 = vmatprep.subr.mxu0 %v1428
        %4911 = vmatpush1.msra.mxu0 %v1427
        %4912 = vmatprep.subr.mxu0 %v1435
        %4913 = vmatpush1.msra.mxu0 %v1434
        %4914 = vmatprep.subr.mxu0 %v1442
        %4915 = vmatpush1.msra.mxu0 %v1441
        %4916 = vmatprep.subr.mxu0 %v1449
        %4917 = vmatpush1.msra.mxu0 %v1448
        %4918 = vmatprep.subr.mxu0 %v1549
        %4919 = vmatpush1.msra.mxu0 %v1548
        %4920 = vmatprep.subr.mxu0 %v1556
        %4921 = vmatpush1.msra.mxu0 %v1555
        %4922 = vmatprep.subr.mxu0 %v1563
        %4923 = vmatpush1.msra.mxu0 %v1562
        %4924 = vmatprep.subr.mxu0 %v1570
        %4925 = vmatpush1.msra.mxu0 %v1569
        %4926 = vmatprep.subr.mxu0 %v1670
        %4927 = vmatpush1.msra.mxu0 %v1669
        %4928 = vmatprep.subr.mxu0 %v1677
        %4929 = vmatpush1.msra.mxu0 %v1676
        %4930 = vmatprep.subr.mxu0 %v1684
        %4931 = vmatpush1.msra.mxu0 %v1683
        %4932 = vmatprep.subr.mxu0 %v1691
        %4933 = vmatpush1.msra.mxu0 %v1690
        %4934 = vmatprep.subr.mxu0 %v1791
        %4935 = vmatpush1.msra.mxu0 %v1790
        %4936 = vmatprep.subr.mxu0 %v1798
        %4937 = vmatpush1.msra.mxu0 %v1797
        %4938 = vmatprep.subr.mxu0 %v1805
        %4939 = vmatpush1.msra.mxu0 %v1804
        %4940 = vmatprep.subr.mxu0 %v1812
        %4941 = vmatpush1.msra.mxu0 %v1811
        %4942 = vmatprep.subr.mxu0 %v1912
        %4943 = vmatpush1.msra.mxu0 %v1911
        %4944 = vmatprep.subr.mxu0 %v1919
        %4945 = vmatpush1.msra.mxu0 %v1918
        %4946 = vmatprep.subr.mxu0 %v1926
        %4947 = vmatpush1.msra.mxu0 %v1925
        %4948 = vmatprep.subr.mxu0 %v1933
        %4949 = vmatpush1.msra.mxu0 %v1932
        %4950 = vmatprep.subr.mxu0 %v2033
        %4951 = vmatpush1.msra.mxu0 %v2032
        %4952 = vmatprep.subr.mxu0 %v2040
        %4953 = vmatpush1.msra.mxu0 %v2039
        %4954 = vmatprep.subr.mxu0 %v2047
        %4955 = vmatpush1.msra.mxu0 %v2046
        %4956 = vmatprep.subr.mxu0 %v2054
        %4957 = vmatpush1.msra.mxu0 %v2053
        %4958 = vmatprep.mubr.f32.mxu0 %v304
        %4959 = vmatmul.mubr.f32.gmra.mrb[0].mxu0 %v303
        %v4960 = vpop.f32.mrb[0].mxu0
        %v4961 = vadd.f32 %v4872, %v4960
        %v4962 = vpop.f32.mrb[0].mxu0
        %v4963 = vadd.f32 %v4874, %v4962
        %4964 = vmatprep.mubr.f32.mxu0 %v311
        %4965 = vmatmul.mubr.f32.gmra.mrb[0].mxu0 %v310
        %v4966 = vpop.f32.mrb[0].mxu0
        %v4967 = vadd.f32 %v4878, %v4966
        %v4968 = vpop.f32.mrb[0].mxu0
        %v4969 = vadd.f32 %v4880, %v4968
        %4970 = vmatprep.mubr.f32.mxu0 %v318
        %4971 = vmatmul.mubr.f32.gmra.mrb[0].mxu0 %v317
        %v4972 = vpop.f32.mrb[0].mxu0
        %v4973 = vadd.f32 %v4884, %v4972
        %v4974 = vpop.f32.mrb[0].mxu0
        %v4975 = vadd.f32 %v4886, %v4974
        %4976 = vmatprep.mubr.f32.mxu0 %v325
        %4977 = vmatmul.mubr.f32.gmra.mrb[0].mxu0 %v324
        %v4978 = vpop.f32.mrb[0].mxu0
        %v4979 = vadd.f32 %v4890, %v4978
        %v4980 = vpop.f32.mrb[0].mxu0
        %v4981 = vadd.f32 %v4892, %v4980
        %4982 = vdwg.mxu0
        %4983 = vmatprep.subr.mxu0 %v3449
        %4984 = vmatpush1.msra.mxu0 %v3448
        %4985 = vmatprep.subr.mxu0 %v3456
        %4986 = vmatpush1.msra.mxu0 %v3455
        %4987 = vmatprep.subr.mxu0 %v3463
        %4988 = vmatpush1.msra.mxu0 %v3462
        %4989 = vmatprep.subr.mxu0 %v3470
        %4990 = vmatpush1.msra.mxu0 %v3469
        %4991 = vmatprep.subr.mxu0 %v3477
        %4992 = vmatpush1.msra.mxu0 %v3476
        %4993 = vmatprep.subr.mxu0 %v3484
        %4994 = vmatpush1.msra.mxu0 %v3483
        %4995 = vmatprep.subr.mxu0 %v3491
        %4996 = vmatpush1.msra.mxu0 %v3490
        %4997 = vmatprep.subr.mxu0 %v3498
        %4998 = vmatpush1.msra.mxu0 %v3497
        %4999 = vmatprep.subr.mxu0 %v3505
        %5000 = vmatpush1.msra.mxu0 %v3504
        %5001 = vmatprep.subr.mxu0 %v3512
        %5002 = vmatpush1.msra.mxu0 %v3511
        %5003 = vmatprep.subr.mxu0 %v3519
        %5004 = vmatpush1.msra.mxu0 %v3518
        %5005 = vmatprep.subr.mxu0 %v3526
        %5006 = vmatpush1.msra.mxu0 %v3525
        %5007 = vmatprep.subr.mxu0 %v3533
        %5008 = vmatpush1.msra.mxu0 %v3532
        %5009 = vmatprep.subr.mxu0 %v3540
        %5010 = vmatpush1.msra.mxu0 %v3539
        %5011 = vmatprep.subr.mxu0 %v3547
        %5012 = vmatpush1.msra.mxu0 %v3546
        %5013 = vmatprep.subr.mxu0 %v3554
        %5014 = vmatpush1.msra.mxu0 %v3553
        %5015 = vmatprep.subr.mxu0 %v3561
        %5016 = vmatpush1.msra.mxu0 %v3560
        %5017 = vmatprep.subr.mxu0 %v3568
        %5018 = vmatpush1.msra.mxu0 %v3567
        %5019 = vmatprep.subr.mxu0 %v3575
        %5020 = vmatpush1.msra.mxu0 %v3574
        %5021 = vmatprep.subr.mxu0 %v3582
        %5022 = vmatpush1.msra.mxu0 %v3581
        %5023 = vmatprep.subr.mxu0 %v3589
        %5024 = vmatpush1.msra.mxu0 %v3588
        %5025 = vmatprep.subr.mxu0 %v3596
        %5026 = vmatpush1.msra.mxu0 %v3595
        %5027 = vmatprep.subr.mxu0 %v3603
        %5028 = vmatpush1.msra.mxu0 %v3602
        %5029 = vmatprep.subr.mxu0 %v3610
        %5030 = vmatpush1.msra.mxu0 %v3609
        %5031 = vmatprep.subr.mxu0 %v3617
        %5032 = vmatpush1.msra.mxu0 %v3616
        %5033 = vmatprep.subr.mxu0 %v3624
        %5034 = vmatpush1.msra.mxu0 %v3623
        %5035 = vmatprep.subr.mxu0 %v3631
        %5036 = vmatpush1.msra.mxu0 %v3630
        %5037 = vmatprep.subr.mxu0 %v3638
        %5038 = vmatpush1.msra.mxu0 %v3637
        %5039 = vmatprep.subr.mxu0 %v3645
        %5040 = vmatpush1.msra.mxu0 %v3644
        %5041 = vmatprep.subr.mxu0 %v3652
        %5042 = vmatpush1.msra.mxu0 %v3651
        %5043 = vmatprep.subr.mxu0 %v3659
        %5044 = vmatpush1.msra.mxu0 %v3658
        %5045 = vmatprep.subr.mxu0 %v3666
        %5046 = vmatpush1.msra.mxu0 %v3665
        %5047 = vmatprep.mubr.f32.mxu0 %v306
        %5048 = vmatmul.mubr.f32.gmra.mrb[0].mxu0 %v305
        %v5049 = vpop.f32.mrb[0].mxu0
        %v5050 = vadd.f32 %v4961, %v5049
        %v5051 = vpop.f32.mrb[0].mxu0
        %v5052 = vadd.f32 %v4963, %v5051
        %5053 = vmatprep.mubr.f32.mxu0 %v313
        %5054 = vmatmul.mubr.f32.gmra.mrb[0].mxu0 %v312
        %v5055 = vpop.f32.mrb[0].mxu0
        %v5056 = vadd.f32 %v4967, %v5055
        %v5057 = vpop.f32.mrb[0].mxu0
        %v5058 = vadd.f32 %v4969, %v5057
        %5059 = vmatprep.mubr.f32.mxu0 %v320
        %5060 = vmatmul.mubr.f32.gmra.mrb[0].mxu0 %v319
        %v5061 = vpop.f32.mrb[0].mxu0
        %v5062 = vadd.f32 %v4973, %v5061
        %v5063 = vpop.f32.mrb[0].mxu0
        %v5064 = vadd.f32 %v4975, %v5063
        %5065 = vmatprep.mubr.f32.mxu0 %v327
        %5066 = vmatmul.mubr.f32.gmra.mrb[0].mxu0 %v326
        %v5067 = vpop.f32.mrb[0].mxu0
        %v5068 = vadd.f32 %v4979, %v5067
        %v5069 = vpop.f32.mrb[0].mxu0
        %v5070 = vadd.f32 %v4981, %v5069
        %5071 = vdwg.mxu0
        %5072 = vmatprep.subr.mxu0 %v3673
        %5073 = vmatpush1.msra.mxu0 %v3672
        %5074 = vmatprep.subr.mxu0 %v3680
        %5075 = vmatpush1.msra.mxu0 %v3679
        %5076 = vmatprep.subr.mxu0 %v3687
        %5077 = vmatpush1.msra.mxu0 %v3686
        %5078 = vmatprep.subr.mxu0 %v3694
        %5079 = vmatpush1.msra.mxu0 %v3693
        %5080 = vmatprep.subr.mxu0 %v3701
        %5081 = vmatpush1.msra.mxu0 %v3700
        %5082 = vmatprep.subr.mxu0 %v3708
        %5083 = vmatpush1.msra.mxu0 %v3707
        %5084 = vmatprep.subr.mxu0 %v3715
        %5085 = vmatpush1.msra.mxu0 %v3714
        %5086 = vmatprep.subr.mxu0 %v3722
        %5087 = vmatpush1.msra.mxu0 %v3721
        %5088 = vmatprep.subr.mxu0 %v3729
        %5089 = vmatpush1.msra.mxu0 %v3728
        %5090 = vmatprep.subr.mxu0 %v3736
        %5091 = vmatpush1.msra.mxu0 %v3735
        %5092 = vmatprep.subr.mxu0 %v3743
        %5093 = vmatpush1.msra.mxu0 %v3742
        %5094 = vmatprep.subr.mxu0 %v3750
        %5095 = vmatpush1.msra.mxu0 %v3749
        %5096 = vmatprep.subr.mxu0 0.0
        %5097 = vmatpush1.msra.mxu0 0.0
        %5098 = vmatprep.subr.mxu0 0.0
        %5099 = vmatpush1.msra.mxu0 0.0
        %5100 = vmatprep.subr.mxu0 0.0
        %5101 = vmatpush1.msra.mxu0 0.0
        %5102 = vmatprep.subr.mxu0 0.0
        %5103 = vmatpush1.msra.mxu0 0.0
        %5104 = vmatprep.subr.mxu0 0.0
        %5105 = vmatpush1.msra.mxu0 0.0
        %5106 = vmatprep.subr.mxu0 0.0
        %5107 = vmatpush1.msra.mxu0 0.0
        %5108 = vmatprep.subr.mxu0 0.0
        %5109 = vmatpush1.msra.mxu0 0.0
        %5110 = vmatprep.subr.mxu0 0.0
        %5111 = vmatpush1.msra.mxu0 0.0
        %5112 = vmatprep.subr.mxu0 0.0
        %5113 = vmatpush1.msra.mxu0 0.0
        %5114 = vmatprep.subr.mxu0 0.0
        %5115 = vmatpush1.msra.mxu0 0.0
        %5116 = vmatprep.subr.mxu0 0.0
        %5117 = vmatpush1.msra.mxu0 0.0
        %5118 = vmatprep.subr.mxu0 0.0
        %5119 = vmatpush1.msra.mxu0 0.0
        %5120 = vmatprep.subr.mxu0 0.0
        %5121 = vmatpush1.msra.mxu0 0.0
        %5122 = vmatprep.subr.mxu0 0.0
        %5123 = vmatpush1.msra.mxu0 0.0
        %5124 = vmatprep.subr.mxu0 0.0
        %5125 = vmatpush1.msra.mxu0 0.0
        %5126 = vmatprep.subr.mxu0 0.0
        %5127 = vmatpush1.msra.mxu0 0.0
        %5128 = vmatprep.subr.mxu0 0.0
        %5129 = vmatpush1.msra.mxu0 0.0
        %5130 = vmatprep.subr.mxu0 0.0
        %5131 = vmatpush1.msra.mxu0 0.0
        %5132 = vmatprep.subr.mxu0 0.0
        %5133 = vmatpush1.msra.mxu0 0.0
        %5134 = vmatprep.subr.mxu0 0.0
        %5135 = vmatpush1.msra.mxu0 0.0
        %5136 = vmatprep.mubr.f32.mxu0 0.0
        %5137 = vmatmul.mubr.f32.gmra.mrb[0].mxu0 %v4082
        %v5138 = vpop.f32.mrb[0].mxu0
        %v5139 = vadd.f32 %v5050, %v5138
        %v5140 = vpop.f32.mrb[0].mxu0
        %v5141 = vadd.f32 %v5052, %v5140
        %5142 = vmatprep.mubr.f32.mxu0 0.0
        %5143 = vmatmul.mubr.f32.gmra.mrb[0].mxu0 %v4085
        %v5144 = vpop.f32.mrb[0].mxu0
        %v5145 = vadd.f32 %v5056, %v5144
        %v5146 = vpop.f32.mrb[0].mxu0
        %v5147 = vadd.f32 %v5058, %v5146
        %5148 = vmatprep.mubr.f32.mxu0 0.0
        %5149 = vmatmul.mubr.f32.gmra.mrb[0].mxu0 %v4088
        %v5150 = vpop.f32.mrb[0].mxu0
        %v5151 = vadd.f32 %v5062, %v5150
        %v5152 = vpop.f32.mrb[0].mxu0
        %v5153 = vadd.f32 %v5064, %v5152
        %5154 = vmatprep.mubr.f32.mxu0 0.0
        %5155 = vmatmul.mubr.f32.gmra.mrb[0].mxu0 %v4091
        %v5156 = vpop.f32.mrb[0].mxu0
        %v5157 = vadd.f32 %v5068, %v5156
        %v5158 = vpop.f32.mrb[0].mxu0
        %v5159 = vadd.f32 %v5070, %v5158
        %5160 = vdwg.mxu0
        %5161 = vmatprep.subr.mxu0 0.0
        %5162 = vmatpush1.msra.mxu0 %v271
        %5163 = vmatprep.subr.mxu0 0.0
        %5164 = vmatpush1.msra.mxu0 %v280
        %5165 = vmatprep.subr.mxu0 0.0
        %5166 = vmatpush1.msra.mxu0 %v289
        %5167 = vmatprep.subr.mxu0 0.0
        %5168 = vmatpush1.msra.mxu0 %v298
        %5169 = vmatprep.subr.mxu0 0.0
        %5170 = vmatpush1.msra.mxu0 %v374
        %5171 = vmatprep.subr.mxu0 0.0
        %5172 = vmatpush1.msra.mxu0 %v388
        %5173 = vmatprep.subr.mxu0 0.0
        %5174 = vmatpush1.msra.mxu0 %v402
        %5175 = vmatprep.subr.mxu0 0.0
        %5176 = vmatpush1.msra.mxu0 %v416
        %5177 = vmatprep.subr.mxu0 0.0
        %5178 = vmatpush1.msra.mxu0 %v483
        %5179 = vmatprep.subr.mxu0 0.0
        %5180 = vmatpush1.msra.mxu0 %v497
        %5181 = vmatprep.subr.mxu0 0.0
        %5182 = vmatpush1.msra.mxu0 %v511
        %5183 = vmatprep.subr.mxu0 0.0
        %5184 = vmatpush1.msra.mxu0 %v525
        %5185 = vmatprep.subr.mxu0 0.0
        %5186 = vmatpush1.msra.mxu0 %v592
        %5187 = vmatprep.subr.mxu0 0.0
        %5188 = vmatpush1.msra.mxu0 %v606
        %5189 = vmatprep.subr.mxu0 0.0
        %5190 = vmatpush1.msra.mxu0 %v620
        %5191 = vmatprep.subr.mxu0 0.0
        %5192 = vmatpush1.msra.mxu0 %v634
        %5193 = vmatprep.subr.mxu0 0.0
        %5194 = vmatpush1.msra.mxu0 %v701
        %5195 = vmatprep.subr.mxu0 0.0
        %5196 = vmatpush1.msra.mxu0 %v715
        %5197 = vmatprep.subr.mxu0 0.0
        %5198 = vmatpush1.msra.mxu0 %v729
        %5199 = vmatprep.subr.mxu0 0.0
        %5200 = vmatpush1.msra.mxu0 %v743
        %5201 = vmatprep.subr.mxu0 0.0
        %5202 = vmatpush1.msra.mxu0 %v810
        %5203 = vmatprep.subr.mxu0 0.0
        %5204 = vmatpush1.msra.mxu0 %v824
        %5205 = vmatprep.subr.mxu0 0.0
        %5206 = vmatpush1.msra.mxu0 %v838
        %5207 = vmatprep.subr.mxu0 0.0
        %5208 = vmatpush1.msra.mxu0 %v852
        %5209 = vmatprep.subr.mxu0 0.0
        %5210 = vmatpush1.msra.mxu0 %v919
        %5211 = vmatprep.subr.mxu0 0.0
        %5212 = vmatpush1.msra.mxu0 %v933
        %5213 = vmatprep.subr.mxu0 0.0
        %5214 = vmatpush1.msra.mxu0 %v947
        %5215 = vmatprep.subr.mxu0 0.0
        %5216 = vmatpush1.msra.mxu0 %v961
        %5217 = vmatprep.subr.mxu0 0.0
        %5218 = vmatpush1.msra.mxu0 %v1028
        %5219 = vmatprep.subr.mxu0 0.0
        %5220 = vmatpush1.msra.mxu0 %v1042
        %5221 = vmatprep.subr.mxu0 0.0
        %5222 = vmatpush1.msra.mxu0 %v1056
        %5223 = vmatprep.subr.mxu0 0.0
        %5224 = vmatpush1.msra.mxu0 %v1070
        %5225 = vmatprep.mubr.f32.mxu0 %v302
        %5226 = vmatmul.mubr.f32.gmra.mrb[0].mxu0 %v301
        %v5227 = vpop.f32.mrb[0].mxu0
        %v5228 = vadd.f32 %v4063, %v5227
        %v5229 = vpop.f32.mrb[0].mxu0
        %5230 = vmatprep.mubr.f32.mxu0 %v309
        %5231 = vmatmul.mubr.f32.gmra.mrb[0].mxu0 %v308
        %v5232 = vpop.f32.mrb[0].mxu0
        %v5233 = vadd.f32 %v4068, %v5232
        %v5234 = vpop.f32.mrb[0].mxu0
        %5235 = vmatprep.mubr.f32.mxu0 %v316
        %5236 = vmatmul.mubr.f32.gmra.mrb[0].mxu0 %v315
        %v5237 = vpop.f32.mrb[0].mxu0
        %v5238 = vadd.f32 %v4073, %v5237
        %v5239 = vpop.f32.mrb[0].mxu0
        %5240 = vmatprep.mubr.f32.mxu0 %v323
        %5241 = vmatmul.mubr.f32.gmra.mrb[0].mxu0 %v322
        %v5242 = vpop.f32.mrb[0].mxu0
        %v5243 = vadd.f32 %v4078, %v5242
        %v5244 = vpop.f32.mrb[0].mxu0
        %5245 = vdwg.mxu0
        %5246 = vmatprep.subr.mxu0 0.0
        %5247 = vmatpush1.msra.mxu0 %v1137
        %5248 = vmatprep.subr.mxu0 0.0
        %5249 = vmatpush1.msra.mxu0 %v1151
        %5250 = vmatprep.subr.mxu0 0.0
        %5251 = vmatpush1.msra.mxu0 %v1165
        %5252 = vmatprep.subr.mxu0 0.0
        %5253 = vmatpush1.msra.mxu0 %v1179
        %5254 = vmatprep.subr.mxu0 0.0
        %5255 = vmatpush1.msra.mxu0 %v1308
        %5256 = vmatprep.subr.mxu0 0.0
        %5257 = vmatpush1.msra.mxu0 %v1315
        %5258 = vmatprep.subr.mxu0 0.0
        %5259 = vmatpush1.msra.mxu0 %v1322
        %5260 = vmatprep.subr.mxu0 0.0
        %5261 = vmatpush1.msra.mxu0 %v1329
        %5262 = vmatprep.subr.mxu0 0.0
        %5263 = vmatpush1.msra.mxu0 %v1429
        %5264 = vmatprep.subr.mxu0 0.0
        %5265 = vmatpush1.msra.mxu0 %v1436
        %5266 = vmatprep.subr.mxu0 0.0
        %5267 = vmatpush1.msra.mxu0 %v1443
        %5268 = vmatprep.subr.mxu0 0.0
        %5269 = vmatpush1.msra.mxu0 %v1450
        %5270 = vmatprep.subr.mxu0 0.0
        %5271 = vmatpush1.msra.mxu0 %v1550
        %5272 = vmatprep.subr.mxu0 0.0
        %5273 = vmatpush1.msra.mxu0 %v1557
        %5274 = vmatprep.subr.mxu0 0.0
        %5275 = vmatpush1.msra.mxu0 %v1564
        %5276 = vmatprep.subr.mxu0 0.0
        %5277 = vmatpush1.msra.mxu0 %v1571
        %5278 = vmatprep.subr.mxu0 0.0
        %5279 = vmatpush1.msra.mxu0 %v1671
        %5280 = vmatprep.subr.mxu0 0.0
        %5281 = vmatpush1.msra.mxu0 %v1678
        %5282 = vmatprep.subr.mxu0 0.0
        %5283 = vmatpush1.msra.mxu0 %v1685
        %5284 = vmatprep.subr.mxu0 0.0
        %5285 = vmatpush1.msra.mxu0 %v1692
        %5286 = vmatprep.subr.mxu0 0.0
        %5287 = vmatpush1.msra.mxu0 %v1792
        %5288 = vmatprep.subr.mxu0 0.0
        %5289 = vmatpush1.msra.mxu0 %v1799
        %5290 = vmatprep.subr.mxu0 0.0
        %5291 = vmatpush1.msra.mxu0 %v1806
        %5292 = vmatprep.subr.mxu0 0.0
        %5293 = vmatpush1.msra.mxu0 %v1813
        %5294 = vmatprep.subr.mxu0 0.0
        %5295 = vmatpush1.msra.mxu0 %v1913
        %5296 = vmatprep.subr.mxu0 0.0
        %5297 = vmatpush1.msra.mxu0 %v1920
        %5298 = vmatprep.subr.mxu0 0.0
        %5299 = vmatpush1.msra.mxu0 %v1927
        %5300 = vmatprep.subr.mxu0 0.0
        %5301 = vmatpush1.msra.mxu0 %v1934
        %5302 = vmatprep.subr.mxu0 0.0
        %5303 = vmatpush1.msra.mxu0 %v2034
        %5304 = vmatprep.subr.mxu0 0.0
        %5305 = vmatpush1.msra.mxu0 %v2041
        %5306 = vmatprep.subr.mxu0 0.0
        %5307 = vmatpush1.msra.mxu0 %v2048
        %5308 = vmatprep.subr.mxu0 0.0
        %5309 = vmatpush1.msra.mxu0 %v2055
        %5310 = vmatprep.mubr.f32.mxu0 %v304
        %5311 = vmatmul.mubr.f32.gmra.mrb[0].mxu0 %v303
        %v5312 = vpop.f32.mrb[0].mxu0
        %v5313 = vadd.f32 %v5228, %v5312
        %v5314 = vpop.f32.mrb[0].mxu0
        %5315 = vmatprep.mubr.f32.mxu0 %v311
        %5316 = vmatmul.mubr.f32.gmra.mrb[0].mxu0 %v310
        %v5317 = vpop.f32.mrb[0].mxu0
        %v5318 = vadd.f32 %v5233, %v5317
        %v5319 = vpop.f32.mrb[0].mxu0
        %5320 = vmatprep.mubr.f32.mxu0 %v318
        %5321 = vmatmul.mubr.f32.gmra.mrb[0].mxu0 %v317
        %v5322 = vpop.f32.mrb[0].mxu0
        %v5323 = vadd.f32 %v5238, %v5322
        %v5324 = vpop.f32.mrb[0].mxu0
        %5325 = vmatprep.mubr.f32.mxu0 %v325
        %5326 = vmatmul.mubr.f32.gmra.mrb[0].mxu0 %v324
        %v5327 = vpop.f32.mrb[0].mxu0
        %v5328 = vadd.f32 %v5243, %v5327
        %v5329 = vpop.f32.mrb[0].mxu0
        %5330 = vdwg.mxu0
        %5331 = vmatprep.subr.mxu0 0.0
        %5332 = vmatpush1.msra.mxu0 %v3450
        %5333 = vmatprep.subr.mxu0 0.0
        %5334 = vmatpush1.msra.mxu0 %v3457
        %5335 = vmatprep.subr.mxu0 0.0
        %5336 = vmatpush1.msra.mxu0 %v3464
        %5337 = vmatprep.subr.mxu0 0.0
        %5338 = vmatpush1.msra.mxu0 %v3471
        %5339 = vmatprep.subr.mxu0 0.0
        %5340 = vmatpush1.msra.mxu0 %v3478
        %5341 = vmatprep.subr.mxu0 0.0
        %5342 = vmatpush1.msra.mxu0 %v3485
        %5343 = vmatprep.subr.mxu0 0.0
        %5344 = vmatpush1.msra.mxu0 %v3492
        %5345 = vmatprep.subr.mxu0 0.0
        %5346 = vmatpush1.msra.mxu0 %v3499
        %5347 = vmatprep.subr.mxu0 0.0
        %5348 = vmatpush1.msra.mxu0 %v3506
        %5349 = vmatprep.subr.mxu0 0.0
        %5350 = vmatpush1.msra.mxu0 %v3513
        %5351 = vmatprep.subr.mxu0 0.0
        %5352 = vmatpush1.msra.mxu0 %v3520
        %5353 = vmatprep.subr.mxu0 0.0
        %5354 = vmatpush1.msra.mxu0 %v3527
        %5355 = vmatprep.subr.mxu0 0.0
        %5356 = vmatpush1.msra.mxu0 %v3534
        %5357 = vmatprep.subr.mxu0 0.0
        %5358 = vmatpush1.msra.mxu0 %v3541
        %5359 = vmatprep.subr.mxu0 0.0
        %5360 = vmatpush1.msra.mxu0 %v3548
        %5361 = vmatprep.subr.mxu0 0.0
        %5362 = vmatpush1.msra.mxu0 %v3555
        %5363 = vmatprep.subr.mxu0 0.0
        %5364 = vmatpush1.msra.mxu0 %v3562
        %5365 = vmatprep.subr.mxu0 0.0
        %5366 = vmatpush1.msra.mxu0 %v3569
        %5367 = vmatprep.subr.mxu0 0.0
        %5368 = vmatpush1.msra.mxu0 %v3576
        %5369 = vmatprep.subr.mxu0 0.0
        %5370 = vmatpush1.msra.mxu0 %v3583
        %5371 = vmatprep.subr.mxu0 0.0
        %5372 = vmatpush1.msra.mxu0 %v3590
        %5373 = vmatprep.subr.mxu0 0.0
        %5374 = vmatpush1.msra.mxu0 %v3597
        %5375 = vmatprep.subr.mxu0 0.0
        %5376 = vmatpush1.msra.mxu0 %v3604
        %5377 = vmatprep.subr.mxu0 0.0
        %5378 = vmatpush1.msra.mxu0 %v3611
        %5379 = vmatprep.subr.mxu0 0.0
        %5380 = vmatpush1.msra.mxu0 %v3618
        %5381 = vmatprep.subr.mxu0 0.0
        %5382 = vmatpush1.msra.mxu0 %v3625
        %5383 = vmatprep.subr.mxu0 0.0
        %5384 = vmatpush1.msra.mxu0 %v3632
        %5385 = vmatprep.subr.mxu0 0.0
        %5386 = vmatpush1.msra.mxu0 %v3639
        %5387 = vmatprep.subr.mxu0 0.0
        %5388 = vmatpush1.msra.mxu0 %v3646
        %5389 = vmatprep.subr.mxu0 0.0
        %5390 = vmatpush1.msra.mxu0 %v3653
        %5391 = vmatprep.subr.mxu0 0.0
        %5392 = vmatpush1.msra.mxu0 %v3660
        %5393 = vmatprep.subr.mxu0 0.0
        %5394 = vmatpush1.msra.mxu0 %v3667
        %5395 = vmatprep.mubr.f32.mxu0 %v306
        %5396 = vmatmul.mubr.f32.gmra.mrb[0].mxu0 %v305
        %v5397 = vpop.f32.mrb[0].mxu0
        %v5398 = vadd.f32 %v5313, %v5397
        %v5399 = vpop.f32.mrb[0].mxu0
        %5400 = vmatprep.mubr.f32.mxu0 %v313
        %5401 = vmatmul.mubr.f32.gmra.mrb[0].mxu0 %v312
        %v5402 = vpop.f32.mrb[0].mxu0
        %v5403 = vadd.f32 %v5318, %v5402
        %v5404 = vpop.f32.mrb[0].mxu0
        %5405 = vmatprep.mubr.f32.mxu0 %v320
        %5406 = vmatmul.mubr.f32.gmra.mrb[0].mxu0 %v319
        %v5407 = vpop.f32.mrb[0].mxu0
        %v5408 = vadd.f32 %v5323, %v5407
        %v5409 = vpop.f32.mrb[0].mxu0
        %5410 = vmatprep.mubr.f32.mxu0 %v327
        %5411 = vmatmul.mubr.f32.gmra.mrb[0].mxu0 %v326
        %v5412 = vpop.f32.mrb[0].mxu0
        %v5413 = vadd.f32 %v5328, %v5412
        %v5414 = vpop.f32.mrb[0].mxu0
        %5415 = vdwg.mxu0
        %5416 = vmatprep.subr.mxu0 0.0
        %5417 = vmatpush1.msra.mxu0 %v3674
        %5418 = vmatprep.subr.mxu0 0.0
        %5419 = vmatpush1.msra.mxu0 %v3681
        %5420 = vmatprep.subr.mxu0 0.0
        %5421 = vmatpush1.msra.mxu0 %v3688
        %5422 = vmatprep.subr.mxu0 0.0
        %5423 = vmatpush1.msra.mxu0 %v3695
        %5424 = vmatprep.subr.mxu0 0.0
        %5425 = vmatpush1.msra.mxu0 %v3702
        %5426 = vmatprep.subr.mxu0 0.0
        %5427 = vmatpush1.msra.mxu0 %v3709
        %5428 = vmatprep.subr.mxu0 0.0
        %5429 = vmatpush1.msra.mxu0 %v3716
        %5430 = vmatprep.subr.mxu0 0.0
        %5431 = vmatpush1.msra.mxu0 %v3723
        %5432 = vmatprep.subr.mxu0 0.0
        %5433 = vmatpush1.msra.mxu0 %v3730
        %5434 = vmatprep.subr.mxu0 0.0
        %5435 = vmatpush1.msra.mxu0 %v3737
        %5436 = vmatprep.subr.mxu0 0.0
        %5437 = vmatpush1.msra.mxu0 %v3744
        %5438 = vmatprep.subr.mxu0 0.0
        %5439 = vmatpush1.msra.mxu0 %v3751
        %5440 = vmatprep.subr.mxu0 0.0
        %5441 = vmatpush1.msra.mxu0 0.0
        %5442 = vmatprep.subr.mxu0 0.0
        %5443 = vmatpush1.msra.mxu0 0.0
        %5444 = vmatprep.subr.mxu0 0.0
        %5445 = vmatpush1.msra.mxu0 0.0
        %5446 = vmatprep.subr.mxu0 0.0
        %5447 = vmatpush1.msra.mxu0 0.0
        %5448 = vmatprep.subr.mxu0 0.0
        %5449 = vmatpush1.msra.mxu0 0.0
        %5450 = vmatprep.subr.mxu0 0.0
        %5451 = vmatpush1.msra.mxu0 0.0
        %5452 = vmatprep.subr.mxu0 0.0
        %5453 = vmatpush1.msra.mxu0 0.0
        %5454 = vmatprep.subr.mxu0 0.0
        %5455 = vmatpush1.msra.mxu0 0.0
        %5456 = vmatprep.subr.mxu0 0.0
        %5457 = vmatpush1.msra.mxu0 0.0
        %5458 = vmatprep.subr.mxu0 0.0
        %5459 = vmatpush1.msra.mxu0 0.0
        %5460 = vmatprep.subr.mxu0 0.0
        %5461 = vmatpush1.msra.mxu0 0.0
        %5462 = vmatprep.subr.mxu0 0.0
        %5463 = vmatpush1.msra.mxu0 0.0
        %5464 = vmatprep.subr.mxu0 0.0
        %5465 = vmatpush1.msra.mxu0 0.0
        %5466 = vmatprep.subr.mxu0 0.0
        %5467 = vmatpush1.msra.mxu0 0.0
        %5468 = vmatprep.subr.mxu0 0.0
        %5469 = vmatpush1.msra.mxu0 0.0
        %5470 = vmatprep.subr.mxu0 0.0
        %5471 = vmatpush1.msra.mxu0 0.0
        %5472 = vmatprep.subr.mxu0 0.0
        %5473 = vmatpush1.msra.mxu0 0.0
        %5474 = vmatprep.subr.mxu0 0.0
        %5475 = vmatpush1.msra.mxu0 0.0
        %5476 = vmatprep.subr.mxu0 0.0
        %5477 = vmatpush1.msra.mxu0 0.0
        %5478 = vmatprep.subr.mxu0 0.0
        %5479 = vmatpush1.msra.mxu0 0.0
        %5480 = vmatprep.mubr.f32.mxu0 0.0
        %5481 = vmatmul.mubr.f32.gmra.mrb[0].mxu0 %v4082
        %v5482 = vpop.f32.mrb[0].mxu0
        %v5483 = vadd.f32 %v5398, %v5482
        %v5484 = vpop.f32.mrb[0].mxu0
        %5485 = vmatprep.mubr.f32.mxu0 0.0
        %5486 = vmatmul.mubr.f32.gmra.mrb[0].mxu0 %v4085
        %v5487 = vpop.f32.mrb[0].mxu0
        %v5488 = vadd.f32 %v5403, %v5487
        %v5489 = vpop.f32.mrb[0].mxu0
        %5490 = vmatprep.mubr.f32.mxu0 0.0
        %5491 = vmatmul.mubr.f32.gmra.mrb[0].mxu0 %v4088
        %v5492 = vpop.f32.mrb[0].mxu0
        %v5493 = vadd.f32 %v5408, %v5492
        %v5494 = vpop.f32.mrb[0].mxu0
        %5495 = vmatprep.mubr.f32.mxu0 0.0
        %5496 = vmatmul.mubr.f32.gmra.mrb[0].mxu0 %v4091
        %v5497 = vpop.f32.mrb[0].mxu0
        %v5498 = vadd.f32 %v5413, %v5497
        %v5499 = vpop.f32.mrb[0].mxu0
        %5500 = vdwg.mxu0
        %5501 = vst [vmem:[%s253] sm:$0xff] %v4427
        %5502 = vst [vmem:[%s253 + $0x8] sm:$0xff] %v4429
        %5503 = vst [vmem:[%s253 + $0x10] sm:$0xff] %v4783
        %5504 = vst [vmem:[%s253 + $0x18] sm:$0xff] %v4785
        %5505 = vst [vmem:[%s253 + $0x20] sm:$0xff] %v5139
        %5506 = vst [vmem:[%s253 + $0x28] sm:$0xff] %v5141
        %vm5507 = vcmask 441344
        %5508 = vst.msk [vmem:[%s253 + $0x30] sm:$0xff] %vm5507, %v5483
        %5509 = vst [vmem:[%s253 + $0x38] sm:$0xff] %v4433
        %5510 = vst [vmem:[%s253 + $0x40] sm:$0xff] %v4435
        %5511 = vst [vmem:[%s253 + $0x48] sm:$0xff] %v4789
        %5512 = vst [vmem:[%s253 + $0x50] sm:$0xff] %v4791
        %5513 = vst [vmem:[%s253 + $0x58] sm:$0xff] %v5145
        %5514 = vst [vmem:[%s253 + $0x60] sm:$0xff] %v5147
        %5515 = vst.msk [vmem:[%s253 + $0x68] sm:$0xff] %vm5507, %v5488
        %5516 = vst [vmem:[%s253 + $0x70] sm:$0xff] %v4439
        %5517 = vst [vmem:[%s253 + $0x78] sm:$0xff] %v4441
        %5518 = vst [vmem:[%s253 + $0x80] sm:$0xff] %v4795
        %5519 = vst [vmem:[%s253 + $0x88] sm:$0xff] %v4797
        %5520 = vst [vmem:[%s253 + $0x90] sm:$0xff] %v5151
        %5521 = vst [vmem:[%s253 + $0x98] sm:$0xff] %v5153
        %5522 = vst.msk [vmem:[%s253 + $0xa0] sm:$0xff] %vm5507, %v5493
        %5523 = vst [vmem:[%s253 + $0xa8] sm:$0xff] %v4445
        %5524 = vst [vmem:[%s253 + $0xb0] sm:$0xff] %v4447
        %5525 = vst [vmem:[%s253 + $0xb8] sm:$0xff] %v4801
        %5526 = vst [vmem:[%s253 + $0xc0] sm:$0xff] %v4803
        %5527 = vst [vmem:[%s253 + $0xc8] sm:$0xff] %v5157
        %5528 = vst [vmem:[%s253 + $0xd0] sm:$0xff] %v5159
        %5529 = vst.msk [vmem:[%s253 + $0xd8] sm:$0xff] %vm5507, %v5498
        %v5530 = vld [vmem:[%s5] sm:$0xff]
        %v5531 = vld [vmem:[%s5 + $0x8] sm:$0xff]
        %v5532 = vld [vmem:[%s5 + $0x10] sm:$0xff]
        %v5533 = vld [vmem:[%s5 + $0x18] sm:$0xff]
        %v5534 = vld [vmem:[%s3] sm:$0x7f]
        %v5536 = vlaneseq
        %v5537 = vshrl.u32 %v5536, 7
        %v5538 = vsub.s32 0, %v5537
        %v5539 = vrot.slane %v5534, %v5538
        %v5540 = vlaneseq
        %v5541 = vshrl.u32 %v5540, 7
        %v5542 = vsub.s32 1, %v5541
        %v5543 = vrot.slane %v5534, %v5542
        %v5544 = vlaneseq
        %v5545 = vshrl.u32 %v5544, 7
        %v5546 = vsub.s32 2, %v5545
        %v5547 = vrot.slane %v5534, %v5546
        %v5548 = vlaneseq
        %v5549 = vshrl.u32 %v5548, 7
        %v5550 = vsub.s32 3, %v5549
        %v5551 = vrot.slane %v5534, %v5550
        %v5552 = vlaneseq
        %v5553 = vshrl.u32 %v5552, 7
        %v5554 = vsub.s32 4, %v5553
        %v5555 = vrot.slane %v5534, %v5554
        %v5556 = vlaneseq
        %v5557 = vshrl.u32 %v5556, 7
        %v5558 = vsub.s32 5, %v5557
        %v5559 = vrot.slane %v5534, %v5558
        %v5560 = vlaneseq
        %v5561 = vshrl.u32 %v5560, 7
        %v5562 = vsub.s32 6, %v5561
        %v5563 = vrot.slane %v5534, %v5562
        %v5571 = vmul.f32 %v4427, %v5539
        %v5572 = vmul.f32 %v4429, %v5543
        %v5573 = vmul.f32 %v4783, %v5547
        %v5574 = vmul.f32 %v4785, %v5551
        %v5575 = vmul.f32 %v5139, %v5555
        %v5576 = vmul.f32 %v5141, %v5559
        %v5577 = vmul.f32 %v5483, %v5563
        %v5578 = vmul.f32 %v4433, %v5539
        %v5579 = vmul.f32 %v4435, %v5543
        %v5580 = vmul.f32 %v4789, %v5547
        %v5581 = vmul.f32 %v4791, %v5551
        %v5582 = vmul.f32 %v5145, %v5555
        %v5583 = vmul.f32 %v5147, %v5559
        %v5584 = vmul.f32 %v5488, %v5563
        %v5585 = vmul.f32 %v4439, %v5539
        %v5586 = vmul.f32 %v4441, %v5543
        %v5587 = vmul.f32 %v4795, %v5547
        %v5588 = vmul.f32 %v4797, %v5551
        %v5589 = vmul.f32 %v5151, %v5555
        %v5590 = vmul.f32 %v5153, %v5559
        %v5591 = vmul.f32 %v5493, %v5563
        %v5592 = vmul.f32 %v4445, %v5539
        %v5593 = vmul.f32 %v4447, %v5543
        %v5594 = vmul.f32 %v4801, %v5547
        %v5595 = vmul.f32 %v4803, %v5551
        %v5596 = vmul.f32 %v5157, %v5555
        %v5597 = vmul.f32 %v5159, %v5559
        %v5598 = vmul.f32 %v5498, %v5563
        %v5599 = vadd.f32 %v5571, %v5572
        %v5600 = vadd.f32 %v5599, %v5573
        %v5601 = vadd.f32 %v5600, %v5574
        %v5602 = vadd.f32 %v5601, %v5575
        %v5603 = vadd.f32 %v5602, %v5576
        %v5604 = vsel %vm5507, %v5577, 0.0
        %v5605 = vadd.f32 %v5603, %v5604
        %5606 = vadd.xlane.f32.xlu0 %v5605
        %v5607 = vpop.xlane.xlu0 %5606
        %v5608 = vadd.f32 %v5578, %v5579
        %v5609 = vadd.f32 %v5608, %v5580
        %v5610 = vadd.f32 %v5609, %v5581
        %v5611 = vadd.f32 %v5610, %v5582
        %v5612 = vadd.f32 %v5611, %v5583
        %v5613 = vsel %vm5507, %v5584, 0.0
        %v5614 = vadd.f32 %v5612, %v5613
        %5615 = vadd.xlane.f32.xlu0 %v5614
        %v5616 = vpop.xlane.xlu0 %5615
        %v5617 = vadd.f32 %v5585, %v5586
        %v5618 = vadd.f32 %v5617, %v5587
        %v5619 = vadd.f32 %v5618, %v5588
        %v5620 = vadd.f32 %v5619, %v5589
        %v5621 = vadd.f32 %v5620, %v5590
        %v5622 = vsel %vm5507, %v5591, 0.0
        %v5623 = vadd.f32 %v5621, %v5622
        %5624 = vadd.xlane.f32.xlu0 %v5623
        %v5625 = vpop.xlane.xlu0 %5624
        %v5626 = vadd.f32 %v5592, %v5593
        %v5627 = vadd.f32 %v5626, %v5594
        %v5628 = vadd.f32 %v5627, %v5595
        %v5629 = vadd.f32 %v5628, %v5596
        %v5630 = vadd.f32 %v5629, %v5597
        %v5631 = vsel %vm5507, %v5598, 0.0
        %v5632 = vadd.f32 %v5630, %v5631
        %5633 = vadd.xlane.f32.xlu0 %v5632
        %v5634 = vpop.xlane.xlu0 %5633
        %v5635 = vmul.f32 %v5571, %v4427
        %v5636 = vmul.f32 %v5572, %v4429
        %v5637 = vmul.f32 %v5573, %v4783
        %v5638 = vmul.f32 %v5574, %v4785
        %v5639 = vmul.f32 %v5575, %v5139
        %v5640 = vmul.f32 %v5576, %v5141
        %v5641 = vmul.f32 %v5577, %v5483
        %v5642 = vmul.f32 %v5578, %v4433
        %v5643 = vmul.f32 %v5579, %v4435
        %v5644 = vmul.f32 %v5580, %v4789
        %v5645 = vmul.f32 %v5581, %v4791
        %v5646 = vmul.f32 %v5582, %v5145
        %v5647 = vmul.f32 %v5583, %v5147
        %v5648 = vmul.f32 %v5584, %v5488
        %v5649 = vmul.f32 %v5585, %v4439
        %v5650 = vmul.f32 %v5586, %v4441
        %v5651 = vmul.f32 %v5587, %v4795
        %v5652 = vmul.f32 %v5588, %v4797
        %v5653 = vmul.f32 %v5589, %v5151
        %v5654 = vmul.f32 %v5590, %v5153
        %v5655 = vmul.f32 %v5591, %v5493
        %v5656 = vmul.f32 %v5592, %v4445
        %v5657 = vmul.f32 %v5593, %v4447
        %v5658 = vmul.f32 %v5594, %v4801
        %v5659 = vmul.f32 %v5595, %v4803
        %v5660 = vmul.f32 %v5596, %v5157
        %v5661 = vmul.f32 %v5597, %v5159
        %v5662 = vmul.f32 %v5598, %v5498
        %v5663 = vadd.f32 %v5635, %v5636
        %v5664 = vadd.f32 %v5663, %v5637
        %v5665 = vadd.f32 %v5664, %v5638
        %v5666 = vadd.f32 %v5665, %v5639
        %v5667 = vadd.f32 %v5666, %v5640
        %v5668 = vsel %vm5507, %v5641, 0.0
        %v5669 = vadd.f32 %v5667, %v5668
        %5670 = vadd.xlane.f32.xlu0 %v5669
        %v5671 = vpop.xlane.xlu0 %5670
        %v5672 = vadd.f32 %v5642, %v5643
        %v5673 = vadd.f32 %v5672, %v5644
        %v5674 = vadd.f32 %v5673, %v5645
        %v5675 = vadd.f32 %v5674, %v5646
        %v5676 = vadd.f32 %v5675, %v5647
        %v5677 = vsel %vm5507, %v5648, 0.0
        %v5678 = vadd.f32 %v5676, %v5677
        %5679 = vadd.xlane.f32.xlu0 %v5678
        %v5680 = vpop.xlane.xlu0 %5679
        %v5681 = vadd.f32 %v5649, %v5650
        %v5682 = vadd.f32 %v5681, %v5651
        %v5683 = vadd.f32 %v5682, %v5652
        %v5684 = vadd.f32 %v5683, %v5653
        %v5685 = vadd.f32 %v5684, %v5654
        %v5686 = vsel %vm5507, %v5655, 0.0
        %v5687 = vadd.f32 %v5685, %v5686
        %5688 = vadd.xlane.f32.xlu0 %v5687
        %v5689 = vpop.xlane.xlu0 %5688
        %v5690 = vadd.f32 %v5656, %v5657
        %v5691 = vadd.f32 %v5690, %v5658
        %v5692 = vadd.f32 %v5691, %v5659
        %v5693 = vadd.f32 %v5692, %v5660
        %v5694 = vadd.f32 %v5693, %v5661
        %v5695 = vsel %vm5507, %v5662, 0.0
        %v5696 = vadd.f32 %v5694, %v5695
        %5697 = vadd.xlane.f32.xlu0 %v5696
        %v5698 = vpop.xlane.xlu0 %5697
        %vm5699 = vcmask 7168
        %v5700 = vsel %vm5699, %v5607, %v5671
        %v5701 = vsel %vm5699, %v5616, %v5680
        %v5702 = vsel %vm5699, %v5625, %v5689
        %v5703 = vsel %vm5699, %v5634, %v5698
        %v5704 = vadd.f32 %v5530, %v5700
        %v5705 = vadd.f32 %v5531, %v5701
        %v5706 = vadd.f32 %v5532, %v5702
        %v5707 = vadd.f32 %v5533, %v5703
        %vm5708 = vcmask 15360
        %5709 = vst.msk [vmem:[%s5] sm:$0xff] %vm5708, %v5704
        %5710 = vst.msk [vmem:[%s5 + $0x8] sm:$0xff] %vm5708, %v5705
        %5711 = vst.msk [vmem:[%s5 + $0x10] sm:$0xff] %vm5708, %v5706
        %5712 = vst.msk [vmem:[%s5 + $0x18] sm:$0xff] %vm5708, %v5707
        %s5713 = sand.u32 %s121, 1
        %s5714 = scalar_lea.sflag [#allocation4], %s5713
        %s5715 = sand.u32 %s121, 1
        %s5716 = smul.addr %s5715, 224
        %s5717 = scalar_lea.vmem [#allocation7], %s5716
        // Predicated region
        $region49: #{tpu_custom_call.1} parent=35 // pred_check
          %p5718 = pneg %p131
        $region50: #{tpu_custom_call.1} parent=35 // pred_check_branch
          %5720 = sbr.rel (%p5718) target = $region52
        $region51: #{tpu_custom_call.1} parent=35 // pred_region
          %s5722 = ssub.s32 3584, 3584
          %5723 = vsyncadd %s5714, %s5722
          %s5724 = smul.addr %s24, 28
          %s5725 = smul.addr %s5724, 128
          %s5726 = scalar_lea.hbm %s4, %s5725
          %s5727 = sshll.u32 %s5717, 4
          %s5728 = int_to_ptr.vmem [resolvable:$true] %s5727
          %5733 = dma.vmem_to_hbm [thread:$0]  %s5728, 3584, %s5726, %s5714, 896, 896, 56
        $region52: #{tpu_custom_call.1} parent=35 // pred_fallthru
          _
        // Predicated region
        $region53: #{tpu_custom_call.1} parent=35 // pred_check
          %p5734 = pneg %p152
        $region54: #{tpu_custom_call.1} parent=35 // pred_check_branch
          %5736 = sbr.rel (%p5734) target = $region56
        $region55: #{tpu_custom_call.1} parent=35 // pred_region
          _
        $region56: #{tpu_custom_call.1} parent=35 // pred_fallthru
          _
        // Predicated region
        $region57: #{tpu_custom_call.1} parent=35 // pred_check
          %p5737 = pneg %p152
        $region58: #{tpu_custom_call.1} parent=35 // pred_check_branch
          %5739 = sbr.rel (%p5737) target = $region60
        $region59: #{tpu_custom_call.1} parent=35 // pred_region
          _
        $region60: #{tpu_custom_call.1} parent=35 // pred_fallthru
          _
      $region36: #{tpu_custom_call.1} parent=5 // pred_fallthru
        _
      %p5740 = scmp.le.s32.totalorder 2, %s19
      // Predicated region
      $region61: #{tpu_custom_call.1} parent=5 // pred_check
        %p5741 = pneg %p5740
      $region62: #{tpu_custom_call.1} parent=5 // pred_check_branch
        %5743 = sbr.rel (%p5741) target = $region64
      $region63: #{tpu_custom_call.1} parent=5 // pred_region
        %s5744 = ssub.s32 %s19, 2
        // Predicated region
        $region65: #{tpu_custom_call.1} parent=63 // pred_check
          %p5745 = pneg %p137
        $region66: #{tpu_custom_call.1} parent=63 // pred_check_branch
          %5747 = sbr.rel (%p5745) target = $region68
        $region67: #{tpu_custom_call.1} parent=63 // pred_region
          %s5748 = sand.u32 %s122, 1
          %s5749 = scalar_lea.sflag [#allocation4], %s5748
          %s5750 = sand.u32 %s122, 1
          %s5751 = smul.addr %s5750, 224
          %s5752 = scalar_lea.vmem [#allocation7], %s5751
          %5753 = dma.done %s5749, 3584
        $region68: #{tpu_custom_call.1} parent=63 // pred_fallthru
          _
      $region64: #{tpu_custom_call.1} parent=5 // pred_fallthru
        _
    $region6: #{tpu_custom_call.1} parent=1 // loop_footer
      %s23 = sadd.s32 1, %s19
    $region7: #{tpu_custom_call.1} parent=1 // loop_footer_branch
      %18 = sbr.rel target = $region3
    $region8: #{tpu_custom_call.1} parent=1 // loop_exit
      _
    %5754 = vsyncpa [#allocation3], 1
    %s5755 = scalar_lea.sflag [#allocation3], 1
    %5756 = vsyncpa %s5755, 1
    %5757 = vsyncpa [#allocation6], 1
    %5758 = vsyncpa [#allocation4], 1
    %s5759 = scalar_lea.sflag [#allocation4], 1
    %5760 = vsyncpa %s5759, 1

</llo_original>
